<compile_context>
chip_gen: v7x
topology: tpu7x:2x2x1
jax: 0.10.0
libtpu: 0.0.40
codegen_flags: <defaults>
</compile_context>

<pallas_src>
import functools
import math

import jax
import jax.numpy as jnp
from jax.experimental import pallas as pl
from jax.experimental.pallas import tpu as pltpu

_ROW_TILE_CAP = 512  # big row tiles amortise the ~0.35us/step overhead


# ----------------------------------------------------------------------------
# Pallas kernels
# ----------------------------------------------------------------------------
def _conv1x1_stats_kernel(x_ref, w_ref, y_ref, s_ref, q_ref):
    # y = x @ W  (bias skipped: cancelled by the following batch-stat BatchNorm).
    # bf16 operands, f32 accumulation; stats taken from the f32 acc before cast.
    y = jnp.dot(x_ref[...], w_ref[...], preferred_element_type=jnp.float32)
    y_ref[...] = y.astype(y_ref.dtype)
    # Zero-padded tail rows (if any) contribute exactly 0 to both sums.
    s_ref[...] = jnp.sum(y, axis=0, keepdims=True)[None]
    q_ref[...] = jnp.sum(y * y, axis=0, keepdims=True)[None]


def _bnrelu6_conv1x1_stats_kernel(x_ref, sc_ref, sh_ref, w_ref, y_ref, s_ref, q_ref,
                                  *, rows_valid, tm):
    # Fused: BN-apply + ReLU6 on the bf16 input read, 1x1 conv, partial BN stats.
    a = x_ref[...].astype(jnp.float32) * sc_ref[...] + sh_ref[...]
    a = jnp.minimum(jnp.maximum(a, 0.0), 6.0)
    y = jnp.dot(a.astype(jnp.bfloat16), w_ref[...],
                preferred_element_type=jnp.float32)
    y_ref[...] = y.astype(y_ref.dtype)
    if rows_valid % tm != 0:
        # Static branch: only generated when the row grid needed padding. Padded
        # rows map to relu6(shift) != 0, so exclude them from the statistics.
        row = pl.program_id(0) * tm + jax.lax.broadcasted_iota(jnp.int32, (tm, 1), 0)
        y = jnp.where(row < rows_valid, y, 0.0)
    s_ref[...] = jnp.sum(y, axis=0, keepdims=True)[None]
    q_ref[...] = jnp.sum(y * y, axis=0, keepdims=True)[None]


def _bnrelu6_dw3x3_stats_kernel(x_ref, sc_ref, sh_ref, w_ref, y_ref, s_ref, q_ref,
                                buf_ref, *, stride):
    # x_ref:  (1, H, W, C)  bf16 pre-BN stage-1 activations for one image
    # w_ref:  (9, C)        f32 depthwise 3x3 weights
    # buf_ref:(H+2, W+2, C) f32 VMEM halo buffer -- spatial zero padding lives here,
    #                       never in HBM.
    h, w, c = x_ref.shape[1], x_ref.shape[2], x_ref.shape[3]
    ho = (h + 2 - 3) // stride + 1
    wo = (w + 2 - 3) // stride + 1

    # Zero the scratch ONCE; it persists across grid steps and the interior is
    # fully rewritten every step, so the 1-pixel zero border stays valid.
    @pl.when(pl.program_id(0) == 0)
    def _():
        buf_ref[...] = jnp.zeros(buf_ref.shape, buf_ref.dtype)

    # Fused BN1-apply + ReLU6 in f32 (zero padding applies to the post-activation map).
    a = x_ref[0].astype(jnp.float32) * sc_ref[...] + sh_ref[...]
    a = jnp.minimum(jnp.maximum(a, 0.0), 6.0)
    buf_ref[1:h + 1, 1:w + 1, :] = a

    wk_all = w_ref[...]                       # (9, C)
    hr = (ho - 1) * stride + 1
    wr = (wo - 1) * stride + 1
    acc = None
    for kh in range(3):                       # unrolled 9-step f32 FMA
        for kw in range(3):
            tap = buf_ref[kh:kh + hr, kw:kw + wr, :]
            if stride != 1:
                tap = tap[::stride, ::stride, :]
            term = tap * wk_all[kh * 3 + kw].reshape(1, 1, c)
            acc = term if acc is None else acc + term

    y_ref[...] = acc[None].astype(y_ref.dtype)
    s_ref[...] = jnp.sum(acc, axis=(0, 1), keepdims=True)
    q_ref[...] = jnp.sum(acc * acc, axis=(0, 1), keepdims=True)


def _bn_apply_kernel(y_ref, sc_ref, sh_ref, o_ref):
    o_ref[...] = y_ref[...].astype(jnp.float32) * sc_ref[...] + sh_ref[...]


def _bn_apply_residual_kernel(y_ref, sc_ref, sh_ref, r_ref, o_ref):
    o_ref[...] = (y_ref[...].astype(jnp.float32) * sc_ref[...] + sh_ref[...]
                  + r_ref[...])


# ----------------------------------------------------------------------------
# Small helpers (layout glue + BN finalisation)
# ----------------------------------------------------------------------------
def _round_up(v, m):
    return ((v + m - 1) // m) * m


def _pick_row_tile(m, cap=_ROW_TILE_CAP):
    # Prefer a tile that divides M exactly (no row padding / no masking).
    for cand in (cap, 256, 128, 64, 32, 16, 8):
        if cand <= m and m % cand == 0:
            return cand
    return min(cap, _round_up(m, 8))


def _pad_rows(x, tm):
    m = x.shape[0]
    mp = _round_up(m, tm)
    if mp != m:
        x = jnp.pad(x, ((0, mp - m), (0, 0)))
    return x, mp


def _compiler_params():
    # 32 MiB scoped VMEM: safe on every generation (half of v7x's 64 MiB physical,
    # comfortable headroom on v5e/v6e's 128 MiB).
    return pltpu.CompilerParams(
        dimension_semantics=("parallel",),
        vmem_limit_bytes=32 * 1024 * 1024,
    )


def _bn_scale_shift(s_part, q_part, count, gamma, beta, eps):
    # s_part/q_part: (num_blocks, 1, C) partial f32 sum / sum-of-squares.
    s = jnp.sum(s_part[:, 0, :], axis=0)
    q = jnp.sum(q_part[:, 0, :], axis=0)
    mean = s / count
    var = jnp.maximum(q / count - mean * mean, 0.0)   # biased variance (training BN)
    inv = jax.lax.rsqrt(var + eps)
    scale = gamma * inv
    shift = beta - mean * scale
    c = scale.shape[0]
    return scale.reshape(1, c), shift.reshape(1, c)


# ----------------------------------------------------------------------------
# pallas_call wrappers
# ----------------------------------------------------------------------------
def _conv1x1_with_stats(x, w, c_out):
    m, c_in = x.shape
    tm = _pick_row_tile(m)
    xp, mp = _pad_rows(x, tm)
    nb = mp // tm
    y, s, q = pl.pallas_call(
        _conv1x1_stats_kernel,
        out_shape=(jax.ShapeDtypeStruct((mp, c_out), jnp.bfloat16),
                   jax.ShapeDtypeStruct((nb, 1, c_out), jnp.float32),
                   jax.ShapeDtypeStruct((nb, 1, c_out), jnp.float32)),
        grid_spec=pltpu.PrefetchScalarGridSpec(
            num_scalar_prefetch=0,
            grid=(nb,),
            in_specs=[pl.BlockSpec((tm, c_in), lambda i: (i, 0)),
                      pl.BlockSpec((c_in, c_out), lambda i: (0, 0))],
            out_specs=(pl.BlockSpec((tm, c_out), lambda i: (i, 0)),
                       pl.BlockSpec((1, 1, c_out), lambda i: (i, 0, 0)),
                       pl.BlockSpec((1, 1, c_out), lambda i: (i, 0, 0))),
        ),
        compiler_params=_compiler_params(),
    )(xp, w)
    return y, s, q, mp


def _bnrelu6_conv1x1_with_stats(x, scale, shift, w, c_out):
    m, c_in = x.shape
    tm = _pick_row_tile(m)
    xp, mp = _pad_rows(x, tm)
    nb = mp // tm
    kern = functools.partial(_bnrelu6_conv1x1_stats_kernel, rows_valid=m, tm=tm)
    y, s, q = pl.pallas_call(
        kern,
        out_shape=(jax.ShapeDtypeStruct((mp, c_out), jnp.bfloat16),
                   jax.ShapeDtypeStruct((nb, 1, c_out), jnp.float32),
                   jax.ShapeDtypeStruct((nb, 1, c_out), jnp.float32)),
        grid_spec=pltpu.PrefetchScalarGridSpec(
            num_scalar_prefetch=0,
            grid=(nb,),
            in_specs=[pl.BlockSpec((tm, c_in), lambda i: (i, 0)),
                      pl.BlockSpec((1, c_in), lambda i: (0, 0)),
                      pl.BlockSpec((1, c_in), lambda i: (0, 0)),
                      pl.BlockSpec((c_in, c_out), lambda i: (0, 0))],
            out_specs=(pl.BlockSpec((tm, c_out), lambda i: (i, 0)),
                       pl.BlockSpec((1, 1, c_out), lambda i: (i, 0, 0)),
                       pl.BlockSpec((1, 1, c_out), lambda i: (i, 0, 0))),
        ),
        compiler_params=_compiler_params(),
    )(xp, scale, shift, w)
    return y, s, q, mp


def _bnrelu6_dw3x3_with_stats(y1, scale, shift, wdw, stride):
    n, h, w, c = y1.shape
    ho = (h + 2 - 3) // stride + 1
    wo = (w + 2 - 3) // stride + 1
    kern = functools.partial(_bnrelu6_dw3x3_stats_kernel, stride=stride)
    y2, s, q = pl.pallas_call(
        kern,
        out_shape=(jax.ShapeDtypeStruct((n, ho, wo, c), jnp.bfloat16),
                   jax.ShapeDtypeStruct((n, 1, c), jnp.float32),
                   jax.ShapeDtypeStruct((n, 1, c), jnp.float32)),
        grid_spec=pltpu.PrefetchScalarGridSpec(
            num_scalar_prefetch=0,
            grid=(n,),
            in_specs=[pl.BlockSpec((1, h, w, c), lambda i: (i, 0, 0, 0)),
                      pl.BlockSpec((1, c), lambda i: (0, 0)),
                      pl.BlockSpec((1, c), lambda i: (0, 0)),
                      pl.BlockSpec((9, c), lambda i: (0, 0))],
            out_specs=(pl.BlockSpec((1, ho, wo, c), lambda i: (i, 0, 0, 0)),
                       pl.BlockSpec((1, 1, c), lambda i: (i, 0, 0)),
                       pl.BlockSpec((1, 1, c), lambda i: (i, 0, 0))),
            scratch_shapes=[pltpu.VMEM((h + 2, w + 2, c), jnp.float32)],
        ),
        compiler_params=_compiler_params(),
    )(y1, scale, shift, wdw)
    return y2, s, q


def _bn_apply(y, scale, shift, residual=None):
    mp, c = y.shape
    tm = _pick_row_tile(mp)   # mp is a multiple of 8, so this always divides it
    nb = mp // tm
    if residual is None:
        kern = _bn_apply_kernel
        in_specs = [pl.BlockSpec((tm, c), lambda i: (i, 0)),
                    pl.BlockSpec((1, c), lambda i: (0, 0)),
                    pl.BlockSpec((1, c), lambda i: (0, 0))]
        args = (y, scale, shift)
    else:
        kern = _bn_apply_residual_kernel
        in_specs = [pl.BlockSpec((tm, c), lambda i: (i, 0)),
                    pl.BlockSpec((1, c), lambda i: (0, 0)),
                    pl.BlockSpec((1, c), lambda i: (0, 0)),
                    pl.BlockSpec((tm, c), lambda i: (i, 0))]
        args = (y, scale, shift, residual)
    return pl.pallas_call(
        kern,
        out_shape=jax.ShapeDtypeStruct((mp, c), jnp.float32),
        grid_spec=pltpu.PrefetchScalarGridSpec(
            num_scalar_prefetch=0,
            grid=(nb,),
            in_specs=in_specs,
            out_specs=pl.BlockSpec((tm, c), lambda i: (i, 0)),
        ),
        compiler_params=_compiler_params(),
    )(*args)


# ----------------------------------------------------------------------------
# Parameter init (deterministic, mirrors the module's init_weights)
# ----------------------------------------------------------------------------
def _xavier_uniform(key, shape_oihw):
    cout, cin_pg, kh, kw = shape_oihw
    fan_in = cin_pg * kh * kw
    fan_out = cout * kh * kw
    bound = math.sqrt(6.0 / (fan_in + fan_out))
    return jax.random.uniform(key, shape_oihw, jnp.float32, -bound, bound)


def init_params(key, cin, cout):
    c6 = cin * 6
    k1, k2, k3 = jax.random.split(key, 3)
    return {
        # Conv2d_1: 1x1, cin -> 6*cin
        "w1": _xavier_uniform(k1, (c6, cin, 1, 1)),
        "b1": jnp.zeros((c6,), jnp.float32),
        "g1": jnp.ones((c6,), jnp.float32),
        "be1": jnp.zeros((c6,), jnp.float32),
        # GroupConv2d: 3x3 depthwise (groups = 6*cin)
        "wg": _xavier_uniform(k2, (c6, 1, 3, 3)),
        "bg": jnp.zeros((c6,), jnp.float32),
        "gg": jnp.ones((c6,), jnp.float32),
        "beg": jnp.zeros((c6,), jnp.float32),
        # Conv2d_2: 1x1, 6*cin -> cout
        "w2": _xavier_uniform(k3, (cout, c6, 1, 1)),
        "b2": jnp.zeros((cout,), jnp.float32),
        "g2": jnp.ones((cout,), jnp.float32),
        "be2": jnp.zeros((cout,), jnp.float32),
    }


# ----------------------------------------------------------------------------
# Forward pass
# ----------------------------------------------------------------------------
def mobilenet_v2_conv2d(x_nchw, params, *, s=1, eps=1e-5):
    n, cin, h, w = x_nchw.shape
    c6 = cin * 6
    cout = params["w2"].shape[0]
    residual = (cin == cout) and (s == 1)
    ho = (h + 2 - 3) // s + 1
    wo = (w + 2 - 3) // s + 1
    m1 = n * h * w
    m2 = n * ho * wo

    # ---- layout glue: NCHW -> NHWC -> (M, Cin); weights to matmul layouts ------
    x_nhwc = jnp.transpose(x_nchw, (0, 2, 3, 1)).astype(jnp.float32)
    x_flat = x_nhwc.reshape(m1, cin)           # f32 (kept exact for the residual)
    x_bf = x_flat.astype(jnp.bfloat16)         # bf16 matmul operand for K1

    w1 = params["w1"][:, :, 0, 0].T.astype(jnp.bfloat16)                    # (cin, c6)
    wdw = (jnp.transpose(params["wg"][:, 0, :, :], (1, 2, 0))
           .reshape(9, c6).astype(jnp.float32))                             # (9, c6)
    w2 = params["w2"][:, :, 0, 0].T.astype(jnp.bfloat16)                    # (c6, cout)

    g1, be1 = params["g1"].astype(jnp.float32), params["be1"].astype(jnp.float32)
    gg, beg = params["gg"].astype(jnp.float32), params["beg"].astype(jnp.float32)
    g2, be2 = params["g2"].astype(jnp.float32), params["be2"].astype(jnp.float32)
    # Conv biases (b1/bg/b2) are omitted on purpose: a per-channel bias before a
    # batch-statistics BatchNorm is exactly cancelled by the mean subtraction
    # (and init_weights sets them to zero anyway).

    # ---- K1: 1x1 conv (cin -> 6*cin) + partial BN1 stats -----------------------
    y1, s1, q1, mp1 = _conv1x1_with_stats(x_bf, w1, c6)
    sc1, sh1 = _bn_scale_shift(s1, q1, float(m1), g1, be1, eps)
    if mp1 != m1:
        y1 = y1[:m1]
    y1 = y1.reshape(n, h, w, c6)

    # ---- K2: fused BN1+ReLU6 + 3x3 depthwise (stride s) + partial BN2 stats ----
    y2, s2, q2 = _bnrelu6_dw3x3_with_stats(y1, sc1, sh1, wdw, s)
    sc2, sh2 = _bn_scale_shift(s2, q2, float(m2), gg, beg, eps)

    # ---- K3: fused BN2+ReLU6 + 1x1 conv (6*cin -> cout) + partial BN3 stats ----
    y2f = y2.reshape(m2, c6)
    y3, s3, q3, mp2 = _bnrelu6_conv1x1_with_stats(y2f, sc2, sh2, w2, cout)
    sc3, sh3 = _bn_scale_shift(s3, q3, float(m2), g2, be2, eps)

    # ---- K4: fused BN3 apply (+ residual from the unpadded f32 input) ----------
    if residual:
        res = x_flat                            # (m2, cout) f32, cin == cout here
        if mp2 != m2:
            res = jnp.pad(res, ((0, mp2 - m2), (0, 0)))
        out = _bn_apply(y3, sc3, sh3, res)
    else:
        out = _bn_apply(y3, sc3, sh3)

    if mp2 != m2:
        out = out[:m2]
    out = out.reshape(n, ho, wo, cout)
    return jnp.transpose(out, (0, 3, 1, 2))


# ----------------------------------------------------------------------------
# Pure-JAX reference (mirrors the kernel's bf16 quantisation points so the
# comparison checks the kernel math, not bf16 rounding).
# ----------------------------------------------------------------------------
def _ref_forward(x_nchw, p, *, s=1, eps=1e-5):
    f32, bf16 = jnp.float32, jnp.bfloat16
    dn = ("NCHW", "OIHW", "NCHW")
    hi = jax.lax.Precision.HIGHEST

    def bn(y_q, y_full, g, b):
        # stats from the f32 conv output, applied to the bf16-stored activation
        mean = jnp.mean(y_full, axis=(0, 2, 3), keepdims=True)
        var = jnp.mean((y_full - mean) ** 2, axis=(0, 2, 3), keepdims=True)
        return ((y_q.astype(f32) - mean) * jax.lax.rsqrt(var + eps)
                * g.reshape(1, -1, 1, 1) + b.reshape(1, -1, 1, 1))

    cin = x_nchw.shape[1]
    cout = p["w2"].shape[0]
    residual = (cin == cout) and (s == 1)

    y1 = jax.lax.conv_general_dilated(
        x_nchw.astype(bf16), p["w1"].astype(bf16), (1, 1), "VALID",
        dimension_numbers=dn, precision=hi, preferred_element_type=f32)
    a1 = jnp.clip(bn(y1.astype(bf16), y1, p["g1"], p["be1"]), 0.0, 6.0)
    y2 = jax.lax.conv_general_dilated(
        a1, p["wg"].astype(f32), (s, s), ((1, 1), (1, 1)),
        dimension_numbers=dn, feature_group_count=p["wg"].shape[0],
        precision=hi, preferred_element_type=f32)
    a2 = jnp.clip(bn(y2.astype(bf16), y2, p["gg"], p["beg"]), 0.0, 6.0)
    y3 = jax.lax.conv_general_dilated(
        a2.astype(bf16), p["w2"].astype(bf16), (1, 1), "VALID",
        dimension_numbers=dn, precision=hi, preferred_element_type=f32)
    out = bn(y3.astype(bf16), y3, p["g2"], p["be2"])
    if residual:
        out = out + x_nchw
    return out


# ----------------------------------------------------------------------------
if __name__ == "__main__":
    key = jax.random.PRNGKey(0)
    k_x, k_p = jax.random.split(key)

    N, CIN, COUT, H, W, S = 2, 4, 4, 16, 16, 1  # residual path active
    x = jax.random.normal(k_x, (N, CIN, H, W), jnp.float32)  # NCHW like PyTorch
    params = init_params(k_p, CIN, COUT)

    fwd = jax.jit(functools.partial(mobilenet_v2_conv2d, s=S))
    out = jax.block_until_ready(fwd(x, params))

    ref = _ref_forward(x, params, s=S)
    assert out.shape == ref.shape == (N, COUT, H, W)
    max_err = float(jnp.max(jnp.abs(out - ref)))
    assert jnp.allclose(out, ref, rtol=2e-2, atol=2e-2), max_err

    print("KERNEL_OK")
</pallas_src>

<mosaic_0001>
module attributes {stable_mosaic.version = 11 : i64} {
  func.func @_conv1x1_stats_kernel(%arg0: i32, %arg1: memref<512x4xbf16, #tpu.memory_space<vmem>>, %arg2: memref<4x24xbf16, #tpu.memory_space<vmem>>, %arg3: memref<512x24xbf16, #tpu.memory_space<vmem>>, %arg4: memref<1x1x24xf32, #tpu.memory_space<vmem>>, %arg5: memref<1x1x24xf32, #tpu.memory_space<vmem>>) attributes {dimension_semantics = [#tpu.dimension_semantics<parallel>], iteration_bounds = array<i64: 1>, scalar_prefetch = 0 : i64, scratch_operands = 0 : i64, tpu.core_type = #tpu.core_type<tc>, window_params = [{transform_indices = @transform_0, window_bounds = array<i64: 512, 4>}, {pipeline_mode = #tpu.pipeline_mode<synchronous>, transform_indices = @transform_1, window_bounds = array<i64: 4, 24>}, {transform_indices = @transform_2, window_bounds = array<i64: 512, 24>}, {transform_indices = @transform_3, window_bounds = array<i64: 1, 1, 24>}, {transform_indices = @transform_4, window_bounds = array<i64: 1, 1, 24>}]} {
    %c0 = arith.constant 0 : index
    %c0_0 = arith.constant 0 : index
    %0 = vector.load %arg1[%c0, %c0_0] : memref<512x4xbf16, #tpu.memory_space<vmem>>, vector<512x4xbf16>
    %c0_1 = arith.constant 0 : index
    %c0_2 = arith.constant 0 : index
    %1 = vector.load %arg2[%c0_1, %c0_2] : memref<4x24xbf16, #tpu.memory_space<vmem>>, vector<4x24xbf16>
    %cst = arith.constant dense<0.000000e+00> : vector<512x24xf32>
    %2 = tpu.matmul %0, %1, %cst {dimension_numbers = #tpu.dot_dimension_numbers<[1], [0], [0], [1], [0, 0, 1, 1], [], []>} : vector<512x4xbf16>, vector<4x24xbf16>, vector<512x24xf32> -> vector<512x24xf32>
    %3 = arith.truncf %2 : vector<512x24xf32> to vector<512x24xbf16>
    %c0_3 = arith.constant 0 : index
    %c0_4 = arith.constant 0 : index
    %4 = vector.load %arg3[%c0_3, %c0_4] : memref<512x24xbf16, #tpu.memory_space<vmem>>, vector<512x24xbf16>
    tpu.vector_store %arg3[%c0_3, %c0_4], %3 {strides = array<i32>} : memref<512x24xbf16, #tpu.memory_space<vmem>>, vector<512x24xbf16>,
    %cst_5 = arith.constant dense<0.000000e+00> : vector<24xf32>
    %5 = vector.multi_reduction <add>, %2, %cst_5 [0] : vector<512x24xf32> to vector<24xf32>
    %6 = vector.shape_cast %5 : vector<24xf32> to vector<1x24xf32>
    %7 = vector.shape_cast %6 : vector<1x24xf32> to vector<1x1x24xf32>
    %c0_6 = arith.constant 0 : index
    %c0_7 = arith.constant 0 : index
    %c0_8 = arith.constant 0 : index
    %8 = vector.load %arg4[%c0_6, %c0_7, %c0_8] : memref<1x1x24xf32, #tpu.memory_space<vmem>>, vector<1x1x24xf32>
    tpu.vector_store %arg4[%c0_6, %c0_7, %c0_8], %7 {strides = array<i32>} : memref<1x1x24xf32, #tpu.memory_space<vmem>>, vector<1x1x24xf32>,
    %9 = arith.mulf %2, %2 : vector<512x24xf32>
    %cst_9 = arith.constant dense<0.000000e+00> : vector<24xf32>
    %10 = vector.multi_reduction <add>, %9, %cst_9 [0] : vector<512x24xf32> to vector<24xf32>
    %11 = vector.shape_cast %10 : vector<24xf32> to vector<1x24xf32>
    %12 = vector.shape_cast %11 : vector<1x24xf32> to vector<1x1x24xf32>
    %c0_10 = arith.constant 0 : index
    %c0_11 = arith.constant 0 : index
    %c0_12 = arith.constant 0 : index
    %13 = vector.load %arg5[%c0_10, %c0_11, %c0_12] : memref<1x1x24xf32, #tpu.memory_space<vmem>>, vector<1x1x24xf32>
    tpu.vector_store %arg5[%c0_10, %c0_11, %c0_12], %12 {strides = array<i32>} : memref<1x1x24xf32, #tpu.memory_space<vmem>>, vector<1x1x24xf32>,
    return
  }
  func.func @transform_0(%arg0: i32) -> (i32, i32) {
    %c0_i32 = arith.constant 0 : i32
    %c0_i32_0 = arith.constant 0 : i32
    return %arg0, %c0_i32 : i32, i32
  }
  func.func @transform_1(%arg0: i32) -> (i32, i32) {
    %c0_i32 = arith.constant 0 : i32
    %c0_i32_0 = arith.constant 0 : i32
    %c0_i32_1 = arith.constant 0 : i32
    return %c0_i32, %c0_i32_0 : i32, i32
  }
  func.func @transform_2(%arg0: i32) -> (i32, i32) {
    %c0_i32 = arith.constant 0 : i32
    %c0_i32_0 = arith.constant 0 : i32
    return %arg0, %c0_i32 : i32, i32
  }
  func.func @transform_3(%arg0: i32) -> (i32, i32, i32) {
    %c0_i32 = arith.constant 0 : i32
    %c0_i32_0 = arith.constant 0 : i32
    %c0_i32_1 = arith.constant 0 : i32
    return %arg0, %c0_i32, %c0_i32_0 : i32, i32, i32
  }
  func.func @transform_4(%arg0: i32) -> (i32, i32, i32) {
    %c0_i32 = arith.constant 0 : i32
    %c0_i32_0 = arith.constant 0 : i32
    %c0_i32_1 = arith.constant 0 : i32
    return %arg0, %c0_i32, %c0_i32_0 : i32, i32, i32
  }
}

module attributes {stable_mosaic.version = 11 : i64} {
  func.func @_bnrelu6_dw3x3_stats_kernel(%arg0: i32, %arg1: memref<1x16x16x24xbf16, #tpu.memory_space<vmem>>, %arg2: memref<1x24xf32, #tpu.memory_space<vmem>>, %arg3: memref<1x24xf32, #tpu.memory_space<vmem>>, %arg4: memref<9x24xf32, #tpu.memory_space<vmem>>, %arg5: memref<1x16x16x24xbf16, #tpu.memory_space<vmem>>, %arg6: memref<1x1x24xf32, #tpu.memory_space<vmem>>, %arg7: memref<1x1x24xf32, #tpu.memory_space<vmem>>, %arg8: memref<18x18x24xf32, #tpu.memory_space<vmem>>) attributes {dimension_semantics = [#tpu.dimension_semantics<parallel>], iteration_bounds = array<i64: 2>, scalar_prefetch = 0 : i64, scratch_operands = 1 : i64, tpu.core_type = #tpu.core_type<tc>, window_params = [{transform_indices = @transform_0, window_bounds = array<i64: 1, 16, 16, 24>}, {pipeline_mode = #tpu.pipeline_mode<synchronous>, transform_indices = @transform_1, window_bounds = array<i64: 1, 24>}, {pipeline_mode = #tpu.pipeline_mode<synchronous>, transform_indices = @transform_2, window_bounds = array<i64: 1, 24>}, {pipeline_mode = #tpu.pipeline_mode<synchronous>, transform_indices = @transform_3, window_bounds = array<i64: 9, 24>}, {transform_indices = @transform_4, window_bounds = array<i64: 1, 16, 16, 24>}, {transform_indices = @transform_5, window_bounds = array<i64: 1, 1, 24>}, {transform_indices = @transform_6, window_bounds = array<i64: 1, 1, 24>}]} {
    %c0_i32 = arith.constant 0 : i32
    %0 = arith.cmpi eq, %arg0, %c0_i32 : i32
    %1 = arith.extui %0 : i1 to i32
    %c0_i32_0 = arith.constant 0 : i32
    %2 = arith.cmpi ne, %1, %c0_i32_0 : i32
    scf.if %2 {
      %cst_51 = arith.constant 0.000000e+00 : f32
      %92 = vector.broadcast %cst_51 : f32 to vector<18x18x24xf32>
      %c0_52 = arith.constant 0 : index
      %c0_53 = arith.constant 0 : index
      %c0_54 = arith.constant 0 : index
      %93 = vector.load %arg8[%c0_52, %c0_53, %c0_54] : memref<18x18x24xf32, #tpu.memory_space<vmem>>, vector<18x18x24xf32>
      tpu.vector_store %arg8[%c0_52, %c0_53, %c0_54], %92 {strides = array<i32>} : memref<18x18x24xf32, #tpu.memory_space<vmem>>, vector<18x18x24xf32>,
    } else {
    }
    %c0 = arith.constant 0 : index
    %c0_1 = arith.constant 0 : index
    %c0_2 = arith.constant 0 : index
    %c0_3 = arith.constant 0 : index
    %3 = vector.load %arg1[%c0, %c0_1, %c0_2, %c0_3] : memref<1x16x16x24xbf16, #tpu.memory_space<vmem>>, vector<1x16x16x24xbf16>
    %4 = vector.shape_cast %3 : vector<1x16x16x24xbf16> to vector<16x16x24xbf16>
    %5 = arith.extf %4 : vector<16x16x24xbf16> to vector<16x16x24xf32>
    %c0_4 = arith.constant 0 : index
    %c0_5 = arith.constant 0 : index
    %6 = vector.load %arg2[%c0_4, %c0_5] : memref<1x24xf32, #tpu.memory_space<vmem>>, vector<1x24xf32>
    %7 = vector.shape_cast %6 : vector<1x24xf32> to vector<1x1x24xf32>
    %8 = vector.broadcast %7 : vector<1x1x24xf32> to vector<16x16x24xf32>
    %9 = arith.mulf %5, %8 : vector<16x16x24xf32>
    %c0_6 = arith.constant 0 : index
    %c0_7 = arith.constant 0 : index
    %10 = vector.load %arg3[%c0_6, %c0_7] : memref<1x24xf32, #tpu.memory_space<vmem>>, vector<1x24xf32>
    %11 = vector.shape_cast %10 : vector<1x24xf32> to vector<1x1x24xf32>
    %12 = vector.broadcast %11 : vector<1x1x24xf32> to vector<16x16x24xf32>
    %13 = arith.addf %9, %12 : vector<16x16x24xf32>
    %cst = arith.constant 0.000000e+00 : f32
    %14 = vector.broadcast %cst : f32 to vector<16x16x24xf32>
    %15 = arith.maximumf %13, %14 : vector<16x16x24xf32>
    %cst_8 = arith.constant 6.000000e+00 : f32
    %16 = vector.broadcast %cst_8 : f32 to vector<16x16x24xf32>
    %17 = arith.minimumf %15, %16 : vector<16x16x24xf32>
    %c1 = arith.constant 1 : index
    %c1_9 = arith.constant 1 : index
    %c0_10 = arith.constant 0 : index
    %18 = vector.load %arg8[%c1, %c1_9, %c0_10] : memref<18x18x24xf32, #tpu.memory_space<vmem>>, vector<16x16x24xf32>
    tpu.vector_store %arg8[%c1, %c1_9, %c0_10], %17 {strides = array<i32>} : memref<18x18x24xf32, #tpu.memory_space<vmem>>, vector<16x16x24xf32>,
    %c0_11 = arith.constant 0 : index
    %c0_12 = arith.constant 0 : index
    %19 = vector.load %arg4[%c0_11, %c0_12] : memref<9x24xf32, #tpu.memory_space<vmem>>, vector<9x24xf32>
    %c0_13 = arith.constant 0 : index
    %c0_14 = arith.constant 0 : index
    %c0_15 = arith.constant 0 : index
    %20 = vector.load %arg8[%c0_13, %c0_14, %c0_15] : memref<18x18x24xf32, #tpu.memory_space<vmem>>, vector<16x16x24xf32>
    %21 = vector.extract_strided_slice %19 {offsets = [0, 0], sizes = [1, 24], strides = [1, 1]} : vector<9x24xf32> to vector<1x24xf32>
    %22 = vector.shape_cast %21 : vector<1x24xf32> to vector<24xf32>
    %23 = vector.shape_cast %22 : vector<24xf32> to vector<1x1x24xf32>
    %24 = vector.broadcast %23 : vector<1x1x24xf32> to vector<16x16x24xf32>
    %25 = arith.mulf %20, %24 : vector<16x16x24xf32>
    %c0_16 = arith.constant 0 : index
    %c1_17 = arith.constant 1 : index
    %c0_18 = arith.constant 0 : index
    %26 = vector.load %arg8[%c0_16, %c1_17, %c0_18] : memref<18x18x24xf32, #tpu.memory_space<vmem>>, vector<16x16x24xf32>
    %27 = vector.extract_strided_slice %19 {offsets = [1, 0], sizes = [1, 24], strides = [1, 1]} : vector<9x24xf32> to vector<1x24xf32>
    %28 = vector.shape_cast %27 : vector<1x24xf32> to vector<24xf32>
    %29 = vector.shape_cast %28 : vector<24xf32> to vector<1x1x24xf32>
    %30 = vector.broadcast %29 : vector<1x1x24xf32> to vector<16x16x24xf32>
    %31 = arith.mulf %26, %30 : vector<16x16x24xf32>
    %32 = arith.addf %25, %31 : vector<16x16x24xf32>
    %c0_19 = arith.constant 0 : index
    %c2 = arith.constant 2 : index
    %c0_20 = arith.constant 0 : index
    %33 = vector.load %arg8[%c0_19, %c2, %c0_20] : memref<18x18x24xf32, #tpu.memory_space<vmem>>, vector<16x16x24xf32>
    %34 = vector.extract_strided_slice %19 {offsets = [2, 0], sizes = [1, 24], strides = [1, 1]} : vector<9x24xf32> to vector<1x24xf32>
    %35 = vector.shape_cast %34 : vector<1x24xf32> to vector<24xf32>
    %36 = vector.shape_cast %35 : vector<24xf32> to vector<1x1x24xf32>
    %37 = vector.broadcast %36 : vector<1x1x24xf32> to vector<16x16x24xf32>
    %38 = arith.mulf %33, %37 : vector<16x16x24xf32>
    %39 = arith.addf %32, %38 : vector<16x16x24xf32>
    %c1_21 = arith.constant 1 : index
    %c0_22 = arith.constant 0 : index
    %c0_23 = arith.constant 0 : index
    %40 = vector.load %arg8[%c1_21, %c0_22, %c0_23] : memref<18x18x24xf32, #tpu.memory_space<vmem>>, vector<16x16x24xf32>
    %41 = vector.extract_strided_slice %19 {offsets = [3, 0], sizes = [1, 24], strides = [1, 1]} : vector<9x24xf32> to vector<1x24xf32>
    %42 = vector.shape_cast %41 : vector<1x24xf32> to vector<24xf32>
    %43 = vector.shape_cast %42 : vector<24xf32> to vector<1x1x24xf32>
    %44 = vector.broadcast %43 : vector<1x1x24xf32> to vector<16x16x24xf32>
    %45 = arith.mulf %40, %44 : vector<16x16x24xf32>
    %46 = arith.addf %39, %45 : vector<16x16x24xf32>
    %c1_24 = arith.constant 1 : index
    %c1_25 = arith.constant 1 : index
    %c0_26 = arith.constant 0 : index
    %47 = vector.load %arg8[%c1_24, %c1_25, %c0_26] : memref<18x18x24xf32, #tpu.memory_space<vmem>>, vector<16x16x24xf32>
    %48 = vector.extract_strided_slice %19 {offsets = [4, 0], sizes = [1, 24], strides = [1, 1]} : vector<9x24xf32> to vector<1x24xf32>
    %49 = vector.shape_cast %48 : vector<1x24xf32> to vector<24xf32>
    %50 = vector.shape_cast %49 : vector<24xf32> to vector<1x1x24xf32>
    %51 = vector.broadcast %50 : vector<1x1x24xf32> to vector<16x16x24xf32>
    %52 = arith.mulf %47, %51 : vector<16x16x24xf32>
    %53 = arith.addf %46, %52 : vector<16x16x24xf32>
    %c1_27 = arith.constant 1 : index
    %c2_28 = arith.constant 2 : index
    %c0_29 = arith.constant 0 : index
    %54 = vector.load %arg8[%c1_27, %c2_28, %c0_29] : memref<18x18x24xf32, #tpu.memory_space<vmem>>, vector<16x16x24xf32>
    %55 = vector.extract_strided_slice %19 {offsets = [5, 0], sizes = [1, 24], strides = [1, 1]} : vector<9x24xf32> to vector<1x24xf32>
    %56 = vector.shape_cast %55 : vector<1x24xf32> to vector<24xf32>
    %57 = vector.shape_cast %56 : vector<24xf32> to vector<1x1x24xf32>
    %58 = vector.broadcast %57 : vector<1x1x24xf32> to vector<16x16x24xf32>
    %59 = arith.mulf %54, %58 : vector<16x16x24xf32>
    %60 = arith.addf %53, %59 : vector<16x16x24xf32>
    %c2_30 = arith.constant 2 : index
    %c0_31 = arith.constant 0 : index
    %c0_32 = arith.constant 0 : index
    %61 = vector.load %arg8[%c2_30, %c0_31, %c0_32] : memref<18x18x24xf32, #tpu.memory_space<vmem>>, vector<16x16x24xf32>
    %62 = vector.extract_strided_slice %19 {offsets = [6, 0], sizes = [1, 24], strides = [1, 1]} : vector<9x24xf32> to vector<1x24xf32>
    %63 = vector.shape_cast %62 : vector<1x24xf32> to vector<24xf32>
    %64 = vector.shape_cast %63 : vector<24xf32> to vector<1x1x24xf32>
    %65 = vector.broadcast %64 : vector<1x1x24xf32> to vector<16x16x24xf32>
    %66 = arith.mulf %61, %65 : vector<16x16x24xf32>
    %67 = arith.addf %60, %66 : vector<16x16x24xf32>
    %c2_33 = arith.constant 2 : index
    %c1_34 = arith.constant 1 : index
    %c0_35 = arith.constant 0 : index
    %68 = vector.load %arg8[%c2_33, %c1_34, %c0_35] : memref<18x18x24xf32, #tpu.memory_space<vmem>>, vector<16x16x24xf32>
    %69 = vector.extract_strided_slice %19 {offsets = [7, 0], sizes = [1, 24], strides = [1, 1]} : vector<9x24xf32> to vector<1x24xf32>
    %70 = vector.shape_cast %69 : vector<1x24xf32> to vector<24xf32>
    %71 = vector.shape_cast %70 : vector<24xf32> to vector<1x1x24xf32>
    %72 = vector.broadcast %71 : vector<1x1x24xf32> to vector<16x16x24xf32>
    %73 = arith.mulf %68, %72 : vector<16x16x24xf32>
    %74 = arith.addf %67, %73 : vector<16x16x24xf32>
    %c2_36 = arith.constant 2 : index
    %c2_37 = arith.constant 2 : index
    %c0_38 = arith.constant 0 : index
    %75 = vector.load %arg8[%c2_36, %c2_37, %c0_38] : memref<18x18x24xf32, #tpu.memory_space<vmem>>, vector<16x16x24xf32>
    %76 = vector.extract_strided_slice %19 {offsets = [8, 0], sizes = [1, 24], strides = [1, 1]} : vector<9x24xf32> to vector<1x24xf32>
    %77 = vector.shape_cast %76 : vector<1x24xf32> to vector<24xf32>
    %78 = vector.shape_cast %77 : vector<24xf32> to vector<1x1x24xf32>
    %79 = vector.broadcast %78 : vector<1x1x24xf32> to vector<16x16x24xf32>
    %80 = arith.mulf %75, %79 : vector<16x16x24xf32>
    %81 = arith.addf %74, %80 : vector<16x16x24xf32>
    %82 = vector.shape_cast %81 : vector<16x16x24xf32> to vector<1x16x16x24xf32>
    %83 = arith.truncf %82 : vector<1x16x16x24xf32> to vector<1x16x16x24xbf16>
    %c0_39 = arith.constant 0 : index
    %c0_40 = arith.constant 0 : index
    %c0_41 = arith.constant 0 : index
    %c0_42 = arith.constant 0 : index
    %84 = vector.load %arg5[%c0_39, %c0_40, %c0_41, %c0_42] : memref<1x16x16x24xbf16, #tpu.memory_space<vmem>>, vector<1x16x16x24xbf16>
    tpu.vector_store %arg5[%c0_39, %c0_40, %c0_41, %c0_42], %83 {strides = array<i32>} : memref<1x16x16x24xbf16, #tpu.memory_space<vmem>>, vector<1x16x16x24xbf16>,
    %cst_43 = arith.constant dense<0.000000e+00> : vector<24xf32>
    %85 = vector.multi_reduction <add>, %81, %cst_43 [0, 1] : vector<16x16x24xf32> to vector<24xf32>
    %86 = vector.shape_cast %85 : vector<24xf32> to vector<1x1x24xf32>
    %c0_44 = arith.constant 0 : index
    %c0_45 = arith.constant 0 : index
    %c0_46 = arith.constant 0 : index
    %87 = vector.load %arg6[%c0_44, %c0_45, %c0_46] : memref<1x1x24xf32, #tpu.memory_space<vmem>>, vector<1x1x24xf32>
    tpu.vector_store %arg6[%c0_44, %c0_45, %c0_46], %86 {strides = array<i32>} : memref<1x1x24xf32, #tpu.memory_space<vmem>>, vector<1x1x24xf32>,
    %88 = arith.mulf %81, %81 : vector<16x16x24xf32>
    %cst_47 = arith.constant dense<0.000000e+00> : vector<24xf32>
    %89 = vector.multi_reduction <add>, %88, %cst_47 [0, 1] : vector<16x16x24xf32> to vector<24xf32>
    %90 = vector.shape_cast %89 : vector<24xf32> to vector<1x1x24xf32>
    %c0_48 = arith.constant 0 : index
    %c0_49 = arith.constant 0 : index
    %c0_50 = arith.constant 0 : index
    %91 = vector.load %arg7[%c0_48, %c0_49, %c0_50] : memref<1x1x24xf32, #tpu.memory_space<vmem>>, vector<1x1x24xf32>
    tpu.vector_store %arg7[%c0_48, %c0_49, %c0_50], %90 {strides = array<i32>} : memref<1x1x24xf32, #tpu.memory_space<vmem>>, vector<1x1x24xf32>,
    return
  }
  func.func @transform_0(%arg0: i32) -> (i32, i32, i32, i32) {
    %c0_i32 = arith.constant 0 : i32
    %c0_i32_0 = arith.constant 0 : i32
    %c0_i32_1 = arith.constant 0 : i32
    %c0_i32_2 = arith.constant 0 : i32
    return %arg0, %c0_i32, %c0_i32_0, %c0_i32_1 : i32, i32, i32, i32
  }
  func.func @transform_1(%arg0: i32) -> (i32, i32) {
    %c0_i32 = arith.constant 0 : i32
    %c0_i32_0 = arith.constant 0 : i32
    %c0_i32_1 = arith.constant 0 : i32
    return %c0_i32, %c0_i32_0 : i32, i32
  }
  func.func @transform_2(%arg0: i32) -> (i32, i32) {
    %c0_i32 = arith.constant 0 : i32
    %c0_i32_0 = arith.constant 0 : i32
    %c0_i32_1 = arith.constant 0 : i32
    return %c0_i32, %c0_i32_0 : i32, i32
  }
  func.func @transform_3(%arg0: i32) -> (i32, i32) {
    %c0_i32 = arith.constant 0 : i32
    %c0_i32_0 = arith.constant 0 : i32
    %c0_i32_1 = arith.constant 0 : i32
    return %c0_i32, %c0_i32_0 : i32, i32
  }
  func.func @transform_4(%arg0: i32) -> (i32, i32, i32, i32) {
    %c0_i32 = arith.constant 0 : i32
    %c0_i32_0 = arith.constant 0 : i32
    %c0_i32_1 = arith.constant 0 : i32
    %c0_i32_2 = arith.constant 0 : i32
    return %arg0, %c0_i32, %c0_i32_0, %c0_i32_1 : i32, i32, i32, i32
  }
  func.func @transform_5(%arg0: i32) -> (i32, i32, i32) {
    %c0_i32 = arith.constant 0 : i32
    %c0_i32_0 = arith.constant 0 : i32
    %c0_i32_1 = arith.constant 0 : i32
    return %arg0, %c0_i32, %c0_i32_0 : i32, i32, i32
  }
  func.func @transform_6(%arg0: i32) -> (i32, i32, i32) {
    %c0_i32 = arith.constant 0 : i32
    %c0_i32_0 = arith.constant 0 : i32
    %c0_i32_1 = arith.constant 0 : i32
    return %arg0, %c0_i32, %c0_i32_0 : i32, i32, i32
  }
}

module attributes {stable_mosaic.version = 11 : i64} {
  func.func @_bnrelu6_conv1x1_stats_kernel(%arg0: i32, %arg1: memref<512x24xbf16, #tpu.memory_space<vmem>>, %arg2: memref<1x24xf32, #tpu.memory_space<vmem>>, %arg3: memref<1x24xf32, #tpu.memory_space<vmem>>, %arg4: memref<24x4xbf16, #tpu.memory_space<vmem>>, %arg5: memref<512x4xbf16, #tpu.memory_space<vmem>>, %arg6: memref<1x1x4xf32, #tpu.memory_space<vmem>>, %arg7: memref<1x1x4xf32, #tpu.memory_space<vmem>>) attributes {dimension_semantics = [#tpu.dimension_semantics<parallel>], iteration_bounds = array<i64: 1>, scalar_prefetch = 0 : i64, scratch_operands = 0 : i64, tpu.core_type = #tpu.core_type<tc>, window_params = [{transform_indices = @transform_0, window_bounds = array<i64: 512, 24>}, {pipeline_mode = #tpu.pipeline_mode<synchronous>, transform_indices = @transform_1, window_bounds = array<i64: 1, 24>}, {pipeline_mode = #tpu.pipeline_mode<synchronous>, transform_indices = @transform_2, window_bounds = array<i64: 1, 24>}, {pipeline_mode = #tpu.pipeline_mode<synchronous>, transform_indices = @transform_3, window_bounds = array<i64: 24, 4>}, {transform_indices = @transform_4, window_bounds = array<i64: 512, 4>}, {transform_indices = @transform_5, window_bounds = array<i64: 1, 1, 4>}, {transform_indices = @transform_6, window_bounds = array<i64: 1, 1, 4>}]} {
    %c0 = arith.constant 0 : index
    %c0_0 = arith.constant 0 : index
    %0 = vector.load %arg1[%c0, %c0_0] : memref<512x24xbf16, #tpu.memory_space<vmem>>, vector<512x24xbf16>
    %1 = arith.extf %0 : vector<512x24xbf16> to vector<512x24xf32>
    %c0_1 = arith.constant 0 : index
    %c0_2 = arith.constant 0 : index
    %2 = vector.load %arg2[%c0_1, %c0_2] : memref<1x24xf32, #tpu.memory_space<vmem>>, vector<1x24xf32>
    %3 = vector.broadcast %2 : vector<1x24xf32> to vector<512x24xf32>
    %4 = arith.mulf %1, %3 : vector<512x24xf32>
    %c0_3 = arith.constant 0 : index
    %c0_4 = arith.constant 0 : index
    %5 = vector.load %arg3[%c0_3, %c0_4] : memref<1x24xf32, #tpu.memory_space<vmem>>, vector<1x24xf32>
    %6 = vector.broadcast %5 : vector<1x24xf32> to vector<512x24xf32>
    %7 = arith.addf %4, %6 : vector<512x24xf32>
    %cst = arith.constant 0.000000e+00 : f32
    %8 = vector.broadcast %cst : f32 to vector<512x24xf32>
    %9 = arith.maximumf %7, %8 : vector<512x24xf32>
    %cst_5 = arith.constant 6.000000e+00 : f32
    %10 = vector.broadcast %cst_5 : f32 to vector<512x24xf32>
    %11 = arith.minimumf %9, %10 : vector<512x24xf32>
    %12 = arith.truncf %11 : vector<512x24xf32> to vector<512x24xbf16>
    %c0_6 = arith.constant 0 : index
    %c0_7 = arith.constant 0 : index
    %13 = vector.load %arg4[%c0_6, %c0_7] : memref<24x4xbf16, #tpu.memory_space<vmem>>, vector<24x4xbf16>
    %cst_8 = arith.constant dense<0.000000e+00> : vector<512x4xf32>
    %14 = tpu.matmul %12, %13, %cst_8 {dimension_numbers = #tpu.dot_dimension_numbers<[1], [0], [0], [1], [0, 0, 1, 1], [], []>} : vector<512x24xbf16>, vector<24x4xbf16>, vector<512x4xf32> -> vector<512x4xf32>
    %15 = arith.truncf %14 : vector<512x4xf32> to vector<512x4xbf16>
    %c0_9 = arith.constant 0 : index
    %c0_10 = arith.constant 0 : index
    %16 = vector.load %arg5[%c0_9, %c0_10] : memref<512x4xbf16, #tpu.memory_space<vmem>>, vector<512x4xbf16>
    tpu.vector_store %arg5[%c0_9, %c0_10], %15 {strides = array<i32>} : memref<512x4xbf16, #tpu.memory_space<vmem>>, vector<512x4xbf16>,
    %cst_11 = arith.constant dense<0.000000e+00> : vector<4xf32>
    %17 = vector.multi_reduction <add>, %14, %cst_11 [0] : vector<512x4xf32> to vector<4xf32>
    %18 = vector.shape_cast %17 : vector<4xf32> to vector<1x4xf32>
    %19 = vector.shape_cast %18 : vector<1x4xf32> to vector<1x1x4xf32>
    %c0_12 = arith.constant 0 : index
    %c0_13 = arith.constant 0 : index
    %c0_14 = arith.constant 0 : index
    %20 = vector.load %arg6[%c0_12, %c0_13, %c0_14] : memref<1x1x4xf32, #tpu.memory_space<vmem>>, vector<1x1x4xf32>
    tpu.vector_store %arg6[%c0_12, %c0_13, %c0_14], %19 {strides = array<i32>} : memref<1x1x4xf32, #tpu.memory_space<vmem>>, vector<1x1x4xf32>,
    %21 = arith.mulf %14, %14 : vector<512x4xf32>
    %cst_15 = arith.constant dense<0.000000e+00> : vector<4xf32>
    %22 = vector.multi_reduction <add>, %21, %cst_15 [0] : vector<512x4xf32> to vector<4xf32>
    %23 = vector.shape_cast %22 : vector<4xf32> to vector<1x4xf32>
    %24 = vector.shape_cast %23 : vector<1x4xf32> to vector<1x1x4xf32>
    %c0_16 = arith.constant 0 : index
    %c0_17 = arith.constant 0 : index
    %c0_18 = arith.constant 0 : index
    %25 = vector.load %arg7[%c0_16, %c0_17, %c0_18] : memref<1x1x4xf32, #tpu.memory_space<vmem>>, vector<1x1x4xf32>
    tpu.vector_store %arg7[%c0_16, %c0_17, %c0_18], %24 {strides = array<i32>} : memref<1x1x4xf32, #tpu.memory_space<vmem>>, vector<1x1x4xf32>,
    return
  }
  func.func @transform_0(%arg0: i32) -> (i32, i32) {
    %c0_i32 = arith.constant 0 : i32
    %c0_i32_0 = arith.constant 0 : i32
    return %arg0, %c0_i32 : i32, i32
  }
  func.func @transform_1(%arg0: i32) -> (i32, i32) {
    %c0_i32 = arith.constant 0 : i32
    %c0_i32_0 = arith.constant 0 : i32
    %c0_i32_1 = arith.constant 0 : i32
    return %c0_i32, %c0_i32_0 : i32, i32
  }
  func.func @transform_2(%arg0: i32) -> (i32, i32) {
    %c0_i32 = arith.constant 0 : i32
    %c0_i32_0 = arith.constant 0 : i32
    %c0_i32_1 = arith.constant 0 : i32
    return %c0_i32, %c0_i32_0 : i32, i32
  }
  func.func @transform_3(%arg0: i32) -> (i32, i32) {
    %c0_i32 = arith.constant 0 : i32
    %c0_i32_0 = arith.constant 0 : i32
    %c0_i32_1 = arith.constant 0 : i32
    return %c0_i32, %c0_i32_0 : i32, i32
  }
  func.func @transform_4(%arg0: i32) -> (i32, i32) {
    %c0_i32 = arith.constant 0 : i32
    %c0_i32_0 = arith.constant 0 : i32
    return %arg0, %c0_i32 : i32, i32
  }
  func.func @transform_5(%arg0: i32) -> (i32, i32, i32) {
    %c0_i32 = arith.constant 0 : i32
    %c0_i32_0 = arith.constant 0 : i32
    %c0_i32_1 = arith.constant 0 : i32
    return %arg0, %c0_i32, %c0_i32_0 : i32, i32, i32
  }
  func.func @transform_6(%arg0: i32) -> (i32, i32, i32) {
    %c0_i32 = arith.constant 0 : i32
    %c0_i32_0 = arith.constant 0 : i32
    %c0_i32_1 = arith.constant 0 : i32
    return %arg0, %c0_i32, %c0_i32_0 : i32, i32, i32
  }
}

module attributes {stable_mosaic.version = 11 : i64} {
  func.func @_bn_apply_residual_kernel(%arg0: i32, %arg1: memref<512x4xbf16, #tpu.memory_space<vmem>>, %arg2: memref<1x4xf32, #tpu.memory_space<vmem>>, %arg3: memref<1x4xf32, #tpu.memory_space<vmem>>, %arg4: memref<512x4xf32, #tpu.memory_space<vmem>>, %arg5: memref<512x4xf32, #tpu.memory_space<vmem>>) attributes {dimension_semantics = [#tpu.dimension_semantics<parallel>], iteration_bounds = array<i64: 1>, scalar_prefetch = 0 : i64, scratch_operands = 0 : i64, tpu.core_type = #tpu.core_type<tc>, window_params = [{transform_indices = @transform_0, window_bounds = array<i64: 512, 4>}, {pipeline_mode = #tpu.pipeline_mode<synchronous>, transform_indices = @transform_1, window_bounds = array<i64: 1, 4>}, {pipeline_mode = #tpu.pipeline_mode<synchronous>, transform_indices = @transform_2, window_bounds = array<i64: 1, 4>}, {transform_indices = @transform_3, window_bounds = array<i64: 512, 4>}, {transform_indices = @transform_4, window_bounds = array<i64: 512, 4>}]} {
    %c0 = arith.constant 0 : index
    %c0_0 = arith.constant 0 : index
    %0 = vector.load %arg1[%c0, %c0_0] : memref<512x4xbf16, #tpu.memory_space<vmem>>, vector<512x4xbf16>
    %1 = arith.extf %0 : vector<512x4xbf16> to vector<512x4xf32>
    %c0_1 = arith.constant 0 : index
    %c0_2 = arith.constant 0 : index
    %2 = vector.load %arg2[%c0_1, %c0_2] : memref<1x4xf32, #tpu.memory_space<vmem>>, vector<1x4xf32>
    %3 = vector.broadcast %2 : vector<1x4xf32> to vector<512x4xf32>
    %4 = arith.mulf %1, %3 : vector<512x4xf32>
    %c0_3 = arith.constant 0 : index
    %c0_4 = arith.constant 0 : index
    %5 = vector.load %arg3[%c0_3, %c0_4] : memref<1x4xf32, #tpu.memory_space<vmem>>, vector<1x4xf32>
    %6 = vector.broadcast %5 : vector<1x4xf32> to vector<512x4xf32>
    %7 = arith.addf %4, %6 : vector<512x4xf32>
    %c0_5 = arith.constant 0 : index
    %c0_6 = arith.constant 0 : index
    %8 = vector.load %arg4[%c0_5, %c0_6] : memref<512x4xf32, #tpu.memory_space<vmem>>, vector<512x4xf32>
    %9 = arith.addf %7, %8 : vector<512x4xf32>
    %c0_7 = arith.constant 0 : index
    %c0_8 = arith.constant 0 : index
    %10 = vector.load %arg5[%c0_7, %c0_8] : memref<512x4xf32, #tpu.memory_space<vmem>>, vector<512x4xf32>
    tpu.vector_store %arg5[%c0_7, %c0_8], %9 {strides = array<i32>} : memref<512x4xf32, #tpu.memory_space<vmem>>, vector<512x4xf32>,
    return
  }
  func.func @transform_0(%arg0: i32) -> (i32, i32) {
    %c0_i32 = arith.constant 0 : i32
    %c0_i32_0 = arith.constant 0 : i32
    return %arg0, %c0_i32 : i32, i32
  }
  func.func @transform_1(%arg0: i32) -> (i32, i32) {
    %c0_i32 = arith.constant 0 : i32
    %c0_i32_0 = arith.constant 0 : i32
    %c0_i32_1 = arith.constant 0 : i32
    return %c0_i32, %c0_i32_0 : i32, i32
  }
  func.func @transform_2(%arg0: i32) -> (i32, i32) {
    %c0_i32 = arith.constant 0 : i32
    %c0_i32_0 = arith.constant 0 : i32
    %c0_i32_1 = arith.constant 0 : i32
    return %c0_i32, %c0_i32_0 : i32, i32
  }
  func.func @transform_3(%arg0: i32) -> (i32, i32) {
    %c0_i32 = arith.constant 0 : i32
    %c0_i32_0 = arith.constant 0 : i32
    return %arg0, %c0_i32 : i32, i32
  }
  func.func @transform_4(%arg0: i32) -> (i32, i32) {
    %c0_i32 = arith.constant 0 : i32
    %c0_i32_0 = arith.constant 0 : i32
    return %arg0, %c0_i32 : i32, i32
  }
}

</mosaic_0001>

<llo_original>
// kernel: mobilenet_v2_conv2d.7
$region0: #{mobilenet_v2_conv2d.7}
  #allocation0 [shape = 'u32[]', space=smem, size = 0x4, offset = 0x4, fixed_abs, tag = 'smem constant byte address 0x4 - core index']
  #allocation1 [shape = 'u32[144,128]{1,0:T(1,128)}', space=vmem, size = 0x12000, scoped, tag = 'internal scratch']
  %s0 = inlined_call_operand.vmem [shape: bf16[512,4], index: 0, kind: input, shape index: {}]
  %s1 = inlined_call_operand.vmem [shape: f32[1,4], index: 1, kind: input, shape index: {}]
  %s2 = inlined_call_operand.vmem [shape: f32[1,4], index: 2, kind: input, shape index: {}]
  %s3 = inlined_call_operand.vmem [shape: f32[512,4], index: 3, kind: input, shape index: {}]
  %s4 = inlined_call_operand.vmem [shape: f32[512,4], index: 4, kind: output, shape index: {}]
  %s5 = sld [smem:[#allocation0]]
  $region26: #{mobilenet_v2_conv2d.7} parent=0
    _
  %s7 = ssub.s32 1, %s5
  %s8 = scalar_select 0, %s7, %s5
  // Predicated region
  $region2: #{mobilenet_v2_conv2d.7} parent=0 // pred_check
    _
  $region3: #{mobilenet_v2_conv2d.7} parent=0 // pred_check_branch
    %10 = sbr.rel (0) target = $region5
  $region4: #{mobilenet_v2_conv2d.7} parent=0 // pred_region
    _
  $region5: #{mobilenet_v2_conv2d.7} parent=0 // pred_fallthru
    _
  // Predicated region
  $region6: #{mobilenet_v2_conv2d.7} parent=0 // pred_check
    _
  $region7: #{mobilenet_v2_conv2d.7} parent=0 // pred_check_branch
    %12 = sbr.rel (0) target = $region9
  $region8: #{mobilenet_v2_conv2d.7} parent=0 // pred_region
    _
  $region9: #{mobilenet_v2_conv2d.7} parent=0 // pred_fallthru
    _
  // Predicated region
  $region10: #{mobilenet_v2_conv2d.7} parent=0 // pred_check
    _
  $region11: #{mobilenet_v2_conv2d.7} parent=0 // pred_check_branch
    %14 = sbr.rel (0) target = $region13
  $region12: #{mobilenet_v2_conv2d.7} parent=0 // pred_region
    _
  $region13: #{mobilenet_v2_conv2d.7} parent=0 // pred_fallthru
    _
  // Predicated region
  $region14: #{mobilenet_v2_conv2d.7} parent=0 // pred_check
    _
  $region15: #{mobilenet_v2_conv2d.7} parent=0 // pred_check_branch
    %16 = sbr.rel (0) target = $region17
  $region16: #{mobilenet_v2_conv2d.7} parent=0 // pred_region
    _
  $region17: #{mobilenet_v2_conv2d.7} parent=0 // pred_fallthru
    _
  %v17 = vld [vmem:[%s0] sm:$0xf]
  %v18 = vld [vmem:[%s0 + $0x4] sm:$0xf]
  %v19 = vld [vmem:[%s0 + $0x8] sm:$0xf]
  %v20 = vld [vmem:[%s0 + $0xc] sm:$0xf]
  %v21 = vld [vmem:[%s0 + $0x10] sm:$0xf]
  %v22 = vld [vmem:[%s0 + $0x14] sm:$0xf]
  %v23 = vld [vmem:[%s0 + $0x18] sm:$0xf]
  %v24 = vld [vmem:[%s0 + $0x1c] sm:$0xf]
  %v25 = vld [vmem:[%s0 + $0x20] sm:$0xf]
  %v26 = vld [vmem:[%s0 + $0x24] sm:$0xf]
  %v27 = vld [vmem:[%s0 + $0x28] sm:$0xf]
  %v28 = vld [vmem:[%s0 + $0x2c] sm:$0xf]
  %v29 = vld [vmem:[%s0 + $0x30] sm:$0xf]
  %v30 = vld [vmem:[%s0 + $0x34] sm:$0xf]
  %v31 = vld [vmem:[%s0 + $0x38] sm:$0xf]
  %v32 = vld [vmem:[%s0 + $0x3c] sm:$0xf]
  %v33 = vld [vmem:[%s0 + $0x40] sm:$0xf]
  %v34 = vld [vmem:[%s0 + $0x44] sm:$0xf]
  %v35 = vld [vmem:[%s0 + $0x48] sm:$0xf]
  %v36 = vld [vmem:[%s0 + $0x4c] sm:$0xf]
  %v37 = vld [vmem:[%s0 + $0x50] sm:$0xf]
  %v38 = vld [vmem:[%s0 + $0x54] sm:$0xf]
  %v39 = vld [vmem:[%s0 + $0x58] sm:$0xf]
  %v40 = vld [vmem:[%s0 + $0x5c] sm:$0xf]
  %v41 = vld [vmem:[%s0 + $0x60] sm:$0xf]
  %v42 = vld [vmem:[%s0 + $0x64] sm:$0xf]
  %v43 = vld [vmem:[%s0 + $0x68] sm:$0xf]
  %v44 = vld [vmem:[%s0 + $0x6c] sm:$0xf]
  %v45 = vld [vmem:[%s0 + $0x70] sm:$0xf]
  %v46 = vld [vmem:[%s0 + $0x74] sm:$0xf]
  %v47 = vld [vmem:[%s0 + $0x78] sm:$0xf]
  %v48 = vld [vmem:[%s0 + $0x7c] sm:$0xf]
  %v49 = vld [vmem:[%s0 + $0x80] sm:$0xf]
  %v50 = vld [vmem:[%s0 + $0x84] sm:$0xf]
  %v51 = vld [vmem:[%s0 + $0x88] sm:$0xf]
  %v52 = vld [vmem:[%s0 + $0x8c] sm:$0xf]
  %v53 = vld [vmem:[%s0 + $0x90] sm:$0xf]
  %v54 = vld [vmem:[%s0 + $0x94] sm:$0xf]
  %v55 = vld [vmem:[%s0 + $0x98] sm:$0xf]
  %v56 = vld [vmem:[%s0 + $0x9c] sm:$0xf]
  %v57 = vld [vmem:[%s0 + $0xa0] sm:$0xf]
  %v58 = vld [vmem:[%s0 + $0xa4] sm:$0xf]
  %v59 = vld [vmem:[%s0 + $0xa8] sm:$0xf]
  %v60 = vld [vmem:[%s0 + $0xac] sm:$0xf]
  %v61 = vld [vmem:[%s0 + $0xb0] sm:$0xf]
  %v62 = vld [vmem:[%s0 + $0xb4] sm:$0xf]
  %v63 = vld [vmem:[%s0 + $0xb8] sm:$0xf]
  %v64 = vld [vmem:[%s0 + $0xbc] sm:$0xf]
  %v65 = vld [vmem:[%s0 + $0xc0] sm:$0xf]
  %v66 = vld [vmem:[%s0 + $0xc4] sm:$0xf]
  %v67 = vld [vmem:[%s0 + $0xc8] sm:$0xf]
  %v68 = vld [vmem:[%s0 + $0xcc] sm:$0xf]
  %v69 = vld [vmem:[%s0 + $0xd0] sm:$0xf]
  %v70 = vld [vmem:[%s0 + $0xd4] sm:$0xf]
  %v71 = vld [vmem:[%s0 + $0xd8] sm:$0xf]
  %v72 = vld [vmem:[%s0 + $0xdc] sm:$0xf]
  %v73 = vld [vmem:[%s0 + $0xe0] sm:$0xf]
  %v74 = vld [vmem:[%s0 + $0xe4] sm:$0xf]
  %v75 = vld [vmem:[%s0 + $0xe8] sm:$0xf]
  %v76 = vld [vmem:[%s0 + $0xec] sm:$0xf]
  %v77 = vld [vmem:[%s0 + $0xf0] sm:$0xf]
  %v78 = vld [vmem:[%s0 + $0xf4] sm:$0xf]
  %v79 = vld [vmem:[%s0 + $0xf8] sm:$0xf]
  %v80 = vld [vmem:[%s0 + $0xfc] sm:$0xf]
  %v81 = vunpack.c.l.bf16 %v17
  %v82 = vunpack.c.l.bf16 %v18
  %v83 = vunpack.c.l.bf16 %v19
  %v84 = vunpack.c.l.bf16 %v20
  %v85 = vunpack.c.l.bf16 %v21
  %v86 = vunpack.c.l.bf16 %v22
  %v87 = vunpack.c.l.bf16 %v23
  %v88 = vunpack.c.l.bf16 %v24
  %v89 = vunpack.c.l.bf16 %v25
  %v90 = vunpack.c.l.bf16 %v26
  %v91 = vunpack.c.l.bf16 %v27
  %v92 = vunpack.c.l.bf16 %v28
  %v93 = vunpack.c.l.bf16 %v29
  %v94 = vunpack.c.l.bf16 %v30
  %v95 = vunpack.c.l.bf16 %v31
  %v96 = vunpack.c.l.bf16 %v32
  %v97 = vunpack.c.l.bf16 %v33
  %v98 = vunpack.c.l.bf16 %v34
  %v99 = vunpack.c.l.bf16 %v35
  %v100 = vunpack.c.l.bf16 %v36
  %v101 = vunpack.c.l.bf16 %v37
  %v102 = vunpack.c.l.bf16 %v38
  %v103 = vunpack.c.l.bf16 %v39
  %v104 = vunpack.c.l.bf16 %v40
  %v105 = vunpack.c.l.bf16 %v41
  %v106 = vunpack.c.l.bf16 %v42
  %v107 = vunpack.c.l.bf16 %v43
  %v108 = vunpack.c.l.bf16 %v44
  %v109 = vunpack.c.l.bf16 %v45
  %v110 = vunpack.c.l.bf16 %v46
  %v111 = vunpack.c.l.bf16 %v47
  %v112 = vunpack.c.l.bf16 %v48
  %v113 = vunpack.c.l.bf16 %v49
  %v114 = vunpack.c.l.bf16 %v50
  %v115 = vunpack.c.l.bf16 %v51
  %v116 = vunpack.c.l.bf16 %v52
  %v117 = vunpack.c.l.bf16 %v53
  %v118 = vunpack.c.l.bf16 %v54
  %v119 = vunpack.c.l.bf16 %v55
  %v120 = vunpack.c.l.bf16 %v56
  %v121 = vunpack.c.l.bf16 %v57
  %v122 = vunpack.c.l.bf16 %v58
  %v123 = vunpack.c.l.bf16 %v59
  %v124 = vunpack.c.l.bf16 %v60
  %v125 = vunpack.c.l.bf16 %v61
  %v126 = vunpack.c.l.bf16 %v62
  %v127 = vunpack.c.l.bf16 %v63
  %v128 = vunpack.c.l.bf16 %v64
  %v129 = vunpack.c.l.bf16 %v65
  %v130 = vunpack.c.l.bf16 %v66
  %v131 = vunpack.c.l.bf16 %v67
  %v132 = vunpack.c.l.bf16 %v68
  %v133 = vunpack.c.l.bf16 %v69
  %v134 = vunpack.c.l.bf16 %v70
  %v135 = vunpack.c.l.bf16 %v71
  %v136 = vunpack.c.l.bf16 %v72
  %v137 = vunpack.c.l.bf16 %v73
  %v138 = vunpack.c.l.bf16 %v74
  %v139 = vunpack.c.l.bf16 %v75
  %v140 = vunpack.c.l.bf16 %v76
  %v141 = vunpack.c.l.bf16 %v77
  %v142 = vunpack.c.l.bf16 %v78
  %v143 = vunpack.c.l.bf16 %v79
  %v144 = vunpack.c.l.bf16 %v80
  %v145 = vld [vmem:[%s1] sm:$0x1]
  %v147 = vlaneseq
  %v148 = vshrl.u32 %v147, 7
  %v149 = vsub.s32 0, %v148
  %v150 = vrot.slane %v145, %v149
  %v152 = vmul.f32 %v81, %v150
  %v153 = vmul.f32 %v82, %v150
  %v154 = vmul.f32 %v83, %v150
  %v155 = vmul.f32 %v84, %v150
  %v156 = vmul.f32 %v85, %v150
  %v157 = vmul.f32 %v86, %v150
  %v158 = vmul.f32 %v87, %v150
  %v159 = vmul.f32 %v88, %v150
  %v160 = vmul.f32 %v89, %v150
  %v161 = vmul.f32 %v90, %v150
  %v162 = vmul.f32 %v91, %v150
  %v163 = vmul.f32 %v92, %v150
  %v164 = vmul.f32 %v93, %v150
  %v165 = vmul.f32 %v94, %v150
  %v166 = vmul.f32 %v95, %v150
  %v167 = vmul.f32 %v96, %v150
  %v168 = vmul.f32 %v97, %v150
  %v169 = vmul.f32 %v98, %v150
  %v170 = vmul.f32 %v99, %v150
  %v171 = vmul.f32 %v100, %v150
  %v172 = vmul.f32 %v101, %v150
  %v173 = vmul.f32 %v102, %v150
  %v174 = vmul.f32 %v103, %v150
  %v175 = vmul.f32 %v104, %v150
  %v176 = vmul.f32 %v105, %v150
  %v177 = vmul.f32 %v106, %v150
  %v178 = vmul.f32 %v107, %v150
  %v179 = vmul.f32 %v108, %v150
  %v180 = vmul.f32 %v109, %v150
  %v181 = vmul.f32 %v110, %v150
  %v182 = vmul.f32 %v111, %v150
  %v183 = vmul.f32 %v112, %v150
  %v184 = vmul.f32 %v113, %v150
  %v185 = vmul.f32 %v114, %v150
  %v186 = vmul.f32 %v115, %v150
  %v187 = vmul.f32 %v116, %v150
  %v188 = vmul.f32 %v117, %v150
  %v189 = vmul.f32 %v118, %v150
  %v190 = vmul.f32 %v119, %v150
  %v191 = vmul.f32 %v120, %v150
  %v192 = vmul.f32 %v121, %v150
  %v193 = vmul.f32 %v122, %v150
  %v194 = vmul.f32 %v123, %v150
  %v195 = vmul.f32 %v124, %v150
  %v196 = vmul.f32 %v125, %v150
  %v197 = vmul.f32 %v126, %v150
  %v198 = vmul.f32 %v127, %v150
  %v199 = vmul.f32 %v128, %v150
  %v200 = vmul.f32 %v129, %v150
  %v201 = vmul.f32 %v130, %v150
  %v202 = vmul.f32 %v131, %v150
  %v203 = vmul.f32 %v132, %v150
  %v204 = vmul.f32 %v133, %v150
  %v205 = vmul.f32 %v134, %v150
  %v206 = vmul.f32 %v135, %v150
  %v207 = vmul.f32 %v136, %v150
  %v208 = vmul.f32 %v137, %v150
  %v209 = vmul.f32 %v138, %v150
  %v210 = vmul.f32 %v139, %v150
  %v211 = vmul.f32 %v140, %v150
  %v212 = vmul.f32 %v141, %v150
  %v213 = vmul.f32 %v142, %v150
  %v214 = vmul.f32 %v143, %v150
  %v215 = vmul.f32 %v144, %v150
  %v216 = vld [vmem:[%s2] sm:$0x1]
  %v218 = vlaneseq
  %v219 = vshrl.u32 %v218, 7
  %v220 = vsub.s32 0, %v219
  %v221 = vrot.slane %v216, %v220
  %v223 = vadd.f32 %v152, %v221
  %v224 = vadd.f32 %v153, %v221
  %v225 = vadd.f32 %v154, %v221
  %v226 = vadd.f32 %v155, %v221
  %v227 = vadd.f32 %v156, %v221
  %v228 = vadd.f32 %v157, %v221
  %v229 = vadd.f32 %v158, %v221
  %v230 = vadd.f32 %v159, %v221
  %v231 = vadd.f32 %v160, %v221
  %v232 = vadd.f32 %v161, %v221
  %v233 = vadd.f32 %v162, %v221
  %v234 = vadd.f32 %v163, %v221
  %v235 = vadd.f32 %v164, %v221
  %v236 = vadd.f32 %v165, %v221
  %v237 = vadd.f32 %v166, %v221
  %v238 = vadd.f32 %v167, %v221
  %v239 = vadd.f32 %v168, %v221
  %v240 = vadd.f32 %v169, %v221
  %v241 = vadd.f32 %v170, %v221
  %v242 = vadd.f32 %v171, %v221
  %v243 = vadd.f32 %v172, %v221
  %v244 = vadd.f32 %v173, %v221
  %v245 = vadd.f32 %v174, %v221
  %v246 = vadd.f32 %v175, %v221
  %v247 = vadd.f32 %v176, %v221
  %v248 = vadd.f32 %v177, %v221
  %v249 = vadd.f32 %v178, %v221
  %v250 = vadd.f32 %v179, %v221
  %v251 = vadd.f32 %v180, %v221
  %v252 = vadd.f32 %v181, %v221
  %v253 = vadd.f32 %v182, %v221
  %v254 = vadd.f32 %v183, %v221
  %v255 = vadd.f32 %v184, %v221
  %v256 = vadd.f32 %v185, %v221
  %v257 = vadd.f32 %v186, %v221
  %v258 = vadd.f32 %v187, %v221
  %v259 = vadd.f32 %v188, %v221
  %v260 = vadd.f32 %v189, %v221
  %v261 = vadd.f32 %v190, %v221
  %v262 = vadd.f32 %v191, %v221
  %v263 = vadd.f32 %v192, %v221
  %v264 = vadd.f32 %v193, %v221
  %v265 = vadd.f32 %v194, %v221
  %v266 = vadd.f32 %v195, %v221
  %v267 = vadd.f32 %v196, %v221
  %v268 = vadd.f32 %v197, %v221
  %v269 = vadd.f32 %v198, %v221
  %v270 = vadd.f32 %v199, %v221
  %v271 = vadd.f32 %v200, %v221
  %v272 = vadd.f32 %v201, %v221
  %v273 = vadd.f32 %v202, %v221
  %v274 = vadd.f32 %v203, %v221
  %v275 = vadd.f32 %v204, %v221
  %v276 = vadd.f32 %v205, %v221
  %v277 = vadd.f32 %v206, %v221
  %v278 = vadd.f32 %v207, %v221
  %v279 = vadd.f32 %v208, %v221
  %v280 = vadd.f32 %v209, %v221
  %v281 = vadd.f32 %v210, %v221
  %v282 = vadd.f32 %v211, %v221
  %v283 = vadd.f32 %v212, %v221
  %v284 = vadd.f32 %v213, %v221
  %v285 = vadd.f32 %v214, %v221
  %v286 = vadd.f32 %v215, %v221
  %v287 = vld [vmem:[%s3] sm:$0xff]
  %v288 = vld [vmem:[%s3 + $0x8] sm:$0xff]
  %v289 = vld [vmem:[%s3 + $0x10] sm:$0xff]
  %v290 = vld [vmem:[%s3 + $0x18] sm:$0xff]
  %v291 = vld [vmem:[%s3 + $0x20] sm:$0xff]
  %v292 = vld [vmem:[%s3 + $0x28] sm:$0xff]
  %v293 = vld [vmem:[%s3 + $0x30] sm:$0xff]
  %v294 = vld [vmem:[%s3 + $0x38] sm:$0xff]
  %v295 = vld [vmem:[%s3 + $0x40] sm:$0xff]
  %v296 = vld [vmem:[%s3 + $0x48] sm:$0xff]
  %v297 = vld [vmem:[%s3 + $0x50] sm:$0xff]
  %v298 = vld [vmem:[%s3 + $0x58] sm:$0xff]
  %v299 = vld [vmem:[%s3 + $0x60] sm:$0xff]
  %v300 = vld [vmem:[%s3 + $0x68] sm:$0xff]
  %v301 = vld [vmem:[%s3 + $0x70] sm:$0xff]
  %v302 = vld [vmem:[%s3 + $0x78] sm:$0xff]
  %v303 = vld [vmem:[%s3 + $0x80] sm:$0xff]
  %v304 = vld [vmem:[%s3 + $0x88] sm:$0xff]
  %v305 = vld [vmem:[%s3 + $0x90] sm:$0xff]
  %v306 = vld [vmem:[%s3 + $0x98] sm:$0xff]
  %v307 = vld [vmem:[%s3 + $0xa0] sm:$0xff]
  %v308 = vld [vmem:[%s3 + $0xa8] sm:$0xff]
  %v309 = vld [vmem:[%s3 + $0xb0] sm:$0xff]
  %v310 = vld [vmem:[%s3 + $0xb8] sm:$0xff]
  %v311 = vld [vmem:[%s3 + $0xc0] sm:$0xff]
  %v312 = vld [vmem:[%s3 + $0xc8] sm:$0xff]
  %v313 = vld [vmem:[%s3 + $0xd0] sm:$0xff]
  %v314 = vld [vmem:[%s3 + $0xd8] sm:$0xff]
  %v315 = vld [vmem:[%s3 + $0xe0] sm:$0xff]
  %v316 = vld [vmem:[%s3 + $0xe8] sm:$0xff]
  %v317 = vld [vmem:[%s3 + $0xf0] sm:$0xff]
  %v318 = vld [vmem:[%s3 + $0xf8] sm:$0xff]
  %v319 = vld [vmem:[%s3 + $0x100] sm:$0xff]
  %v320 = vld [vmem:[%s3 + $0x108] sm:$0xff]
  %v321 = vld [vmem:[%s3 + $0x110] sm:$0xff]
  %v322 = vld [vmem:[%s3 + $0x118] sm:$0xff]
  %v323 = vld [vmem:[%s3 + $0x120] sm:$0xff]
  %v324 = vld [vmem:[%s3 + $0x128] sm:$0xff]
  %v325 = vld [vmem:[%s3 + $0x130] sm:$0xff]
  %v326 = vld [vmem:[%s3 + $0x138] sm:$0xff]
  %v327 = vld [vmem:[%s3 + $0x140] sm:$0xff]
  %v328 = vld [vmem:[%s3 + $0x148] sm:$0xff]
  %v329 = vld [vmem:[%s3 + $0x150] sm:$0xff]
  %v330 = vld [vmem:[%s3 + $0x158] sm:$0xff]
  %v331 = vld [vmem:[%s3 + $0x160] sm:$0xff]
  %v332 = vld [vmem:[%s3 + $0x168] sm:$0xff]
  %v333 = vld [vmem:[%s3 + $0x170] sm:$0xff]
  %v334 = vld [vmem:[%s3 + $0x178] sm:$0xff]
  %v335 = vld [vmem:[%s3 + $0x180] sm:$0xff]
  %v336 = vld [vmem:[%s3 + $0x188] sm:$0xff]
  %v337 = vld [vmem:[%s3 + $0x190] sm:$0xff]
  %v338 = vld [vmem:[%s3 + $0x198] sm:$0xff]
  %v339 = vld [vmem:[%s3 + $0x1a0] sm:$0xff]
  %v340 = vld [vmem:[%s3 + $0x1a8] sm:$0xff]
  %v341 = vld [vmem:[%s3 + $0x1b0] sm:$0xff]
  %v342 = vld [vmem:[%s3 + $0x1b8] sm:$0xff]
  %v343 = vld [vmem:[%s3 + $0x1c0] sm:$0xff]
  %v344 = vld [vmem:[%s3 + $0x1c8] sm:$0xff]
  %v345 = vld [vmem:[%s3 + $0x1d0] sm:$0xff]
  %v346 = vld [vmem:[%s3 + $0x1d8] sm:$0xff]
  %v347 = vld [vmem:[%s3 + $0x1e0] sm:$0xff]
  %v348 = vld [vmem:[%s3 + $0x1e8] sm:$0xff]
  %v349 = vld [vmem:[%s3 + $0x1f0] sm:$0xff]
  %v350 = vld [vmem:[%s3 + $0x1f8] sm:$0xff]
  %v351 = vadd.f32 %v223, %v287
  %v352 = vadd.f32 %v224, %v288
  %v353 = vadd.f32 %v225, %v289
  %v354 = vadd.f32 %v226, %v290
  %v355 = vadd.f32 %v227, %v291
  %v356 = vadd.f32 %v228, %v292
  %v357 = vadd.f32 %v229, %v293
  %v358 = vadd.f32 %v230, %v294
  %v359 = vadd.f32 %v231, %v295
  %v360 = vadd.f32 %v232, %v296
  %v361 = vadd.f32 %v233, %v297
  %v362 = vadd.f32 %v234, %v298
  %v363 = vadd.f32 %v235, %v299
  %v364 = vadd.f32 %v236, %v300
  %v365 = vadd.f32 %v237, %v301
  %v366 = vadd.f32 %v238, %v302
  %v367 = vadd.f32 %v239, %v303
  %v368 = vadd.f32 %v240, %v304
  %v369 = vadd.f32 %v241, %v305
  %v370 = vadd.f32 %v242, %v306
  %v371 = vadd.f32 %v243, %v307
  %v372 = vadd.f32 %v244, %v308
  %v373 = vadd.f32 %v245, %v309
  %v374 = vadd.f32 %v246, %v310
  %v375 = vadd.f32 %v247, %v311
  %v376 = vadd.f32 %v248, %v312
  %v377 = vadd.f32 %v249, %v313
  %v378 = vadd.f32 %v250, %v314
  %v379 = vadd.f32 %v251, %v315
  %v380 = vadd.f32 %v252, %v316
  %v381 = vadd.f32 %v253, %v317
  %v382 = vadd.f32 %v254, %v318
  %v383 = vadd.f32 %v255, %v319
  %v384 = vadd.f32 %v256, %v320
  %v385 = vadd.f32 %v257, %v321
  %v386 = vadd.f32 %v258, %v322
  %v387 = vadd.f32 %v259, %v323
  %v388 = vadd.f32 %v260, %v324
  %v389 = vadd.f32 %v261, %v325
  %v390 = vadd.f32 %v262, %v326
  %v391 = vadd.f32 %v263, %v327
  %v392 = vadd.f32 %v264, %v328
  %v393 = vadd.f32 %v265, %v329
  %v394 = vadd.f32 %v266, %v330
  %v395 = vadd.f32 %v267, %v331
  %v396 = vadd.f32 %v268, %v332
  %v397 = vadd.f32 %v269, %v333
  %v398 = vadd.f32 %v270, %v334
  %v399 = vadd.f32 %v271, %v335
  %v400 = vadd.f32 %v272, %v336
  %v401 = vadd.f32 %v273, %v337
  %v402 = vadd.f32 %v274, %v338
  %v403 = vadd.f32 %v275, %v339
  %v404 = vadd.f32 %v276, %v340
  %v405 = vadd.f32 %v277, %v341
  %v406 = vadd.f32 %v278, %v342
  %v407 = vadd.f32 %v279, %v343
  %v408 = vadd.f32 %v280, %v344
  %v409 = vadd.f32 %v281, %v345
  %v410 = vadd.f32 %v282, %v346
  %v411 = vadd.f32 %v283, %v347
  %v412 = vadd.f32 %v284, %v348
  %v413 = vadd.f32 %v285, %v349
  %v414 = vadd.f32 %v286, %v350
  %vm415 = vcmask 31744
  %416 = vst.msk [vmem:[%s4] sm:$0xff] %vm415, %v351
  %417 = vst.msk [vmem:[%s4 + $0x8] sm:$0xff] %vm415, %v352
  %418 = vst.msk [vmem:[%s4 + $0x10] sm:$0xff] %vm415, %v353
  %419 = vst.msk [vmem:[%s4 + $0x18] sm:$0xff] %vm415, %v354
  %420 = vst.msk [vmem:[%s4 + $0x20] sm:$0xff] %vm415, %v355
  %421 = vst.msk [vmem:[%s4 + $0x28] sm:$0xff] %vm415, %v356
  %422 = vst.msk [vmem:[%s4 + $0x30] sm:$0xff] %vm415, %v357
  %423 = vst.msk [vmem:[%s4 + $0x38] sm:$0xff] %vm415, %v358
  %424 = vst.msk [vmem:[%s4 + $0x40] sm:$0xff] %vm415, %v359
  %425 = vst.msk [vmem:[%s4 + $0x48] sm:$0xff] %vm415, %v360
  %426 = vst.msk [vmem:[%s4 + $0x50] sm:$0xff] %vm415, %v361
  %427 = vst.msk [vmem:[%s4 + $0x58] sm:$0xff] %vm415, %v362
  %428 = vst.msk [vmem:[%s4 + $0x60] sm:$0xff] %vm415, %v363
  %429 = vst.msk [vmem:[%s4 + $0x68] sm:$0xff] %vm415, %v364
  %430 = vst.msk [vmem:[%s4 + $0x70] sm:$0xff] %vm415, %v365
  %431 = vst.msk [vmem:[%s4 + $0x78] sm:$0xff] %vm415, %v366
  %432 = vst.msk [vmem:[%s4 + $0x80] sm:$0xff] %vm415, %v367
  %433 = vst.msk [vmem:[%s4 + $0x88] sm:$0xff] %vm415, %v368
  %434 = vst.msk [vmem:[%s4 + $0x90] sm:$0xff] %vm415, %v369
  %435 = vst.msk [vmem:[%s4 + $0x98] sm:$0xff] %vm415, %v370
  %436 = vst.msk [vmem:[%s4 + $0xa0] sm:$0xff] %vm415, %v371
  %437 = vst.msk [vmem:[%s4 + $0xa8] sm:$0xff] %vm415, %v372
  %438 = vst.msk [vmem:[%s4 + $0xb0] sm:$0xff] %vm415, %v373
  %439 = vst.msk [vmem:[%s4 + $0xb8] sm:$0xff] %vm415, %v374
  %440 = vst.msk [vmem:[%s4 + $0xc0] sm:$0xff] %vm415, %v375
  %441 = vst.msk [vmem:[%s4 + $0xc8] sm:$0xff] %vm415, %v376
  %442 = vst.msk [vmem:[%s4 + $0xd0] sm:$0xff] %vm415, %v377
  %443 = vst.msk [vmem:[%s4 + $0xd8] sm:$0xff] %vm415, %v378
  %444 = vst.msk [vmem:[%s4 + $0xe0] sm:$0xff] %vm415, %v379
  %445 = vst.msk [vmem:[%s4 + $0xe8] sm:$0xff] %vm415, %v380
  %446 = vst.msk [vmem:[%s4 + $0xf0] sm:$0xff] %vm415, %v381
  %447 = vst.msk [vmem:[%s4 + $0xf8] sm:$0xff] %vm415, %v382
  %448 = vst.msk [vmem:[%s4 + $0x100] sm:$0xff] %vm415, %v383
  %449 = vst.msk [vmem:[%s4 + $0x108] sm:$0xff] %vm415, %v384
  %450 = vst.msk [vmem:[%s4 + $0x110] sm:$0xff] %vm415, %v385
  %451 = vst.msk [vmem:[%s4 + $0x118] sm:$0xff] %vm415, %v386
  %452 = vst.msk [vmem:[%s4 + $0x120] sm:$0xff] %vm415, %v387
  %453 = vst.msk [vmem:[%s4 + $0x128] sm:$0xff] %vm415, %v388
  %454 = vst.msk [vmem:[%s4 + $0x130] sm:$0xff] %vm415, %v389
  %455 = vst.msk [vmem:[%s4 + $0x138] sm:$0xff] %vm415, %v390
  %456 = vst.msk [vmem:[%s4 + $0x140] sm:$0xff] %vm415, %v391
  %457 = vst.msk [vmem:[%s4 + $0x148] sm:$0xff] %vm415, %v392
  %458 = vst.msk [vmem:[%s4 + $0x150] sm:$0xff] %vm415, %v393
  %459 = vst.msk [vmem:[%s4 + $0x158] sm:$0xff] %vm415, %v394
  %460 = vst.msk [vmem:[%s4 + $0x160] sm:$0xff] %vm415, %v395
  %461 = vst.msk [vmem:[%s4 + $0x168] sm:$0xff] %vm415, %v396
  %462 = vst.msk [vmem:[%s4 + $0x170] sm:$0xff] %vm415, %v397
  %463 = vst.msk [vmem:[%s4 + $0x178] sm:$0xff] %vm415, %v398
  %464 = vst.msk [vmem:[%s4 + $0x180] sm:$0xff] %vm415, %v399
  %465 = vst.msk [vmem:[%s4 + $0x188] sm:$0xff] %vm415, %v400
  %466 = vst.msk [vmem:[%s4 + $0x190] sm:$0xff] %vm415, %v401
  %467 = vst.msk [vmem:[%s4 + $0x198] sm:$0xff] %vm415, %v402
  %468 = vst.msk [vmem:[%s4 + $0x1a0] sm:$0xff] %vm415, %v403
  %469 = vst.msk [vmem:[%s4 + $0x1a8] sm:$0xff] %vm415, %v404
  %470 = vst.msk [vmem:[%s4 + $0x1b0] sm:$0xff] %vm415, %v405
  %471 = vst.msk [vmem:[%s4 + $0x1b8] sm:$0xff] %vm415, %v406
  %472 = vst.msk [vmem:[%s4 + $0x1c0] sm:$0xff] %vm415, %v407
  %473 = vst.msk [vmem:[%s4 + $0x1c8] sm:$0xff] %vm415, %v408
  %474 = vst.msk [vmem:[%s4 + $0x1d0] sm:$0xff] %vm415, %v409
  %475 = vst.msk [vmem:[%s4 + $0x1d8] sm:$0xff] %vm415, %v410
  %476 = vst.msk [vmem:[%s4 + $0x1e0] sm:$0xff] %vm415, %v411
  %477 = vst.msk [vmem:[%s4 + $0x1e8] sm:$0xff] %vm415, %v412
  %478 = vst.msk [vmem:[%s4 + $0x1f0] sm:$0xff] %vm415, %v413
  %479 = vst.msk [vmem:[%s4 + $0x1f8] sm:$0xff] %vm415, %v414
  // Predicated region
  $region18: #{mobilenet_v2_conv2d.7} parent=0 // pred_check
    _
  $region19: #{mobilenet_v2_conv2d.7} parent=0 // pred_check_branch
    %481 = sbr.rel (0) target = $region21
  $region20: #{mobilenet_v2_conv2d.7} parent=0 // pred_region
    _
  $region21: #{mobilenet_v2_conv2d.7} parent=0 // pred_fallthru
    _
  // Predicated region
  $region22: #{mobilenet_v2_conv2d.7} parent=0 // pred_check
    _
  $region23: #{mobilenet_v2_conv2d.7} parent=0 // pred_check_branch
    %483 = sbr.rel (0) target = $region25
  $region24: #{mobilenet_v2_conv2d.7} parent=0 // pred_region
    _
  $region25: #{mobilenet_v2_conv2d.7} parent=0 // pred_fallthru
    _

// kernel: mobilenet_v2_conv2d.4
$region0: #{mobilenet_v2_conv2d.4}
  #allocation0 [shape = 'u32[]', space=smem, size = 0x4, offset = 0x4, fixed_abs, tag = 'smem constant byte address 0x4 - core index']
  #allocation1 [shape = 'u32[144,128]{1,0:T(1,128)}', space=vmem, size = 0x12000, scoped, tag = 'internal scratch']
  %s0 = inlined_call_operand.vmem [shape: bf16[512,4], index: 0, kind: input, shape index: {}]
  %s1 = inlined_call_operand.vmem [shape: bf16[4,24], index: 1, kind: input, shape index: {}]
  %s2 = inlined_call_operand.vmem [shape: bf16[512,24], index: 2, kind: output, shape index: {0}]
  %s3 = inlined_call_operand.vmem [shape: f32[1,1,24], index: 3, kind: output, shape index: {1}]
  %s4 = inlined_call_operand.vmem [shape: f32[1,1,24], index: 4, kind: output, shape index: {2}]
  %5 = xla_tuple %s2, %s3, %s4
  %s6 = sld [smem:[#allocation0]]
  $region34: #{mobilenet_v2_conv2d.4} parent=0
    _
  %s8 = ssub.s32 1, %s6
  %s9 = scalar_select 0, %s8, %s6
  // Predicated region
  $region2: #{mobilenet_v2_conv2d.4} parent=0 // pred_check
    _
  $region3: #{mobilenet_v2_conv2d.4} parent=0 // pred_check_branch
    %11 = sbr.rel (0) target = $region5
  $region4: #{mobilenet_v2_conv2d.4} parent=0 // pred_region
    _
  $region5: #{mobilenet_v2_conv2d.4} parent=0 // pred_fallthru
    _
  // Predicated region
  $region6: #{mobilenet_v2_conv2d.4} parent=0 // pred_check
    _
  $region7: #{mobilenet_v2_conv2d.4} parent=0 // pred_check_branch
    %13 = sbr.rel (0) target = $region9
  $region8: #{mobilenet_v2_conv2d.4} parent=0 // pred_region
    _
  $region9: #{mobilenet_v2_conv2d.4} parent=0 // pred_fallthru
    _
  %v15 = vld [vmem:[%s0] sm:$0xf]
  %v16 = vld [vmem:[%s0 + $0x4] sm:$0xf]
  %v17 = vld [vmem:[%s0 + $0x8] sm:$0xf]
  %v18 = vld [vmem:[%s0 + $0xc] sm:$0xf]
  %v19 = vld [vmem:[%s0 + $0x10] sm:$0xf]
  %v20 = vld [vmem:[%s0 + $0x14] sm:$0xf]
  %v21 = vld [vmem:[%s0 + $0x18] sm:$0xf]
  %v22 = vld [vmem:[%s0 + $0x1c] sm:$0xf]
  %v23 = vld [vmem:[%s0 + $0x20] sm:$0xf]
  %v24 = vld [vmem:[%s0 + $0x24] sm:$0xf]
  %v25 = vld [vmem:[%s0 + $0x28] sm:$0xf]
  %v26 = vld [vmem:[%s0 + $0x2c] sm:$0xf]
  %v27 = vld [vmem:[%s0 + $0x30] sm:$0xf]
  %v28 = vld [vmem:[%s0 + $0x34] sm:$0xf]
  %v29 = vld [vmem:[%s0 + $0x38] sm:$0xf]
  %v30 = vld [vmem:[%s0 + $0x3c] sm:$0xf]
  %v31 = vld [vmem:[%s0 + $0x40] sm:$0xf]
  %v32 = vld [vmem:[%s0 + $0x44] sm:$0xf]
  %v33 = vld [vmem:[%s0 + $0x48] sm:$0xf]
  %v34 = vld [vmem:[%s0 + $0x4c] sm:$0xf]
  %v35 = vld [vmem:[%s0 + $0x50] sm:$0xf]
  %v36 = vld [vmem:[%s0 + $0x54] sm:$0xf]
  %v37 = vld [vmem:[%s0 + $0x58] sm:$0xf]
  %v38 = vld [vmem:[%s0 + $0x5c] sm:$0xf]
  %v39 = vld [vmem:[%s0 + $0x60] sm:$0xf]
  %v40 = vld [vmem:[%s0 + $0x64] sm:$0xf]
  %v41 = vld [vmem:[%s0 + $0x68] sm:$0xf]
  %v42 = vld [vmem:[%s0 + $0x6c] sm:$0xf]
  %v43 = vld [vmem:[%s0 + $0x70] sm:$0xf]
  %v44 = vld [vmem:[%s0 + $0x74] sm:$0xf]
  %v45 = vld [vmem:[%s0 + $0x78] sm:$0xf]
  %v46 = vld [vmem:[%s0 + $0x7c] sm:$0xf]
  %v47 = vld [vmem:[%s0 + $0x80] sm:$0xf]
  %v48 = vld [vmem:[%s0 + $0x84] sm:$0xf]
  %v49 = vld [vmem:[%s0 + $0x88] sm:$0xf]
  %v50 = vld [vmem:[%s0 + $0x8c] sm:$0xf]
  %v51 = vld [vmem:[%s0 + $0x90] sm:$0xf]
  %v52 = vld [vmem:[%s0 + $0x94] sm:$0xf]
  %v53 = vld [vmem:[%s0 + $0x98] sm:$0xf]
  %v54 = vld [vmem:[%s0 + $0x9c] sm:$0xf]
  %v55 = vld [vmem:[%s0 + $0xa0] sm:$0xf]
  %v56 = vld [vmem:[%s0 + $0xa4] sm:$0xf]
  %v57 = vld [vmem:[%s0 + $0xa8] sm:$0xf]
  %v58 = vld [vmem:[%s0 + $0xac] sm:$0xf]
  %v59 = vld [vmem:[%s0 + $0xb0] sm:$0xf]
  %v60 = vld [vmem:[%s0 + $0xb4] sm:$0xf]
  %v61 = vld [vmem:[%s0 + $0xb8] sm:$0xf]
  %v62 = vld [vmem:[%s0 + $0xbc] sm:$0xf]
  %v63 = vld [vmem:[%s0 + $0xc0] sm:$0xf]
  %v64 = vld [vmem:[%s0 + $0xc4] sm:$0xf]
  %v65 = vld [vmem:[%s0 + $0xc8] sm:$0xf]
  %v66 = vld [vmem:[%s0 + $0xcc] sm:$0xf]
  %v67 = vld [vmem:[%s0 + $0xd0] sm:$0xf]
  %v68 = vld [vmem:[%s0 + $0xd4] sm:$0xf]
  %v69 = vld [vmem:[%s0 + $0xd8] sm:$0xf]
  %v70 = vld [vmem:[%s0 + $0xdc] sm:$0xf]
  %v71 = vld [vmem:[%s0 + $0xe0] sm:$0xf]
  %v72 = vld [vmem:[%s0 + $0xe4] sm:$0xf]
  %v73 = vld [vmem:[%s0 + $0xe8] sm:$0xf]
  %v74 = vld [vmem:[%s0 + $0xec] sm:$0xf]
  %v75 = vld [vmem:[%s0 + $0xf0] sm:$0xf]
  %v76 = vld [vmem:[%s0 + $0xf4] sm:$0xf]
  %v77 = vld [vmem:[%s0 + $0xf8] sm:$0xf]
  %v78 = vld [vmem:[%s0 + $0xfc] sm:$0xf]
  %v79 = vld [vmem:[%s1] sm:$0x3]
  %v144 = vunpack.c.l.b16 %v15
  %v145 = vunpack.c.l.b16 %v16
  %v146 = vunpack.c.l.b16 %v17
  %v147 = vunpack.c.l.b16 %v18
  %v148 = vunpack.c.l.b16 %v19
  %v149 = vunpack.c.l.b16 %v20
  %v150 = vunpack.c.l.b16 %v21
  %v151 = vunpack.c.l.b16 %v22
  %v152 = vunpack.c.l.b16 %v23
  %v153 = vunpack.c.l.b16 %v24
  %v154 = vunpack.c.l.b16 %v25
  %v155 = vunpack.c.l.b16 %v26
  %v156 = vunpack.c.l.b16 %v27
  %v157 = vunpack.c.l.b16 %v28
  %v158 = vunpack.c.l.b16 %v29
  %v159 = vunpack.c.l.b16 %v30
  %v160 = vunpack.c.l.b16 %v31
  %v161 = vunpack.c.l.b16 %v32
  %v162 = vunpack.c.l.b16 %v33
  %v163 = vunpack.c.l.b16 %v34
  %v164 = vunpack.c.l.b16 %v35
  %v165 = vunpack.c.l.b16 %v36
  %v166 = vunpack.c.l.b16 %v37
  %v167 = vunpack.c.l.b16 %v38
  %v168 = vunpack.c.l.b16 %v39
  %v169 = vunpack.c.l.b16 %v40
  %v170 = vunpack.c.l.b16 %v41
  %v171 = vunpack.c.l.b16 %v42
  %v172 = vunpack.c.l.b16 %v43
  %v173 = vunpack.c.l.b16 %v44
  %v174 = vunpack.c.l.b16 %v45
  %v175 = vunpack.c.l.b16 %v46
  %v176 = vunpack.c.l.b16 %v47
  %v177 = vunpack.c.l.b16 %v48
  %v178 = vunpack.c.l.b16 %v49
  %v179 = vunpack.c.l.b16 %v50
  %v180 = vunpack.c.l.b16 %v51
  %v181 = vunpack.c.l.b16 %v52
  %v182 = vunpack.c.l.b16 %v53
  %v183 = vunpack.c.l.b16 %v54
  %v184 = vunpack.c.l.b16 %v55
  %v185 = vunpack.c.l.b16 %v56
  %v186 = vunpack.c.l.b16 %v57
  %v187 = vunpack.c.l.b16 %v58
  %v188 = vunpack.c.l.b16 %v59
  %v189 = vunpack.c.l.b16 %v60
  %v190 = vunpack.c.l.b16 %v61
  %v191 = vunpack.c.l.b16 %v62
  %v192 = vunpack.c.l.b16 %v63
  %v193 = vunpack.c.l.b16 %v64
  %v194 = vunpack.c.l.b16 %v65
  %v195 = vunpack.c.l.b16 %v66
  %v196 = vunpack.c.l.b16 %v67
  %v197 = vunpack.c.l.b16 %v68
  %v198 = vunpack.c.l.b16 %v69
  %v199 = vunpack.c.l.b16 %v70
  %v200 = vunpack.c.l.b16 %v71
  %v201 = vunpack.c.l.b16 %v72
  %v202 = vunpack.c.l.b16 %v73
  %v203 = vunpack.c.l.b16 %v74
  %v204 = vunpack.c.l.b16 %v75
  %v205 = vunpack.c.l.b16 %v76
  %v206 = vunpack.c.l.b16 %v77
  %v207 = vunpack.c.l.b16 %v78
  %v208 = vpack.c.b16 %v145, %v144
  %v209 = vpack.c.b16 %v147, %v146
  %v210 = vpack.c.b16 %v149, %v148
  %v211 = vpack.c.b16 %v151, %v150
  %v212 = vpack.c.b16 %v153, %v152
  %v213 = vpack.c.b16 %v155, %v154
  %v214 = vpack.c.b16 %v157, %v156
  %v215 = vpack.c.b16 %v159, %v158
  %v216 = vpack.c.b16 %v161, %v160
  %v217 = vpack.c.b16 %v163, %v162
  %v218 = vpack.c.b16 %v165, %v164
  %v219 = vpack.c.b16 %v167, %v166
  %v220 = vpack.c.b16 %v169, %v168
  %v221 = vpack.c.b16 %v171, %v170
  %v222 = vpack.c.b16 %v173, %v172
  %v223 = vpack.c.b16 %v175, %v174
  %v224 = vpack.c.b16 %v177, %v176
  %v225 = vpack.c.b16 %v179, %v178
  %v226 = vpack.c.b16 %v181, %v180
  %v227 = vpack.c.b16 %v183, %v182
  %v228 = vpack.c.b16 %v185, %v184
  %v229 = vpack.c.b16 %v187, %v186
  %v230 = vpack.c.b16 %v189, %v188
  %v231 = vpack.c.b16 %v191, %v190
  %v232 = vpack.c.b16 %v193, %v192
  %v233 = vpack.c.b16 %v195, %v194
  %v234 = vpack.c.b16 %v197, %v196
  %v235 = vpack.c.b16 %v199, %v198
  %v236 = vpack.c.b16 %v201, %v200
  %v237 = vpack.c.b16 %v203, %v202
  %v238 = vpack.c.b16 %v205, %v204
  %v239 = vpack.c.b16 %v207, %v206
  %vm240 = vcmask 31744
  %v242 = vsel %vm240, %v208, 0
  %v245 = vsel %vm240, %v209, 0
  %v248 = vsel %vm240, %v210, 0
  %v251 = vsel %vm240, %v211, 0
  %v254 = vsel %vm240, %v212, 0
  %v257 = vsel %vm240, %v213, 0
  %v260 = vsel %vm240, %v214, 0
  %v263 = vsel %vm240, %v215, 0
  %v266 = vsel %vm240, %v216, 0
  %v269 = vsel %vm240, %v217, 0
  %v272 = vsel %vm240, %v218, 0
  %v275 = vsel %vm240, %v219, 0
  %v278 = vsel %vm240, %v220, 0
  %v281 = vsel %vm240, %v221, 0
  %v284 = vsel %vm240, %v222, 0
  %v287 = vsel %vm240, %v223, 0
  %v290 = vsel %vm240, %v224, 0
  %v293 = vsel %vm240, %v225, 0
  %v296 = vsel %vm240, %v226, 0
  %v299 = vsel %vm240, %v227, 0
  %v302 = vsel %vm240, %v228, 0
  %v305 = vsel %vm240, %v229, 0
  %v308 = vsel %vm240, %v230, 0
  %v311 = vsel %vm240, %v231, 0
  %v314 = vsel %vm240, %v232, 0
  %v317 = vsel %vm240, %v233, 0
  %v320 = vsel %vm240, %v234, 0
  %v323 = vsel %vm240, %v235, 0
  %v326 = vsel %vm240, %v236, 0
  %v329 = vsel %vm240, %v237, 0
  %v332 = vsel %vm240, %v238, 0
  %v335 = vsel %vm240, %v239, 0
  %vm337 = vcmask 1041408
  %v339 = vsel %vm337, %v79, 0
  %341 = vmatprep.subr.bf16.mxu0 0
  %342 = vmatpush1.bf16.msra.mxu0 %v339
  %343 = vmatprep.subr.bf16.mxu0 0
  %344 = vmatpush1.bf16.msra.mxu0 0
  %345 = vmatprep.subr.bf16.mxu0 0
  %346 = vmatpush1.bf16.msra.mxu0 0
  %347 = vmatprep.subr.bf16.mxu0 0
  %348 = vmatpush1.bf16.msra.mxu0 0
  %349 = vmatprep.subr.bf16.mxu0 0
  %350 = vmatpush1.bf16.msra.mxu0 0
  %351 = vmatprep.subr.bf16.mxu0 0
  %352 = vmatpush1.bf16.msra.mxu0 0
  %353 = vmatprep.subr.bf16.mxu0 0
  %354 = vmatpush1.bf16.msra.mxu0 0
  %355 = vmatprep.subr.bf16.mxu0 0
  %356 = vmatpush1.bf16.msra.mxu0 0
  %357 = vmatprep.subr.bf16.mxu0 0
  %358 = vmatpush1.bf16.msra.mxu0 0
  %359 = vmatprep.subr.bf16.mxu0 0
  %360 = vmatpush1.bf16.msra.mxu0 0
  %361 = vmatprep.subr.bf16.mxu0 0
  %362 = vmatpush1.bf16.msra.mxu0 0
  %363 = vmatprep.subr.bf16.mxu0 0
  %364 = vmatpush1.bf16.msra.mxu0 0
  %365 = vmatprep.subr.bf16.mxu0 0
  %366 = vmatpush1.bf16.msra.mxu0 0
  %367 = vmatprep.subr.bf16.mxu0 0
  %368 = vmatpush1.bf16.msra.mxu0 0
  %369 = vmatprep.subr.bf16.mxu0 0
  %370 = vmatpush1.bf16.msra.mxu0 0
  %371 = vmatprep.subr.bf16.mxu0 0
  %372 = vmatpush1.bf16.msra.mxu0 0
  %373 = vmatprep.mubr.bf16.mxu0 0
  %374 = vmatmul.mubr.bf16.gmra.mrb[0].mxu0 %v242
  %v375 = vpop.f32.mrb[0].mxu0
  %v376 = vadd.f32 0.0, %v375
  %v377 = vpop.f32.mrb[0].mxu0
  %v378 = vpop.f32.mrb[0].mxu0
  %v379 = vadd.f32 0.0, %v378
  %v380 = vpop.f32.mrb[0].mxu0
  %381 = vmatprep.mubr.bf16.mxu0 0
  %382 = vmatmul.mubr.bf16.gmra.mrb[0].mxu0 %v245
  %v383 = vpop.f32.mrb[0].mxu0
  %v384 = vadd.f32 0.0, %v383
  %v385 = vpop.f32.mrb[0].mxu0
  %v386 = vpop.f32.mrb[0].mxu0
  %v387 = vadd.f32 0.0, %v386
  %v388 = vpop.f32.mrb[0].mxu0
  %389 = vmatprep.mubr.bf16.mxu0 0
  %390 = vmatmul.mubr.bf16.gmra.mrb[0].mxu0 %v248
  %v391 = vpop.f32.mrb[0].mxu0
  %v392 = vadd.f32 0.0, %v391
  %v393 = vpop.f32.mrb[0].mxu0
  %v394 = vpop.f32.mrb[0].mxu0
  %v395 = vadd.f32 0.0, %v394
  %v396 = vpop.f32.mrb[0].mxu0
  %397 = vmatprep.mubr.bf16.mxu0 0
  %398 = vmatmul.mubr.bf16.gmra.mrb[0].mxu0 %v251
  %v399 = vpop.f32.mrb[0].mxu0
  %v400 = vadd.f32 0.0, %v399
  %v401 = vpop.f32.mrb[0].mxu0
  %v402 = vpop.f32.mrb[0].mxu0
  %v403 = vadd.f32 0.0, %v402
  %v404 = vpop.f32.mrb[0].mxu0
  %405 = vmatprep.mubr.bf16.mxu0 0
  %406 = vmatmul.mubr.bf16.gmra.mrb[0].mxu0 %v254
  %v407 = vpop.f32.mrb[0].mxu0
  %v408 = vadd.f32 0.0, %v407
  %v409 = vpop.f32.mrb[0].mxu0
  %v410 = vpop.f32.mrb[0].mxu0
  %v411 = vadd.f32 0.0, %v410
  %v412 = vpop.f32.mrb[0].mxu0
  %413 = vmatprep.mubr.bf16.mxu0 0
  %414 = vmatmul.mubr.bf16.gmra.mrb[0].mxu0 %v257
  %v415 = vpop.f32.mrb[0].mxu0
  %v416 = vadd.f32 0.0, %v415
  %v417 = vpop.f32.mrb[0].mxu0
  %v418 = vpop.f32.mrb[0].mxu0
  %v419 = vadd.f32 0.0, %v418
  %v420 = vpop.f32.mrb[0].mxu0
  %421 = vmatprep.mubr.bf16.mxu0 0
  %422 = vmatmul.mubr.bf16.gmra.mrb[0].mxu0 %v260
  %v423 = vpop.f32.mrb[0].mxu0
  %v424 = vadd.f32 0.0, %v423
  %v425 = vpop.f32.mrb[0].mxu0
  %v426 = vpop.f32.mrb[0].mxu0
  %v427 = vadd.f32 0.0, %v426
  %v428 = vpop.f32.mrb[0].mxu0
  %429 = vmatprep.mubr.bf16.mxu0 0
  %430 = vmatmul.mubr.bf16.gmra.mrb[0].mxu0 %v263
  %v431 = vpop.f32.mrb[0].mxu0
  %v432 = vadd.f32 0.0, %v431
  %v433 = vpop.f32.mrb[0].mxu0
  %v434 = vpop.f32.mrb[0].mxu0
  %v435 = vadd.f32 0.0, %v434
  %v436 = vpop.f32.mrb[0].mxu0
  %437 = vmatprep.mubr.bf16.mxu0 0
  %438 = vmatmul.mubr.bf16.gmra.mrb[0].mxu0 %v266
  %v439 = vpop.f32.mrb[0].mxu0
  %v440 = vadd.f32 0.0, %v439
  %v441 = vpop.f32.mrb[0].mxu0
  %v442 = vpop.f32.mrb[0].mxu0
  %v443 = vadd.f32 0.0, %v442
  %v444 = vpop.f32.mrb[0].mxu0
  %445 = vmatprep.mubr.bf16.mxu0 0
  %446 = vmatmul.mubr.bf16.gmra.mrb[0].mxu0 %v269
  %v447 = vpop.f32.mrb[0].mxu0
  %v448 = vadd.f32 0.0, %v447
  %v449 = vpop.f32.mrb[0].mxu0
  %v450 = vpop.f32.mrb[0].mxu0
  %v451 = vadd.f32 0.0, %v450
  %v452 = vpop.f32.mrb[0].mxu0
  %453 = vmatprep.mubr.bf16.mxu0 0
  %454 = vmatmul.mubr.bf16.gmra.mrb[0].mxu0 %v272
  %v455 = vpop.f32.mrb[0].mxu0
  %v456 = vadd.f32 0.0, %v455
  %v457 = vpop.f32.mrb[0].mxu0
  %v458 = vpop.f32.mrb[0].mxu0
  %v459 = vadd.f32 0.0, %v458
  %v460 = vpop.f32.mrb[0].mxu0
  %461 = vmatprep.mubr.bf16.mxu0 0
  %462 = vmatmul.mubr.bf16.gmra.mrb[0].mxu0 %v275
  %v463 = vpop.f32.mrb[0].mxu0
  %v464 = vadd.f32 0.0, %v463
  %v465 = vpop.f32.mrb[0].mxu0
  %v466 = vpop.f32.mrb[0].mxu0
  %v467 = vadd.f32 0.0, %v466
  %v468 = vpop.f32.mrb[0].mxu0
  %469 = vmatprep.mubr.bf16.mxu0 0
  %470 = vmatmul.mubr.bf16.gmra.mrb[0].mxu0 %v278
  %v471 = vpop.f32.mrb[0].mxu0
  %v472 = vadd.f32 0.0, %v471
  %v473 = vpop.f32.mrb[0].mxu0
  %v474 = vpop.f32.mrb[0].mxu0
  %v475 = vadd.f32 0.0, %v474
  %v476 = vpop.f32.mrb[0].mxu0
  %477 = vmatprep.mubr.bf16.mxu0 0
  %478 = vmatmul.mubr.bf16.gmra.mrb[0].mxu0 %v281
  %v479 = vpop.f32.mrb[0].mxu0
  %v480 = vadd.f32 0.0, %v479
  %v481 = vpop.f32.mrb[0].mxu0
  %v482 = vpop.f32.mrb[0].mxu0
  %v483 = vadd.f32 0.0, %v482
  %v484 = vpop.f32.mrb[0].mxu0
  %485 = vmatprep.mubr.bf16.mxu0 0
  %486 = vmatmul.mubr.bf16.gmra.mrb[0].mxu0 %v284
  %v487 = vpop.f32.mrb[0].mxu0
  %v488 = vadd.f32 0.0, %v487
  %v489 = vpop.f32.mrb[0].mxu0
  %v490 = vpop.f32.mrb[0].mxu0
  %v491 = vadd.f32 0.0, %v490
  %v492 = vpop.f32.mrb[0].mxu0
  %493 = vmatprep.mubr.bf16.mxu0 0
  %494 = vmatmul.mubr.bf16.gmra.mrb[0].mxu0 %v287
  %v495 = vpop.f32.mrb[0].mxu0
  %v496 = vadd.f32 0.0, %v495
  %v497 = vpop.f32.mrb[0].mxu0
  %v498 = vpop.f32.mrb[0].mxu0
  %v499 = vadd.f32 0.0, %v498
  %v500 = vpop.f32.mrb[0].mxu0
  %501 = vmatprep.mubr.bf16.mxu0 0
  %502 = vmatmul.mubr.bf16.gmra.mrb[0].mxu0 %v290
  %v503 = vpop.f32.mrb[0].mxu0
  %v504 = vadd.f32 0.0, %v503
  %v505 = vpop.f32.mrb[0].mxu0
  %v506 = vpop.f32.mrb[0].mxu0
  %v507 = vadd.f32 0.0, %v506
  %v508 = vpop.f32.mrb[0].mxu0
  %509 = vmatprep.mubr.bf16.mxu0 0
  %510 = vmatmul.mubr.bf16.gmra.mrb[0].mxu0 %v293
  %v511 = vpop.f32.mrb[0].mxu0
  %v512 = vadd.f32 0.0, %v511
  %v513 = vpop.f32.mrb[0].mxu0
  %v514 = vpop.f32.mrb[0].mxu0
  %v515 = vadd.f32 0.0, %v514
  %v516 = vpop.f32.mrb[0].mxu0
  %517 = vmatprep.mubr.bf16.mxu0 0
  %518 = vmatmul.mubr.bf16.gmra.mrb[0].mxu0 %v296
  %v519 = vpop.f32.mrb[0].mxu0
  %v520 = vadd.f32 0.0, %v519
  %v521 = vpop.f32.mrb[0].mxu0
  %v522 = vpop.f32.mrb[0].mxu0
  %v523 = vadd.f32 0.0, %v522
  %v524 = vpop.f32.mrb[0].mxu0
  %525 = vmatprep.mubr.bf16.mxu0 0
  %526 = vmatmul.mubr.bf16.gmra.mrb[0].mxu0 %v299
  %v527 = vpop.f32.mrb[0].mxu0
  %v528 = vadd.f32 0.0, %v527
  %v529 = vpop.f32.mrb[0].mxu0
  %v530 = vpop.f32.mrb[0].mxu0
  %v531 = vadd.f32 0.0, %v530
  %v532 = vpop.f32.mrb[0].mxu0
  %533 = vmatprep.mubr.bf16.mxu0 0
  %534 = vmatmul.mubr.bf16.gmra.mrb[0].mxu0 %v302
  %v535 = vpop.f32.mrb[0].mxu0
  %v536 = vadd.f32 0.0, %v535
  %v537 = vpop.f32.mrb[0].mxu0
  %v538 = vpop.f32.mrb[0].mxu0
  %v539 = vadd.f32 0.0, %v538
  %v540 = vpop.f32.mrb[0].mxu0
  %541 = vmatprep.mubr.bf16.mxu0 0
  %542 = vmatmul.mubr.bf16.gmra.mrb[0].mxu0 %v305
  %v543 = vpop.f32.mrb[0].mxu0
  %v544 = vadd.f32 0.0, %v543
  %v545 = vpop.f32.mrb[0].mxu0
  %v546 = vpop.f32.mrb[0].mxu0
  %v547 = vadd.f32 0.0, %v546
  %v548 = vpop.f32.mrb[0].mxu0
  %549 = vmatprep.mubr.bf16.mxu0 0
  %550 = vmatmul.mubr.bf16.gmra.mrb[0].mxu0 %v308
  %v551 = vpop.f32.mrb[0].mxu0
  %v552 = vadd.f32 0.0, %v551
  %v553 = vpop.f32.mrb[0].mxu0
  %v554 = vpop.f32.mrb[0].mxu0
  %v555 = vadd.f32 0.0, %v554
  %v556 = vpop.f32.mrb[0].mxu0
  %557 = vmatprep.mubr.bf16.mxu0 0
  %558 = vmatmul.mubr.bf16.gmra.mrb[0].mxu0 %v311
  %v559 = vpop.f32.mrb[0].mxu0
  %v560 = vadd.f32 0.0, %v559
  %v561 = vpop.f32.mrb[0].mxu0
  %v562 = vpop.f32.mrb[0].mxu0
  %v563 = vadd.f32 0.0, %v562
  %v564 = vpop.f32.mrb[0].mxu0
  %565 = vmatprep.mubr.bf16.mxu0 0
  %566 = vmatmul.mubr.bf16.gmra.mrb[0].mxu0 %v314
  %v567 = vpop.f32.mrb[0].mxu0
  %v568 = vadd.f32 0.0, %v567
  %v569 = vpop.f32.mrb[0].mxu0
  %v570 = vpop.f32.mrb[0].mxu0
  %v571 = vadd.f32 0.0, %v570
  %v572 = vpop.f32.mrb[0].mxu0
  %573 = vmatprep.mubr.bf16.mxu0 0
  %574 = vmatmul.mubr.bf16.gmra.mrb[0].mxu0 %v317
  %v575 = vpop.f32.mrb[0].mxu0
  %v576 = vadd.f32 0.0, %v575
  %v577 = vpop.f32.mrb[0].mxu0
  %v578 = vpop.f32.mrb[0].mxu0
  %v579 = vadd.f32 0.0, %v578
  %v580 = vpop.f32.mrb[0].mxu0
  %581 = vmatprep.mubr.bf16.mxu0 0
  %582 = vmatmul.mubr.bf16.gmra.mrb[0].mxu0 %v320
  %v583 = vpop.f32.mrb[0].mxu0
  %v584 = vadd.f32 0.0, %v583
  %v585 = vpop.f32.mrb[0].mxu0
  %v586 = vpop.f32.mrb[0].mxu0
  %v587 = vadd.f32 0.0, %v586
  %v588 = vpop.f32.mrb[0].mxu0
  %589 = vmatprep.mubr.bf16.mxu0 0
  %590 = vmatmul.mubr.bf16.gmra.mrb[0].mxu0 %v323
  %v591 = vpop.f32.mrb[0].mxu0
  %v592 = vadd.f32 0.0, %v591
  %v593 = vpop.f32.mrb[0].mxu0
  %v594 = vpop.f32.mrb[0].mxu0
  %v595 = vadd.f32 0.0, %v594
  %v596 = vpop.f32.mrb[0].mxu0
  %597 = vmatprep.mubr.bf16.mxu0 0
  %598 = vmatmul.mubr.bf16.gmra.mrb[0].mxu0 %v326
  %v599 = vpop.f32.mrb[0].mxu0
  %v600 = vadd.f32 0.0, %v599
  %v601 = vpop.f32.mrb[0].mxu0
  %v602 = vpop.f32.mrb[0].mxu0
  %v603 = vadd.f32 0.0, %v602
  %v604 = vpop.f32.mrb[0].mxu0
  %605 = vmatprep.mubr.bf16.mxu0 0
  %606 = vmatmul.mubr.bf16.gmra.mrb[0].mxu0 %v329
  %v607 = vpop.f32.mrb[0].mxu0
  %v608 = vadd.f32 0.0, %v607
  %v609 = vpop.f32.mrb[0].mxu0
  %v610 = vpop.f32.mrb[0].mxu0
  %v611 = vadd.f32 0.0, %v610
  %v612 = vpop.f32.mrb[0].mxu0
  %613 = vmatprep.mubr.bf16.mxu0 0
  %614 = vmatmul.mubr.bf16.gmra.mrb[0].mxu0 %v332
  %v615 = vpop.f32.mrb[0].mxu0
  %v616 = vadd.f32 0.0, %v615
  %v617 = vpop.f32.mrb[0].mxu0
  %v618 = vpop.f32.mrb[0].mxu0
  %v619 = vadd.f32 0.0, %v618
  %v620 = vpop.f32.mrb[0].mxu0
  %621 = vmatprep.mubr.bf16.mxu0 0
  %622 = vmatmul.mubr.bf16.gmra.mrb[0].mxu0 %v335
  %v623 = vpop.f32.mrb[0].mxu0
  %v624 = vadd.f32 0.0, %v623
  %v625 = vpop.f32.mrb[0].mxu0
  %v626 = vpop.f32.mrb[0].mxu0
  %v627 = vadd.f32 0.0, %v626
  %v628 = vpop.f32.mrb[0].mxu0
  %629 = vdwg.mxu0
  %v630 = vpack.c.bf16 %v379, %v376
  %v631 = vpack.c.bf16 %v387, %v384
  %v632 = vpack.c.bf16 %v395, %v392
  %v633 = vpack.c.bf16 %v403, %v400
  %v634 = vpack.c.bf16 %v411, %v408
  %v635 = vpack.c.bf16 %v419, %v416
  %v636 = vpack.c.bf16 %v427, %v424
  %v637 = vpack.c.bf16 %v435, %v432
  %v638 = vpack.c.bf16 %v443, %v440
  %v639 = vpack.c.bf16 %v451, %v448
  %v640 = vpack.c.bf16 %v459, %v456
  %v641 = vpack.c.bf16 %v467, %v464
  %v642 = vpack.c.bf16 %v475, %v472
  %v643 = vpack.c.bf16 %v483, %v480
  %v644 = vpack.c.bf16 %v491, %v488
  %v645 = vpack.c.bf16 %v499, %v496
  %v646 = vpack.c.bf16 %v507, %v504
  %v647 = vpack.c.bf16 %v515, %v512
  %v648 = vpack.c.bf16 %v523, %v520
  %v649 = vpack.c.bf16 %v531, %v528
  %v650 = vpack.c.bf16 %v539, %v536
  %v651 = vpack.c.bf16 %v547, %v544
  %v652 = vpack.c.bf16 %v555, %v552
  %v653 = vpack.c.bf16 %v563, %v560
  %v654 = vpack.c.bf16 %v571, %v568
  %v655 = vpack.c.bf16 %v579, %v576
  %v656 = vpack.c.bf16 %v587, %v584
  %v657 = vpack.c.bf16 %v595, %v592
  %v658 = vpack.c.bf16 %v603, %v600
  %v659 = vpack.c.bf16 %v611, %v608
  %v660 = vpack.c.bf16 %v619, %v616
  %v661 = vpack.c.bf16 %v627, %v624
  %v694 = vunpack.c.l.b16 %v630
  %v695 = vunpack.c.h.b16 %v630
  %v696 = vunpack.c.l.b16 %v631
  %v697 = vunpack.c.h.b16 %v631
  %v698 = vunpack.c.l.b16 %v632
  %v699 = vunpack.c.h.b16 %v632
  %v700 = vunpack.c.l.b16 %v633
  %v701 = vunpack.c.h.b16 %v633
  %v702 = vunpack.c.l.b16 %v634
  %v703 = vunpack.c.h.b16 %v634
  %v704 = vunpack.c.l.b16 %v635
  %v705 = vunpack.c.h.b16 %v635
  %v706 = vunpack.c.l.b16 %v636
  %v707 = vunpack.c.h.b16 %v636
  %v708 = vunpack.c.l.b16 %v637
  %v709 = vunpack.c.h.b16 %v637
  %v710 = vunpack.c.l.b16 %v638
  %v711 = vunpack.c.h.b16 %v638
  %v712 = vunpack.c.l.b16 %v639
  %v713 = vunpack.c.h.b16 %v639
  %v714 = vunpack.c.l.b16 %v640
  %v715 = vunpack.c.h.b16 %v640
  %v716 = vunpack.c.l.b16 %v641
  %v717 = vunpack.c.h.b16 %v641
  %v718 = vunpack.c.l.b16 %v642
  %v719 = vunpack.c.h.b16 %v642
  %v720 = vunpack.c.l.b16 %v643
  %v721 = vunpack.c.h.b16 %v643
  %v722 = vunpack.c.l.b16 %v644
  %v723 = vunpack.c.h.b16 %v644
  %v724 = vunpack.c.l.b16 %v645
  %v725 = vunpack.c.h.b16 %v645
  %v726 = vunpack.c.l.b16 %v646
  %v727 = vunpack.c.h.b16 %v646
  %v728 = vunpack.c.l.b16 %v647
  %v729 = vunpack.c.h.b16 %v647
  %v730 = vunpack.c.l.b16 %v648
  %v731 = vunpack.c.h.b16 %v648
  %v732 = vunpack.c.l.b16 %v649
  %v733 = vunpack.c.h.b16 %v649
  %v734 = vunpack.c.l.b16 %v650
  %v735 = vunpack.c.h.b16 %v650
  %v736 = vunpack.c.l.b16 %v651
  %v737 = vunpack.c.h.b16 %v651
  %v738 = vunpack.c.l.b16 %v652
  %v739 = vunpack.c.h.b16 %v652
  %v740 = vunpack.c.l.b16 %v653
  %v741 = vunpack.c.h.b16 %v653
  %v742 = vunpack.c.l.b16 %v654
  %v743 = vunpack.c.h.b16 %v654
  %v744 = vunpack.c.l.b16 %v655
  %v745 = vunpack.c.h.b16 %v655
  %v746 = vunpack.c.l.b16 %v656
  %v747 = vunpack.c.h.b16 %v656
  %v748 = vunpack.c.l.b16 %v657
  %v749 = vunpack.c.h.b16 %v657
  %v750 = vunpack.c.l.b16 %v658
  %v751 = vunpack.c.h.b16 %v658
  %v752 = vunpack.c.l.b16 %v659
  %v753 = vunpack.c.h.b16 %v659
  %v754 = vunpack.c.l.b16 %v660
  %v755 = vunpack.c.h.b16 %v660
  %v756 = vunpack.c.l.b16 %v661
  %v757 = vunpack.c.h.b16 %v661
  %v758 = vpack.c.b16 %v694, %v694
  %v759 = vpack.c.b16 %v695, %v695
  %v760 = vpack.c.b16 %v696, %v696
  %v761 = vpack.c.b16 %v697, %v697
  %v762 = vpack.c.b16 %v698, %v698
  %v763 = vpack.c.b16 %v699, %v699
  %v764 = vpack.c.b16 %v700, %v700
  %v765 = vpack.c.b16 %v701, %v701
  %v766 = vpack.c.b16 %v702, %v702
  %v767 = vpack.c.b16 %v703, %v703
  %v768 = vpack.c.b16 %v704, %v704
  %v769 = vpack.c.b16 %v705, %v705
  %v770 = vpack.c.b16 %v706, %v706
  %v771 = vpack.c.b16 %v707, %v707
  %v772 = vpack.c.b16 %v708, %v708
  %v773 = vpack.c.b16 %v709, %v709
  %v774 = vpack.c.b16 %v710, %v710
  %v775 = vpack.c.b16 %v711, %v711
  %v776 = vpack.c.b16 %v712, %v712
  %v777 = vpack.c.b16 %v713, %v713
  %v778 = vpack.c.b16 %v714, %v714
  %v779 = vpack.c.b16 %v715, %v715
  %v780 = vpack.c.b16 %v716, %v716
  %v781 = vpack.c.b16 %v717, %v717
  %v782 = vpack.c.b16 %v718, %v718
  %v783 = vpack.c.b16 %v719, %v719
  %v784 = vpack.c.b16 %v720, %v720
  %v785 = vpack.c.b16 %v721, %v721
  %v786 = vpack.c.b16 %v722, %v722
  %v787 = vpack.c.b16 %v723, %v723
  %v788 = vpack.c.b16 %v724, %v724
  %v789 = vpack.c.b16 %v725, %v725
  %v790 = vpack.c.b16 %v726, %v726
  %v791 = vpack.c.b16 %v727, %v727
  %v792 = vpack.c.b16 %v728, %v728
  %v793 = vpack.c.b16 %v729, %v729
  %v794 = vpack.c.b16 %v730, %v730
  %v795 = vpack.c.b16 %v731, %v731
  %v796 = vpack.c.b16 %v732, %v732
  %v797 = vpack.c.b16 %v733, %v733
  %v798 = vpack.c.b16 %v734, %v734
  %v799 = vpack.c.b16 %v735, %v735
  %v800 = vpack.c.b16 %v736, %v736
  %v801 = vpack.c.b16 %v737, %v737
  %v802 = vpack.c.b16 %v738, %v738
  %v803 = vpack.c.b16 %v739, %v739
  %v804 = vpack.c.b16 %v740, %v740
  %v805 = vpack.c.b16 %v741, %v741
  %v806 = vpack.c.b16 %v742, %v742
  %v807 = vpack.c.b16 %v743, %v743
  %v808 = vpack.c.b16 %v744, %v744
  %v809 = vpack.c.b16 %v745, %v745
  %v810 = vpack.c.b16 %v746, %v746
  %v811 = vpack.c.b16 %v747, %v747
  %v812 = vpack.c.b16 %v748, %v748
  %v813 = vpack.c.b16 %v749, %v749
  %v814 = vpack.c.b16 %v750, %v750
  %v815 = vpack.c.b16 %v751, %v751
  %v816 = vpack.c.b16 %v752, %v752
  %v817 = vpack.c.b16 %v753, %v753
  %v818 = vpack.c.b16 %v754, %v754
  %v819 = vpack.c.b16 %v755, %v755
  %v820 = vpack.c.b16 %v756, %v756
  %v821 = vpack.c.b16 %v757, %v757
  %vm886 = vcmask 191488
  %887 = vst.msk [vmem:[%s2] sm:$0xf] %vm886, %v758
  %888 = vst.msk [vmem:[%s2 + $0x4] sm:$0xf] %vm886, %v759
  %889 = vst.msk [vmem:[%s2 + $0x8] sm:$0xf] %vm886, %v760
  %890 = vst.msk [vmem:[%s2 + $0xc] sm:$0xf] %vm886, %v761
  %891 = vst.msk [vmem:[%s2 + $0x10] sm:$0xf] %vm886, %v762
  %892 = vst.msk [vmem:[%s2 + $0x14] sm:$0xf] %vm886, %v763
  %893 = vst.msk [vmem:[%s2 + $0x18] sm:$0xf] %vm886, %v764
  %894 = vst.msk [vmem:[%s2 + $0x1c] sm:$0xf] %vm886, %v765
  %895 = vst.msk [vmem:[%s2 + $0x20] sm:$0xf] %vm886, %v766
  %896 = vst.msk [vmem:[%s2 + $0x24] sm:$0xf] %vm886, %v767
  %897 = vst.msk [vmem:[%s2 + $0x28] sm:$0xf] %vm886, %v768
  %898 = vst.msk [vmem:[%s2 + $0x2c] sm:$0xf] %vm886, %v769
  %899 = vst.msk [vmem:[%s2 + $0x30] sm:$0xf] %vm886, %v770
  %900 = vst.msk [vmem:[%s2 + $0x34] sm:$0xf] %vm886, %v771
  %901 = vst.msk [vmem:[%s2 + $0x38] sm:$0xf] %vm886, %v772
  %902 = vst.msk [vmem:[%s2 + $0x3c] sm:$0xf] %vm886, %v773
  %903 = vst.msk [vmem:[%s2 + $0x40] sm:$0xf] %vm886, %v774
  %904 = vst.msk [vmem:[%s2 + $0x44] sm:$0xf] %vm886, %v775
  %905 = vst.msk [vmem:[%s2 + $0x48] sm:$0xf] %vm886, %v776
  %906 = vst.msk [vmem:[%s2 + $0x4c] sm:$0xf] %vm886, %v777
  %907 = vst.msk [vmem:[%s2 + $0x50] sm:$0xf] %vm886, %v778
  %908 = vst.msk [vmem:[%s2 + $0x54] sm:$0xf] %vm886, %v779
  %909 = vst.msk [vmem:[%s2 + $0x58] sm:$0xf] %vm886, %v780
  %910 = vst.msk [vmem:[%s2 + $0x5c] sm:$0xf] %vm886, %v781
  %911 = vst.msk [vmem:[%s2 + $0x60] sm:$0xf] %vm886, %v782
  %912 = vst.msk [vmem:[%s2 + $0x64] sm:$0xf] %vm886, %v783
  %913 = vst.msk [vmem:[%s2 + $0x68] sm:$0xf] %vm886, %v784
  %914 = vst.msk [vmem:[%s2 + $0x6c] sm:$0xf] %vm886, %v785
  %915 = vst.msk [vmem:[%s2 + $0x70] sm:$0xf] %vm886, %v786
  %916 = vst.msk [vmem:[%s2 + $0x74] sm:$0xf] %vm886, %v787
  %917 = vst.msk [vmem:[%s2 + $0x78] sm:$0xf] %vm886, %v788
  %918 = vst.msk [vmem:[%s2 + $0x7c] sm:$0xf] %vm886, %v789
  %919 = vst.msk [vmem:[%s2 + $0x80] sm:$0xf] %vm886, %v790
  %920 = vst.msk [vmem:[%s2 + $0x84] sm:$0xf] %vm886, %v791
  %921 = vst.msk [vmem:[%s2 + $0x88] sm:$0xf] %vm886, %v792
  %922 = vst.msk [vmem:[%s2 + $0x8c] sm:$0xf] %vm886, %v793
  %923 = vst.msk [vmem:[%s2 + $0x90] sm:$0xf] %vm886, %v794
  %924 = vst.msk [vmem:[%s2 + $0x94] sm:$0xf] %vm886, %v795
  %925 = vst.msk [vmem:[%s2 + $0x98] sm:$0xf] %vm886, %v796
  %926 = vst.msk [vmem:[%s2 + $0x9c] sm:$0xf] %vm886, %v797
  %927 = vst.msk [vmem:[%s2 + $0xa0] sm:$0xf] %vm886, %v798
  %928 = vst.msk [vmem:[%s2 + $0xa4] sm:$0xf] %vm886, %v799
  %929 = vst.msk [vmem:[%s2 + $0xa8] sm:$0xf] %vm886, %v800
  %930 = vst.msk [vmem:[%s2 + $0xac] sm:$0xf] %vm886, %v801
  %931 = vst.msk [vmem:[%s2 + $0xb0] sm:$0xf] %vm886, %v802
  %932 = vst.msk [vmem:[%s2 + $0xb4] sm:$0xf] %vm886, %v803
  %933 = vst.msk [vmem:[%s2 + $0xb8] sm:$0xf] %vm886, %v804
  %934 = vst.msk [vmem:[%s2 + $0xbc] sm:$0xf] %vm886, %v805
  %935 = vst.msk [vmem:[%s2 + $0xc0] sm:$0xf] %vm886, %v806
  %936 = vst.msk [vmem:[%s2 + $0xc4] sm:$0xf] %vm886, %v807
  %937 = vst.msk [vmem:[%s2 + $0xc8] sm:$0xf] %vm886, %v808
  %938 = vst.msk [vmem:[%s2 + $0xcc] sm:$0xf] %vm886, %v809
  %939 = vst.msk [vmem:[%s2 + $0xd0] sm:$0xf] %vm886, %v810
  %940 = vst.msk [vmem:[%s2 + $0xd4] sm:$0xf] %vm886, %v811
  %941 = vst.msk [vmem:[%s2 + $0xd8] sm:$0xf] %vm886, %v812
  %942 = vst.msk [vmem:[%s2 + $0xdc] sm:$0xf] %vm886, %v813
  %943 = vst.msk [vmem:[%s2 + $0xe0] sm:$0xf] %vm886, %v814
  %944 = vst.msk [vmem:[%s2 + $0xe4] sm:$0xf] %vm886, %v815
  %945 = vst.msk [vmem:[%s2 + $0xe8] sm:$0xf] %vm886, %v816
  %946 = vst.msk [vmem:[%s2 + $0xec] sm:$0xf] %vm886, %v817
  %947 = vst.msk [vmem:[%s2 + $0xf0] sm:$0xf] %vm886, %v818
  %948 = vst.msk [vmem:[%s2 + $0xf4] sm:$0xf] %vm886, %v819
  %949 = vst.msk [vmem:[%s2 + $0xf8] sm:$0xf] %vm886, %v820
  %950 = vst.msk [vmem:[%s2 + $0xfc] sm:$0xf] %vm886, %v821
  %vm951 = vcmask 195584
  %v952 = vsel %vm951, %v376, 0.0
  %v953 = vsel %vm951, %v379, 0.0
  %v954 = vadd.f32 %v952, %v953
  %v955 = vsel %vm951, %v384, 0.0
  %v956 = vadd.f32 %v954, %v955
  %v957 = vsel %vm951, %v387, 0.0
  %v958 = vadd.f32 %v956, %v957
  %v959 = vsel %vm951, %v392, 0.0
  %v960 = vadd.f32 %v958, %v959
  %v961 = vsel %vm951, %v395, 0.0
  %v962 = vadd.f32 %v960, %v961
  %v963 = vsel %vm951, %v400, 0.0
  %v964 = vadd.f32 %v962, %v963
  %v965 = vsel %vm951, %v403, 0.0
  %v966 = vadd.f32 %v964, %v965
  %v967 = vsel %vm951, %v408, 0.0
  %v968 = vadd.f32 %v966, %v967
  %v969 = vsel %vm951, %v411, 0.0
  %v970 = vadd.f32 %v968, %v969
  %v971 = vsel %vm951, %v416, 0.0
  %v972 = vadd.f32 %v970, %v971
  %v973 = vsel %vm951, %v419, 0.0
  %v974 = vadd.f32 %v972, %v973
  %v975 = vsel %vm951, %v424, 0.0
  %v976 = vadd.f32 %v974, %v975
  %v977 = vsel %vm951, %v427, 0.0
  %v978 = vadd.f32 %v976, %v977
  %v979 = vsel %vm951, %v432, 0.0
  %v980 = vadd.f32 %v978, %v979
  %v981 = vsel %vm951, %v435, 0.0
  %v982 = vadd.f32 %v980, %v981
  %v983 = vsel %vm951, %v440, 0.0
  %v984 = vadd.f32 %v982, %v983
  %v985 = vsel %vm951, %v443, 0.0
  %v986 = vadd.f32 %v984, %v985
  %v987 = vsel %vm951, %v448, 0.0
  %v988 = vadd.f32 %v986, %v987
  %v989 = vsel %vm951, %v451, 0.0
  %v990 = vadd.f32 %v988, %v989
  %v991 = vsel %vm951, %v456, 0.0
  %v992 = vadd.f32 %v990, %v991
  %v993 = vsel %vm951, %v459, 0.0
  %v994 = vadd.f32 %v992, %v993
  %v995 = vsel %vm951, %v464, 0.0
  %v996 = vadd.f32 %v994, %v995
  %v997 = vsel %vm951, %v467, 0.0
  %v998 = vadd.f32 %v996, %v997
  %v999 = vsel %vm951, %v472, 0.0
  %v1000 = vadd.f32 %v998, %v999
  %v1001 = vsel %vm951, %v475, 0.0
  %v1002 = vadd.f32 %v1000, %v1001
  %v1003 = vsel %vm951, %v480, 0.0
  %v1004 = vadd.f32 %v1002, %v1003
  %v1005 = vsel %vm951, %v483, 0.0
  %v1006 = vadd.f32 %v1004, %v1005
  %v1007 = vsel %vm951, %v488, 0.0
  %v1008 = vadd.f32 %v1006, %v1007
  %v1009 = vsel %vm951, %v491, 0.0
  %v1010 = vadd.f32 %v1008, %v1009
  %v1011 = vsel %vm951, %v496, 0.0
  %v1012 = vadd.f32 %v1010, %v1011
  %v1013 = vsel %vm951, %v499, 0.0
  %v1014 = vadd.f32 %v1012, %v1013
  %v1015 = vsel %vm951, %v504, 0.0
  %v1016 = vadd.f32 %v1014, %v1015
  %v1017 = vsel %vm951, %v507, 0.0
  %v1018 = vadd.f32 %v1016, %v1017
  %v1019 = vsel %vm951, %v512, 0.0
  %v1020 = vadd.f32 %v1018, %v1019
  %v1021 = vsel %vm951, %v515, 0.0
  %v1022 = vadd.f32 %v1020, %v1021
  %v1023 = vsel %vm951, %v520, 0.0
  %v1024 = vadd.f32 %v1022, %v1023
  %v1025 = vsel %vm951, %v523, 0.0
  %v1026 = vadd.f32 %v1024, %v1025
  %v1027 = vsel %vm951, %v528, 0.0
  %v1028 = vadd.f32 %v1026, %v1027
  %v1029 = vsel %vm951, %v531, 0.0
  %v1030 = vadd.f32 %v1028, %v1029
  %v1031 = vsel %vm951, %v536, 0.0
  %v1032 = vadd.f32 %v1030, %v1031
  %v1033 = vsel %vm951, %v539, 0.0
  %v1034 = vadd.f32 %v1032, %v1033
  %v1035 = vsel %vm951, %v544, 0.0
  %v1036 = vadd.f32 %v1034, %v1035
  %v1037 = vsel %vm951, %v547, 0.0
  %v1038 = vadd.f32 %v1036, %v1037
  %v1039 = vsel %vm951, %v552, 0.0
  %v1040 = vadd.f32 %v1038, %v1039
  %v1041 = vsel %vm951, %v555, 0.0
  %v1042 = vadd.f32 %v1040, %v1041
  %v1043 = vsel %vm951, %v560, 0.0
  %v1044 = vadd.f32 %v1042, %v1043
  %v1045 = vsel %vm951, %v563, 0.0
  %v1046 = vadd.f32 %v1044, %v1045
  %v1047 = vsel %vm951, %v568, 0.0
  %v1048 = vadd.f32 %v1046, %v1047
  %v1049 = vsel %vm951, %v571, 0.0
  %v1050 = vadd.f32 %v1048, %v1049
  %v1051 = vsel %vm951, %v576, 0.0
  %v1052 = vadd.f32 %v1050, %v1051
  %v1053 = vsel %vm951, %v579, 0.0
  %v1054 = vadd.f32 %v1052, %v1053
  %v1055 = vsel %vm951, %v584, 0.0
  %v1056 = vadd.f32 %v1054, %v1055
  %v1057 = vsel %vm951, %v587, 0.0
  %v1058 = vadd.f32 %v1056, %v1057
  %v1059 = vsel %vm951, %v592, 0.0
  %v1060 = vadd.f32 %v1058, %v1059
  %v1061 = vsel %vm951, %v595, 0.0
  %v1062 = vadd.f32 %v1060, %v1061
  %v1063 = vsel %vm951, %v600, 0.0
  %v1064 = vadd.f32 %v1062, %v1063
  %v1065 = vsel %vm951, %v603, 0.0
  %v1066 = vadd.f32 %v1064, %v1065
  %v1067 = vsel %vm951, %v608, 0.0
  %v1068 = vadd.f32 %v1066, %v1067
  %v1069 = vsel %vm951, %v611, 0.0
  %v1070 = vadd.f32 %v1068, %v1069
  %v1071 = vsel %vm951, %v616, 0.0
  %v1072 = vadd.f32 %v1070, %v1071
  %v1073 = vsel %vm951, %v619, 0.0
  %v1074 = vadd.f32 %v1072, %v1073
  %v1075 = vsel %vm951, %v624, 0.0
  %v1076 = vadd.f32 %v1074, %v1075
  %v1077 = vsel %vm951, %v627, 0.0
  %v1078 = vadd.f32 %v1076, %v1077
  %v1079 = vrot.slane %v1078, 4
  %v1080 = vadd.f32 %v1078, %v1079
  %v1081 = vrot.slane %v1080, 2
  %v1082 = vadd.f32 %v1080, %v1081
  %v1083 = vrot.slane %v1082, 1
  %v1084 = vadd.f32 %v1082, %v1083
  %vm1085 = vcmask 188416
  %1086 = vst.msk [vmem:[%s3] sm:$0x1] %vm1085, %v1084
  %v1087 = vmul.f32 %v376, %v376
  %v1088 = vmul.f32 %v379, %v379
  %v1089 = vmul.f32 %v384, %v384
  %v1090 = vmul.f32 %v387, %v387
  %v1091 = vmul.f32 %v392, %v392
  %v1092 = vmul.f32 %v395, %v395
  %v1093 = vmul.f32 %v400, %v400
  %v1094 = vmul.f32 %v403, %v403
  %v1095 = vmul.f32 %v408, %v408
  %v1096 = vmul.f32 %v411, %v411
  %v1097 = vmul.f32 %v416, %v416
  %v1098 = vmul.f32 %v419, %v419
  %v1099 = vmul.f32 %v424, %v424
  %v1100 = vmul.f32 %v427, %v427
  %v1101 = vmul.f32 %v432, %v432
  %v1102 = vmul.f32 %v435, %v435
  %v1103 = vmul.f32 %v440, %v440
  %v1104 = vmul.f32 %v443, %v443
  %v1105 = vmul.f32 %v448, %v448
  %v1106 = vmul.f32 %v451, %v451
  %v1107 = vmul.f32 %v456, %v456
  %v1108 = vmul.f32 %v459, %v459
  %v1109 = vmul.f32 %v464, %v464
  %v1110 = vmul.f32 %v467, %v467
  %v1111 = vmul.f32 %v472, %v472
  %v1112 = vmul.f32 %v475, %v475
  %v1113 = vmul.f32 %v480, %v480
  %v1114 = vmul.f32 %v483, %v483
  %v1115 = vmul.f32 %v488, %v488
  %v1116 = vmul.f32 %v491, %v491
  %v1117 = vmul.f32 %v496, %v496
  %v1118 = vmul.f32 %v499, %v499
  %v1119 = vmul.f32 %v504, %v504
  %v1120 = vmul.f32 %v507, %v507
  %v1121 = vmul.f32 %v512, %v512
  %v1122 = vmul.f32 %v515, %v515
  %v1123 = vmul.f32 %v520, %v520
  %v1124 = vmul.f32 %v523, %v523
  %v1125 = vmul.f32 %v528, %v528
  %v1126 = vmul.f32 %v531, %v531
  %v1127 = vmul.f32 %v536, %v536
  %v1128 = vmul.f32 %v539, %v539
  %v1129 = vmul.f32 %v544, %v544
  %v1130 = vmul.f32 %v547, %v547
  %v1131 = vmul.f32 %v552, %v552
  %v1132 = vmul.f32 %v555, %v555
  %v1133 = vmul.f32 %v560, %v560
  %v1134 = vmul.f32 %v563, %v563
  %v1135 = vmul.f32 %v568, %v568
  %v1136 = vmul.f32 %v571, %v571
  %v1137 = vmul.f32 %v576, %v576
  %v1138 = vmul.f32 %v579, %v579
  %v1139 = vmul.f32 %v584, %v584
  %v1140 = vmul.f32 %v587, %v587
  %v1141 = vmul.f32 %v592, %v592
  %v1142 = vmul.f32 %v595, %v595
  %v1143 = vmul.f32 %v600, %v600
  %v1144 = vmul.f32 %v603, %v603
  %v1145 = vmul.f32 %v608, %v608
  %v1146 = vmul.f32 %v611, %v611
  %v1147 = vmul.f32 %v616, %v616
  %v1148 = vmul.f32 %v619, %v619
  %v1149 = vmul.f32 %v624, %v624
  %v1150 = vmul.f32 %v627, %v627
  %v1151 = vsel %vm951, %v1087, 0.0
  %v1152 = vsel %vm951, %v1088, 0.0
  %v1153 = vadd.f32 %v1151, %v1152
  %v1154 = vsel %vm951, %v1089, 0.0
  %v1155 = vadd.f32 %v1153, %v1154
  %v1156 = vsel %vm951, %v1090, 0.0
  %v1157 = vadd.f32 %v1155, %v1156
  %v1158 = vsel %vm951, %v1091, 0.0
  %v1159 = vadd.f32 %v1157, %v1158
  %v1160 = vsel %vm951, %v1092, 0.0
  %v1161 = vadd.f32 %v1159, %v1160
  %v1162 = vsel %vm951, %v1093, 0.0
  %v1163 = vadd.f32 %v1161, %v1162
  %v1164 = vsel %vm951, %v1094, 0.0
  %v1165 = vadd.f32 %v1163, %v1164
  %v1166 = vsel %vm951, %v1095, 0.0
  %v1167 = vadd.f32 %v1165, %v1166
  %v1168 = vsel %vm951, %v1096, 0.0
  %v1169 = vadd.f32 %v1167, %v1168
  %v1170 = vsel %vm951, %v1097, 0.0
  %v1171 = vadd.f32 %v1169, %v1170
  %v1172 = vsel %vm951, %v1098, 0.0
  %v1173 = vadd.f32 %v1171, %v1172
  %v1174 = vsel %vm951, %v1099, 0.0
  %v1175 = vadd.f32 %v1173, %v1174
  %v1176 = vsel %vm951, %v1100, 0.0
  %v1177 = vadd.f32 %v1175, %v1176
  %v1178 = vsel %vm951, %v1101, 0.0
  %v1179 = vadd.f32 %v1177, %v1178
  %v1180 = vsel %vm951, %v1102, 0.0
  %v1181 = vadd.f32 %v1179, %v1180
  %v1182 = vsel %vm951, %v1103, 0.0
  %v1183 = vadd.f32 %v1181, %v1182
  %v1184 = vsel %vm951, %v1104, 0.0
  %v1185 = vadd.f32 %v1183, %v1184
  %v1186 = vsel %vm951, %v1105, 0.0
  %v1187 = vadd.f32 %v1185, %v1186
  %v1188 = vsel %vm951, %v1106, 0.0
  %v1189 = vadd.f32 %v1187, %v1188
  %v1190 = vsel %vm951, %v1107, 0.0
  %v1191 = vadd.f32 %v1189, %v1190
  %v1192 = vsel %vm951, %v1108, 0.0
  %v1193 = vadd.f32 %v1191, %v1192
  %v1194 = vsel %vm951, %v1109, 0.0
  %v1195 = vadd.f32 %v1193, %v1194
  %v1196 = vsel %vm951, %v1110, 0.0
  %v1197 = vadd.f32 %v1195, %v1196
  %v1198 = vsel %vm951, %v1111, 0.0
  %v1199 = vadd.f32 %v1197, %v1198
  %v1200 = vsel %vm951, %v1112, 0.0
  %v1201 = vadd.f32 %v1199, %v1200
  %v1202 = vsel %vm951, %v1113, 0.0
  %v1203 = vadd.f32 %v1201, %v1202
  %v1204 = vsel %vm951, %v1114, 0.0
  %v1205 = vadd.f32 %v1203, %v1204
  %v1206 = vsel %vm951, %v1115, 0.0
  %v1207 = vadd.f32 %v1205, %v1206
  %v1208 = vsel %vm951, %v1116, 0.0
  %v1209 = vadd.f32 %v1207, %v1208
  %v1210 = vsel %vm951, %v1117, 0.0
  %v1211 = vadd.f32 %v1209, %v1210
  %v1212 = vsel %vm951, %v1118, 0.0
  %v1213 = vadd.f32 %v1211, %v1212
  %v1214 = vsel %vm951, %v1119, 0.0
  %v1215 = vadd.f32 %v1213, %v1214
  %v1216 = vsel %vm951, %v1120, 0.0
  %v1217 = vadd.f32 %v1215, %v1216
  %v1218 = vsel %vm951, %v1121, 0.0
  %v1219 = vadd.f32 %v1217, %v1218
  %v1220 = vsel %vm951, %v1122, 0.0
  %v1221 = vadd.f32 %v1219, %v1220
  %v1222 = vsel %vm951, %v1123, 0.0
  %v1223 = vadd.f32 %v1221, %v1222
  %v1224 = vsel %vm951, %v1124, 0.0
  %v1225 = vadd.f32 %v1223, %v1224
  %v1226 = vsel %vm951, %v1125, 0.0
  %v1227 = vadd.f32 %v1225, %v1226
  %v1228 = vsel %vm951, %v1126, 0.0
  %v1229 = vadd.f32 %v1227, %v1228
  %v1230 = vsel %vm951, %v1127, 0.0
  %v1231 = vadd.f32 %v1229, %v1230
  %v1232 = vsel %vm951, %v1128, 0.0
  %v1233 = vadd.f32 %v1231, %v1232
  %v1234 = vsel %vm951, %v1129, 0.0
  %v1235 = vadd.f32 %v1233, %v1234
  %v1236 = vsel %vm951, %v1130, 0.0
  %v1237 = vadd.f32 %v1235, %v1236
  %v1238 = vsel %vm951, %v1131, 0.0
  %v1239 = vadd.f32 %v1237, %v1238
  %v1240 = vsel %vm951, %v1132, 0.0
  %v1241 = vadd.f32 %v1239, %v1240
  %v1242 = vsel %vm951, %v1133, 0.0
  %v1243 = vadd.f32 %v1241, %v1242
  %v1244 = vsel %vm951, %v1134, 0.0
  %v1245 = vadd.f32 %v1243, %v1244
  %v1246 = vsel %vm951, %v1135, 0.0
  %v1247 = vadd.f32 %v1245, %v1246
  %v1248 = vsel %vm951, %v1136, 0.0
  %v1249 = vadd.f32 %v1247, %v1248
  %v1250 = vsel %vm951, %v1137, 0.0
  %v1251 = vadd.f32 %v1249, %v1250
  %v1252 = vsel %vm951, %v1138, 0.0
  %v1253 = vadd.f32 %v1251, %v1252
  %v1254 = vsel %vm951, %v1139, 0.0
  %v1255 = vadd.f32 %v1253, %v1254
  %v1256 = vsel %vm951, %v1140, 0.0
  %v1257 = vadd.f32 %v1255, %v1256
  %v1258 = vsel %vm951, %v1141, 0.0
  %v1259 = vadd.f32 %v1257, %v1258
  %v1260 = vsel %vm951, %v1142, 0.0
  %v1261 = vadd.f32 %v1259, %v1260
  %v1262 = vsel %vm951, %v1143, 0.0
  %v1263 = vadd.f32 %v1261, %v1262
  %v1264 = vsel %vm951, %v1144, 0.0
  %v1265 = vadd.f32 %v1263, %v1264
  %v1266 = vsel %vm951, %v1145, 0.0
  %v1267 = vadd.f32 %v1265, %v1266
  %v1268 = vsel %vm951, %v1146, 0.0
  %v1269 = vadd.f32 %v1267, %v1268
  %v1270 = vsel %vm951, %v1147, 0.0
  %v1271 = vadd.f32 %v1269, %v1270
  %v1272 = vsel %vm951, %v1148, 0.0
  %v1273 = vadd.f32 %v1271, %v1272
  %v1274 = vsel %vm951, %v1149, 0.0
  %v1275 = vadd.f32 %v1273, %v1274
  %v1276 = vsel %vm951, %v1150, 0.0
  %v1277 = vadd.f32 %v1275, %v1276
  %v1278 = vrot.slane %v1277, 4
  %v1279 = vadd.f32 %v1277, %v1278
  %v1280 = vrot.slane %v1279, 2
  %v1281 = vadd.f32 %v1279, %v1280
  %v1282 = vrot.slane %v1281, 1
  %v1283 = vadd.f32 %v1281, %v1282
  %1284 = vst.msk [vmem:[%s4] sm:$0x1] %vm1085, %v1283
  // Predicated region
  $region10: #{mobilenet_v2_conv2d.4} parent=0 // pred_check
    _
  $region11: #{mobilenet_v2_conv2d.4} parent=0 // pred_check_branch
    %1286 = sbr.rel (0) target = $region13
  $region12: #{mobilenet_v2_conv2d.4} parent=0 // pred_region
    _
  $region13: #{mobilenet_v2_conv2d.4} parent=0 // pred_fallthru
    _
  // Predicated region
  $region14: #{mobilenet_v2_conv2d.4} parent=0 // pred_check
    _
  $region15: #{mobilenet_v2_conv2d.4} parent=0 // pred_check_branch
    %1288 = sbr.rel (0) target = $region17
  $region16: #{mobilenet_v2_conv2d.4} parent=0 // pred_region
    _
  $region17: #{mobilenet_v2_conv2d.4} parent=0 // pred_fallthru
    _
  // Predicated region
  $region18: #{mobilenet_v2_conv2d.4} parent=0 // pred_check
    _
  $region19: #{mobilenet_v2_conv2d.4} parent=0 // pred_check_branch
    %1290 = sbr.rel (0) target = $region21
  $region20: #{mobilenet_v2_conv2d.4} parent=0 // pred_region
    _
  $region21: #{mobilenet_v2_conv2d.4} parent=0 // pred_fallthru
    _
  // Predicated region
  $region22: #{mobilenet_v2_conv2d.4} parent=0 // pred_check
    _
  $region23: #{mobilenet_v2_conv2d.4} parent=0 // pred_check_branch
    %1292 = sbr.rel (0) target = $region25
  $region24: #{mobilenet_v2_conv2d.4} parent=0 // pred_region
    _
  $region25: #{mobilenet_v2_conv2d.4} parent=0 // pred_fallthru
    _
  // Predicated region
  $region26: #{mobilenet_v2_conv2d.4} parent=0 // pred_check
    _
  $region27: #{mobilenet_v2_conv2d.4} parent=0 // pred_check_branch
    %1294 = sbr.rel (0) target = $region29
  $region28: #{mobilenet_v2_conv2d.4} parent=0 // pred_region
    _
  $region29: #{mobilenet_v2_conv2d.4} parent=0 // pred_fallthru
    _
  // Predicated region
  $region30: #{mobilenet_v2_conv2d.4} parent=0 // pred_check
    _
  $region31: #{mobilenet_v2_conv2d.4} parent=0 // pred_check_branch
    %1296 = sbr.rel (0) target = $region33
  $region32: #{mobilenet_v2_conv2d.4} parent=0 // pred_region
    _
  $region33: #{mobilenet_v2_conv2d.4} parent=0 // pred_fallthru
    _

// kernel: mobilenet_v2_conv2d.5
$region0: #{mobilenet_v2_conv2d.5}
  #allocation0 [shape = 'u32[]', space=smem, size = 0x4, offset = 0x4, fixed_abs, tag = 'smem constant byte address 0x4 - core index']
  #allocation1 [shape = 'u32[144,128]{1,0:T(1,128)}', space=vmem, size = 0x12000, scoped, tag = 'internal scratch']
  #allocation2 [shape = 'f32[18,18,24]{2,1,0:T(8,128)}', space=vmem, size = 0x36000, scoped, tag = 'scratch operand']
  %s0 = inlined_call_operand.vmem [shape: bf16[2,16,16,24], index: 0, kind: input, shape index: {}]
  %s1 = inlined_call_operand.vmem [shape: f32[1,24], index: 1, kind: input, shape index: {}]
  %s2 = inlined_call_operand.vmem [shape: f32[1,24], index: 2, kind: input, shape index: {}]
  %s3 = inlined_call_operand.vmem [shape: f32[9,24], index: 3, kind: input, shape index: {}]
  %s4 = inlined_call_operand.vmem [shape: bf16[2,16,16,24], index: 4, kind: output, shape index: {0}]
  %s5 = inlined_call_operand.vmem [shape: f32[2,1,24], index: 5, kind: output, shape index: {1}]
  %s6 = inlined_call_operand.vmem [shape: f32[2,1,24], index: 6, kind: output, shape index: {2}]
  %7 = xla_tuple %s4, %s5, %s6
  %s8 = sld [smem:[#allocation0]]
  $region69: #{mobilenet_v2_conv2d.5} parent=0
    _
  %s10 = ssub.s32 1, %s8
  %s11 = scalar_select 0, %s10, %s8
  loop: start=0, step=1, limit=4
  $region2: #{mobilenet_v2_conv2d.5} parent=0 // loop_pre_header
    _
  $region3: #{mobilenet_v2_conv2d.5} parent=0 // loop_header
    %s13 = sphi 0, %s17
    %p14 = scmp.ge.s32.totalorder %s13, 4
    %s23 = sphi 0, %s25
    %s26 = sphi 0, %s23
    %s27 = sphi 0, %s26
    %s43 = sphi 0, %s27
    %s47 = sphi 0, %s47
    %s49 = sphi 0, %s47
    %s50 = sphi 0, %s49
    %s64 = sphi 0, %s50
    %s68 = sphi 0, %s68
    %s70 = sphi 0, %s68
    %s71 = sphi 0, %s70
    %s85 = sphi 0, %s71
    %s89 = sphi 0, %s89
    %s91 = sphi 0, %s89
    %s92 = sphi 0, %s91
    %s106 = sphi 0, %s92
    %s112 = sphi 0, %s114
    %s115 = sphi 0, %s112
    %s116 = sphi 0, %s115
    %s132 = sphi 0, %s116
    %s138 = sphi 0, %s140
    %s141 = sphi 0, %s138
    %s142 = sphi 0, %s141
    %s158 = sphi 0, %s142
    %s164 = sphi 0, %s166
    %s167 = sphi 0, %s164
    %s168 = sphi 0, %s167
    %s184 = sphi 0, %s168
  $region4: #{mobilenet_v2_conv2d.5} parent=0 // loop_header_branch
    %16 = sbr.rel (%p14) target = $region8
  $region5: #{mobilenet_v2_conv2d.5} parent=0 // loop_body
    %s18 = ssub.s32 %s13, 1
    %s19 = ssub.s32 %s13, 2
    %s20 = sadd.s32 %s13, 1
    %s21 = ssub.s32 %s13, %s20
    %p22 = scmp.eq.s32.totalorder %s21, 0
    %s24 = sadd.s32 %s23, 1
    %s25 = scalar_select %p22, %s23, %s24
    %p28 = pneg %p22
    %p29 = scmp.eq.s32.totalorder %s13, 1
    %p30 = por %p28, %p29
    %p31 = scmp.ne.s32.totalorder %s23, %s26
    %p32 = scmp.eq.s32.totalorder %s13, 0
    %p33 = por %p31, %p32
    %p34 = scmp.ne.s32.totalorder %s23, %s26
    %p35 = scmp.eq.s32.totalorder %s18, 1
    %p36 = por %p34, %p35
    %p37 = scmp.ne.s32.totalorder %s26, %s27
    %p38 = scmp.eq.s32.totalorder %s18, 0
    %p39 = por %p37, %p38
    %p40 = scmp.ne.s32.totalorder %s26, %s27
    %p41 = scmp.eq.s32.totalorder %s19, 1
    %p42 = por %p40, %p41
    %p44 = scmp.ne.s32.totalorder %s27, %s43
    %p45 = scmp.eq.s32.totalorder %s19, 0
    %p46 = por %p44, %p45
    %s48 = sadd.s32 %s47, 1
    %p51 = scmp.eq.s32.totalorder %s13, 1
    %p52 = scmp.ne.s32.totalorder %s47, %s49
    %p53 = scmp.eq.s32.totalorder %s13, 0
    %p54 = por %p52, %p53
    %p55 = scmp.ne.s32.totalorder %s47, %s49
    %p56 = scmp.eq.s32.totalorder %s18, 1
    %p57 = por %p55, %p56
    %p58 = scmp.ne.s32.totalorder %s49, %s50
    %p59 = scmp.eq.s32.totalorder %s18, 0
    %p60 = por %p58, %p59
    %p61 = scmp.ne.s32.totalorder %s49, %s50
    %p62 = scmp.eq.s32.totalorder %s19, 1
    %p63 = por %p61, %p62
    %p65 = scmp.ne.s32.totalorder %s50, %s64
    %p66 = scmp.eq.s32.totalorder %s19, 0
    %p67 = por %p65, %p66
    %s69 = sadd.s32 %s68, 1
    %p72 = scmp.eq.s32.totalorder %s13, 1
    %p73 = scmp.ne.s32.totalorder %s68, %s70
    %p74 = scmp.eq.s32.totalorder %s13, 0
    %p75 = por %p73, %p74
    %p76 = scmp.ne.s32.totalorder %s68, %s70
    %p77 = scmp.eq.s32.totalorder %s18, 1
    %p78 = por %p76, %p77
    %p79 = scmp.ne.s32.totalorder %s70, %s71
    %p80 = scmp.eq.s32.totalorder %s18, 0
    %p81 = por %p79, %p80
    %p82 = scmp.ne.s32.totalorder %s70, %s71
    %p83 = scmp.eq.s32.totalorder %s19, 1
    %p84 = por %p82, %p83
    %p86 = scmp.ne.s32.totalorder %s71, %s85
    %p87 = scmp.eq.s32.totalorder %s19, 0
    %p88 = por %p86, %p87
    %s90 = sadd.s32 %s89, 1
    %p93 = scmp.eq.s32.totalorder %s13, 1
    %p94 = scmp.ne.s32.totalorder %s89, %s91
    %p95 = scmp.eq.s32.totalorder %s13, 0
    %p96 = por %p94, %p95
    %p97 = scmp.ne.s32.totalorder %s89, %s91
    %p98 = scmp.eq.s32.totalorder %s18, 1
    %p99 = por %p97, %p98
    %p100 = scmp.ne.s32.totalorder %s91, %s92
    %p101 = scmp.eq.s32.totalorder %s18, 0
    %p102 = por %p100, %p101
    %p103 = scmp.ne.s32.totalorder %s91, %s92
    %p104 = scmp.eq.s32.totalorder %s19, 1
    %p105 = por %p103, %p104
    %p107 = scmp.ne.s32.totalorder %s92, %s106
    %p108 = scmp.eq.s32.totalorder %s19, 0
    %p109 = por %p107, %p108
    %s110 = ssub.s32 %s13, %s20
    %p111 = scmp.eq.s32.totalorder %s110, 0
    %s113 = sadd.s32 %s112, 1
    %s114 = scalar_select %p111, %s112, %s113
    %p117 = pneg %p111
    %p118 = scmp.eq.s32.totalorder %s13, 1
    %p119 = por %p117, %p118
    %p120 = scmp.ne.s32.totalorder %s112, %s115
    %p121 = scmp.eq.s32.totalorder %s13, 0
    %p122 = por %p120, %p121
    %p123 = scmp.ne.s32.totalorder %s112, %s115
    %p124 = scmp.eq.s32.totalorder %s18, 1
    %p125 = por %p123, %p124
    %p126 = scmp.ne.s32.totalorder %s115, %s116
    %p127 = scmp.eq.s32.totalorder %s18, 0
    %p128 = por %p126, %p127
    %p129 = scmp.ne.s32.totalorder %s115, %s116
    %p130 = scmp.eq.s32.totalorder %s19, 1
    %p131 = por %p129, %p130
    %p133 = scmp.ne.s32.totalorder %s116, %s132
    %p134 = scmp.eq.s32.totalorder %s19, 0
    %p135 = por %p133, %p134
    %s136 = ssub.s32 %s13, %s20
    %p137 = scmp.eq.s32.totalorder %s136, 0
    %s139 = sadd.s32 %s138, 1
    %s140 = scalar_select %p137, %s138, %s139
    %p143 = pneg %p137
    %p144 = scmp.eq.s32.totalorder %s13, 1
    %p145 = por %p143, %p144
    %p146 = scmp.ne.s32.totalorder %s138, %s141
    %p147 = scmp.eq.s32.totalorder %s13, 0
    %p148 = por %p146, %p147
    %p149 = scmp.ne.s32.totalorder %s138, %s141
    %p150 = scmp.eq.s32.totalorder %s18, 1
    %p151 = por %p149, %p150
    %p152 = scmp.ne.s32.totalorder %s141, %s142
    %p153 = scmp.eq.s32.totalorder %s18, 0
    %p154 = por %p152, %p153
    %p155 = scmp.ne.s32.totalorder %s141, %s142
    %p156 = scmp.eq.s32.totalorder %s19, 1
    %p157 = por %p155, %p156
    %p159 = scmp.ne.s32.totalorder %s142, %s158
    %p160 = scmp.eq.s32.totalorder %s19, 0
    %p161 = por %p159, %p160
    %s162 = ssub.s32 %s13, %s20
    %p163 = scmp.eq.s32.totalorder %s162, 0
    %s165 = sadd.s32 %s164, 1
    %s166 = scalar_select %p163, %s164, %s165
    %p169 = pneg %p163
    %p170 = scmp.eq.s32.totalorder %s13, 1
    %p171 = por %p169, %p170
    %p172 = scmp.ne.s32.totalorder %s164, %s167
    %p173 = scmp.eq.s32.totalorder %s13, 0
    %p174 = por %p172, %p173
    %p175 = scmp.ne.s32.totalorder %s164, %s167
    %p176 = scmp.eq.s32.totalorder %s18, 1
    %p177 = por %p175, %p176
    %p178 = scmp.ne.s32.totalorder %s167, %s168
    %p179 = scmp.eq.s32.totalorder %s18, 0
    %p180 = por %p178, %p179
    %p181 = scmp.ne.s32.totalorder %s167, %s168
    %p182 = scmp.eq.s32.totalorder %s19, 1
    %p183 = por %p181, %p182
    %p185 = scmp.ne.s32.totalorder %s168, %s184
    %p186 = scmp.eq.s32.totalorder %s19, 0
    %p187 = por %p185, %p186
    %p188 = scmp.le.s32.totalorder 1, %s13
    %p189 = scmp.lt.s32.totalorder %s13, 3
    %p190 = pnand %p188, %p189
    %p191 = pneg %p190
    // Predicated region
    $region9: #{mobilenet_v2_conv2d.5} parent=5 // pred_check
      _
    $region10: #{mobilenet_v2_conv2d.5} parent=5 // pred_check_branch
      %193 = sbr.rel (%p190) target = $region12
    $region11: #{mobilenet_v2_conv2d.5} parent=5 // pred_region
      %s194 = ssub.s32 %s13, 1
      // Predicated region
      $region13: #{mobilenet_v2_conv2d.5} parent=11 // pred_check
        %p195 = pneg %p60
      $region14: #{mobilenet_v2_conv2d.5} parent=11 // pred_check_branch
        %197 = sbr.rel (%p195) target = $region16
      $region15: #{mobilenet_v2_conv2d.5} parent=11 // pred_region
        _
      $region16: #{mobilenet_v2_conv2d.5} parent=11 // pred_fallthru
        _
      // Predicated region
      $region17: #{mobilenet_v2_conv2d.5} parent=11 // pred_check
        %p198 = pneg %p81
      $region18: #{mobilenet_v2_conv2d.5} parent=11 // pred_check_branch
        %200 = sbr.rel (%p198) target = $region20
      $region19: #{mobilenet_v2_conv2d.5} parent=11 // pred_region
        _
      $region20: #{mobilenet_v2_conv2d.5} parent=11 // pred_fallthru
        _
      // Predicated region
      $region21: #{mobilenet_v2_conv2d.5} parent=11 // pred_check
        %p201 = pneg %p102
      $region22: #{mobilenet_v2_conv2d.5} parent=11 // pred_check_branch
        %203 = sbr.rel (%p201) target = $region24
      $region23: #{mobilenet_v2_conv2d.5} parent=11 // pred_region
        _
      $region24: #{mobilenet_v2_conv2d.5} parent=11 // pred_fallthru
        _
    $region12: #{mobilenet_v2_conv2d.5} parent=5 // pred_fallthru
      _
    %p204 = scmp.lt.s32.totalorder %s13, 2
    // Predicated region
    $region25: #{mobilenet_v2_conv2d.5} parent=5 // pred_check
      %p205 = pneg %p204
    $region26: #{mobilenet_v2_conv2d.5} parent=5 // pred_check_branch
      %207 = sbr.rel (%p205) target = $region28
    $region27: #{mobilenet_v2_conv2d.5} parent=5 // pred_region
      // Predicated region
      $region29: #{mobilenet_v2_conv2d.5} parent=27 // pred_check
        %p208 = pneg %p33
      $region30: #{mobilenet_v2_conv2d.5} parent=27 // pred_check_branch
        %210 = sbr.rel (%p208) target = $region32
      $region31: #{mobilenet_v2_conv2d.5} parent=27 // pred_region
        %p211 = scmp.lt.s32.totalorder %s13, 1
        %s212 = scalar_select %p211, %s13, 1
        %s213 = smul.addr %s212, 32
        %s214 = smul.addr %s213, 4
        %s215 = scalar_lea.vmem %s0, %s214
      $region32: #{mobilenet_v2_conv2d.5} parent=27 // pred_fallthru
        _
    $region28: #{mobilenet_v2_conv2d.5} parent=5 // pred_fallthru
      _
    %p216 = scmp.le.s32.totalorder 1, %s13
    %p217 = scmp.lt.s32.totalorder %s13, 3
    %p218 = pnand %p216, %p217
    %p219 = pneg %p218
    // Predicated region
    $region33: #{mobilenet_v2_conv2d.5} parent=5 // pred_check
      _
    $region34: #{mobilenet_v2_conv2d.5} parent=5 // pred_check_branch
      %221 = sbr.rel (%p218) target = $region36
    $region35: #{mobilenet_v2_conv2d.5} parent=5 // pred_region
      %s222 = ssub.s32 %s13, 1
      %p223 = scmp.lt.s32.totalorder %s18, 1
      %s224 = scalar_select %p223, %s18, 1
      %s225 = smul.addr %s224, 32
      %s226 = smul.addr %s225, 4
      %s227 = scalar_lea.vmem %s0, %s226
      %p228 = pneg %p39
      %p229 = pneg %p36
      %p230 = pneg %p60
      %p231 = pneg %p57
      %p232 = pneg %p81
      %p233 = pneg %p78
      %p234 = pneg %p102
      %p235 = pneg %p99
      %p236 = pneg %p128
      %p237 = pneg %p125
      %p238 = scmp.lt.s32.totalorder %s18, 1
      %s239 = scalar_select %p238, %s18, 1
      %s240 = smul.addr %s239, 32
      %s241 = smul.addr %s240, 4
      %s242 = scalar_lea.vmem %s4, %s241
      %p243 = pneg %p154
      %p244 = pneg %p151
      %p245 = scmp.lt.s32.totalorder %s18, 1
      %s246 = scalar_select %p245, %s18, 1
      %s247 = scalar_lea.vmem %s5, %s246
      %p248 = pneg %p180
      %p249 = pneg %p177
      %p250 = scmp.lt.s32.totalorder %s18, 1
      %s251 = scalar_select %p250, %s18, 1
      %s252 = scalar_lea.vmem %s6, %s251
      %p253 = scmp.lt.s32.totalorder %s18, 1
      %s254 = scalar_select %p253, %s18, 1
      %s255 = smul.addr %s254, 32
      %s256 = smul.addr %s255, 4
      %s257 = scalar_lea.vmem %s0, %s256
      %p258 = scmp.lt.s32.totalorder %s18, 1
      %s259 = scalar_select %p258, %s18, 1
      %s260 = smul.addr %s259, 32
      %s261 = smul.addr %s260, 4
      %s262 = scalar_lea.vmem %s4, %s261
      %p263 = scmp.lt.s32.totalorder %s18, 1
      %s264 = scalar_select %p263, %s18, 1
      %s265 = scalar_lea.vmem %s5, %s264
      %p266 = scmp.lt.s32.totalorder %s18, 1
      %s267 = scalar_select %p266, %s18, 1
      %s268 = scalar_lea.vmem %s6, %s267
      %p269 = scmp.eq.s32.totalorder %s18, 0
      // Predicated region
      $region37: #{mobilenet_v2_conv2d.5} parent=35 // pred_check
        %p270 = pneg %p269
      $region38: #{mobilenet_v2_conv2d.5} parent=35 // pred_check_branch
        %272 = sbr.rel (%p270) target = $region40
      $region39: #{mobilenet_v2_conv2d.5} parent=35 // pred_region
        %vm273 = vcmask 195584
        %274 = vst.msk [vmem:[#allocation2] sm:$0xff] %vm273, 0.0
        %275 = vst.msk [vmem:[#allocation2 + $0x8] sm:$0xff] %vm273, 0.0
        %vm276 = vcmask 189440
        %277 = vst.msk [vmem:[#allocation2 + $0x10] sm:$0x3] %vm276, 0.0
        %278 = vst.msk [vmem:[#allocation2 + $0x18] sm:$0xff] %vm273, 0.0
        %279 = vst.msk [vmem:[#allocation2 + $0x20] sm:$0xff] %vm273, 0.0
        %280 = vst.msk [vmem:[#allocation2 + $0x28] sm:$0x3] %vm276, 0.0
        %281 = vst.msk [vmem:[#allocation2 + $0x30] sm:$0xff] %vm273, 0.0
        %282 = vst.msk [vmem:[#allocation2 + $0x38] sm:$0xff] %vm273, 0.0
        %283 = vst.msk [vmem:[#allocation2 + $0x40] sm:$0x3] %vm276, 0.0
        %284 = vst.msk [vmem:[#allocation2 + $0x48] sm:$0xff] %vm273, 0.0
        %285 = vst.msk [vmem:[#allocation2 + $0x50] sm:$0xff] %vm273, 0.0
        %286 = vst.msk [vmem:[#allocation2 + $0x58] sm:$0x3] %vm276, 0.0
        %287 = vst.msk [vmem:[#allocation2 + $0x60] sm:$0xff] %vm273, 0.0
        %288 = vst.msk [vmem:[#allocation2 + $0x68] sm:$0xff] %vm273, 0.0
        %289 = vst.msk [vmem:[#allocation2 + $0x70] sm:$0x3] %vm276, 0.0
        %290 = vst.msk [vmem:[#allocation2 + $0x78] sm:$0xff] %vm273, 0.0
        %291 = vst.msk [vmem:[#allocation2 + $0x80] sm:$0xff] %vm273, 0.0
        %292 = vst.msk [vmem:[#allocation2 + $0x88] sm:$0x3] %vm276, 0.0
        %293 = vst.msk [vmem:[#allocation2 + $0x90] sm:$0xff] %vm273, 0.0
        %294 = vst.msk [vmem:[#allocation2 + $0x98] sm:$0xff] %vm273, 0.0
        %295 = vst.msk [vmem:[#allocation2 + $0xa0] sm:$0x3] %vm276, 0.0
        %296 = vst.msk [vmem:[#allocation2 + $0xa8] sm:$0xff] %vm273, 0.0
        %297 = vst.msk [vmem:[#allocation2 + $0xb0] sm:$0xff] %vm273, 0.0
        %298 = vst.msk [vmem:[#allocation2 + $0xb8] sm:$0x3] %vm276, 0.0
        %299 = vst.msk [vmem:[#allocation2 + $0xc0] sm:$0xff] %vm273, 0.0
        %300 = vst.msk [vmem:[#allocation2 + $0xc8] sm:$0xff] %vm273, 0.0
        %301 = vst.msk [vmem:[#allocation2 + $0xd0] sm:$0x3] %vm276, 0.0
        %302 = vst.msk [vmem:[#allocation2 + $0xd8] sm:$0xff] %vm273, 0.0
        %303 = vst.msk [vmem:[#allocation2 + $0xe0] sm:$0xff] %vm273, 0.0
        %304 = vst.msk [vmem:[#allocation2 + $0xe8] sm:$0x3] %vm276, 0.0
        %305 = vst.msk [vmem:[#allocation2 + $0xf0] sm:$0xff] %vm273, 0.0
        %306 = vst.msk [vmem:[#allocation2 + $0xf8] sm:$0xff] %vm273, 0.0
        %307 = vst.msk [vmem:[#allocation2 + $0x100] sm:$0x3] %vm276, 0.0
        %308 = vst.msk [vmem:[#allocation2 + $0x108] sm:$0xff] %vm273, 0.0
        %309 = vst.msk [vmem:[#allocation2 + $0x110] sm:$0xff] %vm273, 0.0
        %310 = vst.msk [vmem:[#allocation2 + $0x118] sm:$0x3] %vm276, 0.0
        %311 = vst.msk [vmem:[#allocation2 + $0x120] sm:$0xff] %vm273, 0.0
        %312 = vst.msk [vmem:[#allocation2 + $0x128] sm:$0xff] %vm273, 0.0
        %313 = vst.msk [vmem:[#allocation2 + $0x130] sm:$0x3] %vm276, 0.0
        %314 = vst.msk [vmem:[#allocation2 + $0x138] sm:$0xff] %vm273, 0.0
        %315 = vst.msk [vmem:[#allocation2 + $0x140] sm:$0xff] %vm273, 0.0
        %316 = vst.msk [vmem:[#allocation2 + $0x148] sm:$0x3] %vm276, 0.0
        %317 = vst.msk [vmem:[#allocation2 + $0x150] sm:$0xff] %vm273, 0.0
        %318 = vst.msk [vmem:[#allocation2 + $0x158] sm:$0xff] %vm273, 0.0
        %319 = vst.msk [vmem:[#allocation2 + $0x160] sm:$0x3] %vm276, 0.0
        %320 = vst.msk [vmem:[#allocation2 + $0x168] sm:$0xff] %vm273, 0.0
        %321 = vst.msk [vmem:[#allocation2 + $0x170] sm:$0xff] %vm273, 0.0
        %322 = vst.msk [vmem:[#allocation2 + $0x178] sm:$0x3] %vm276, 0.0
        %323 = vst.msk [vmem:[#allocation2 + $0x180] sm:$0xff] %vm273, 0.0
        %324 = vst.msk [vmem:[#allocation2 + $0x188] sm:$0xff] %vm273, 0.0
        %325 = vst.msk [vmem:[#allocation2 + $0x190] sm:$0x3] %vm276, 0.0
        %326 = vst.msk [vmem:[#allocation2 + $0x198] sm:$0xff] %vm273, 0.0
        %327 = vst.msk [vmem:[#allocation2 + $0x1a0] sm:$0xff] %vm273, 0.0
        %328 = vst.msk [vmem:[#allocation2 + $0x1a8] sm:$0x3] %vm276, 0.0
      $region40: #{mobilenet_v2_conv2d.5} parent=35 // pred_fallthru
        _
      %v329 = vld [vmem:[%s257] sm:$0xf]
      %v330 = vld [vmem:[%s257 + $0x4] sm:$0xf]
      %v331 = vld [vmem:[%s257 + $0x8] sm:$0xf]
      %v332 = vld [vmem:[%s257 + $0xc] sm:$0xf]
      %v333 = vld [vmem:[%s257 + $0x10] sm:$0xf]
      %v334 = vld [vmem:[%s257 + $0x14] sm:$0xf]
      %v335 = vld [vmem:[%s257 + $0x18] sm:$0xf]
      %v336 = vld [vmem:[%s257 + $0x1c] sm:$0xf]
      %v337 = vld [vmem:[%s257 + $0x20] sm:$0xf]
      %v338 = vld [vmem:[%s257 + $0x24] sm:$0xf]
      %v339 = vld [vmem:[%s257 + $0x28] sm:$0xf]
      %v340 = vld [vmem:[%s257 + $0x2c] sm:$0xf]
      %v341 = vld [vmem:[%s257 + $0x30] sm:$0xf]
      %v342 = vld [vmem:[%s257 + $0x34] sm:$0xf]
      %v343 = vld [vmem:[%s257 + $0x38] sm:$0xf]
      %v344 = vld [vmem:[%s257 + $0x3c] sm:$0xf]
      %v345 = vld [vmem:[%s257 + $0x40] sm:$0xf]
      %v346 = vld [vmem:[%s257 + $0x44] sm:$0xf]
      %v347 = vld [vmem:[%s257 + $0x48] sm:$0xf]
      %v348 = vld [vmem:[%s257 + $0x4c] sm:$0xf]
      %v349 = vld [vmem:[%s257 + $0x50] sm:$0xf]
      %v350 = vld [vmem:[%s257 + $0x54] sm:$0xf]
      %v351 = vld [vmem:[%s257 + $0x58] sm:$0xf]
      %v352 = vld [vmem:[%s257 + $0x5c] sm:$0xf]
      %v353 = vld [vmem:[%s257 + $0x60] sm:$0xf]
      %v354 = vld [vmem:[%s257 + $0x64] sm:$0xf]
      %v355 = vld [vmem:[%s257 + $0x68] sm:$0xf]
      %v356 = vld [vmem:[%s257 + $0x6c] sm:$0xf]
      %v357 = vld [vmem:[%s257 + $0x70] sm:$0xf]
      %v358 = vld [vmem:[%s257 + $0x74] sm:$0xf]
      %v359 = vld [vmem:[%s257 + $0x78] sm:$0xf]
      %v360 = vld [vmem:[%s257 + $0x7c] sm:$0xf]
      %v361 = vunpack.c.l.bf16 %v329
      %v362 = vunpack.c.l.bf16 %v330
      %v363 = vunpack.c.l.bf16 %v331
      %v364 = vunpack.c.l.bf16 %v332
      %v365 = vunpack.c.l.bf16 %v333
      %v366 = vunpack.c.l.bf16 %v334
      %v367 = vunpack.c.l.bf16 %v335
      %v368 = vunpack.c.l.bf16 %v336
      %v369 = vunpack.c.l.bf16 %v337
      %v370 = vunpack.c.l.bf16 %v338
      %v371 = vunpack.c.l.bf16 %v339
      %v372 = vunpack.c.l.bf16 %v340
      %v373 = vunpack.c.l.bf16 %v341
      %v374 = vunpack.c.l.bf16 %v342
      %v375 = vunpack.c.l.bf16 %v343
      %v376 = vunpack.c.l.bf16 %v344
      %v377 = vunpack.c.l.bf16 %v345
      %v378 = vunpack.c.l.bf16 %v346
      %v379 = vunpack.c.l.bf16 %v347
      %v380 = vunpack.c.l.bf16 %v348
      %v381 = vunpack.c.l.bf16 %v349
      %v382 = vunpack.c.l.bf16 %v350
      %v383 = vunpack.c.l.bf16 %v351
      %v384 = vunpack.c.l.bf16 %v352
      %v385 = vunpack.c.l.bf16 %v353
      %v386 = vunpack.c.l.bf16 %v354
      %v387 = vunpack.c.l.bf16 %v355
      %v388 = vunpack.c.l.bf16 %v356
      %v389 = vunpack.c.l.bf16 %v357
      %v390 = vunpack.c.l.bf16 %v358
      %v391 = vunpack.c.l.bf16 %v359
      %v392 = vunpack.c.l.bf16 %v360
      %v393 = vld [vmem:[%s1] sm:$0x1]
      %v395 = vlaneseq
      %v396 = vshrl.u32 %v395, 7
      %v397 = vsub.s32 0, %v396
      %v398 = vrot.slane %v393, %v397
      %v400 = vmul.f32 %v361, %v398
      %v401 = vmul.f32 %v362, %v398
      %v402 = vmul.f32 %v363, %v398
      %v403 = vmul.f32 %v364, %v398
      %v404 = vmul.f32 %v365, %v398
      %v405 = vmul.f32 %v366, %v398
      %v406 = vmul.f32 %v367, %v398
      %v407 = vmul.f32 %v368, %v398
      %v408 = vmul.f32 %v369, %v398
      %v409 = vmul.f32 %v370, %v398
      %v410 = vmul.f32 %v371, %v398
      %v411 = vmul.f32 %v372, %v398
      %v412 = vmul.f32 %v373, %v398
      %v413 = vmul.f32 %v374, %v398
      %v414 = vmul.f32 %v375, %v398
      %v415 = vmul.f32 %v376, %v398
      %v416 = vmul.f32 %v377, %v398
      %v417 = vmul.f32 %v378, %v398
      %v418 = vmul.f32 %v379, %v398
      %v419 = vmul.f32 %v380, %v398
      %v420 = vmul.f32 %v381, %v398
      %v421 = vmul.f32 %v382, %v398
      %v422 = vmul.f32 %v383, %v398
      %v423 = vmul.f32 %v384, %v398
      %v424 = vmul.f32 %v385, %v398
      %v425 = vmul.f32 %v386, %v398
      %v426 = vmul.f32 %v387, %v398
      %v427 = vmul.f32 %v388, %v398
      %v428 = vmul.f32 %v389, %v398
      %v429 = vmul.f32 %v390, %v398
      %v430 = vmul.f32 %v391, %v398
      %v431 = vmul.f32 %v392, %v398
      %v432 = vld [vmem:[%s2] sm:$0x1]
      %v434 = vlaneseq
      %v435 = vshrl.u32 %v434, 7
      %v436 = vsub.s32 0, %v435
      %v437 = vrot.slane %v432, %v436
      %v439 = vadd.f32 %v400, %v437
      %v440 = vadd.f32 %v401, %v437
      %v441 = vadd.f32 %v402, %v437
      %v442 = vadd.f32 %v403, %v437
      %v443 = vadd.f32 %v404, %v437
      %v444 = vadd.f32 %v405, %v437
      %v445 = vadd.f32 %v406, %v437
      %v446 = vadd.f32 %v407, %v437
      %v447 = vadd.f32 %v408, %v437
      %v448 = vadd.f32 %v409, %v437
      %v449 = vadd.f32 %v410, %v437
      %v450 = vadd.f32 %v411, %v437
      %v451 = vadd.f32 %v412, %v437
      %v452 = vadd.f32 %v413, %v437
      %v453 = vadd.f32 %v414, %v437
      %v454 = vadd.f32 %v415, %v437
      %v455 = vadd.f32 %v416, %v437
      %v456 = vadd.f32 %v417, %v437
      %v457 = vadd.f32 %v418, %v437
      %v458 = vadd.f32 %v419, %v437
      %v459 = vadd.f32 %v420, %v437
      %v460 = vadd.f32 %v421, %v437
      %v461 = vadd.f32 %v422, %v437
      %v462 = vadd.f32 %v423, %v437
      %v463 = vadd.f32 %v424, %v437
      %v464 = vadd.f32 %v425, %v437
      %v465 = vadd.f32 %v426, %v437
      %v466 = vadd.f32 %v427, %v437
      %v467 = vadd.f32 %v428, %v437
      %v468 = vadd.f32 %v429, %v437
      %v469 = vadd.f32 %v430, %v437
      %v470 = vadd.f32 %v431, %v437
      %v471 = vmax.f32 %v439, 0.0
      %v472 = vmax.f32 %v440, 0.0
      %v473 = vmax.f32 %v441, 0.0
      %v474 = vmax.f32 %v442, 0.0
      %v475 = vmax.f32 %v443, 0.0
      %v476 = vmax.f32 %v444, 0.0
      %v477 = vmax.f32 %v445, 0.0
      %v478 = vmax.f32 %v446, 0.0
      %v479 = vmax.f32 %v447, 0.0
      %v480 = vmax.f32 %v448, 0.0
      %v481 = vmax.f32 %v449, 0.0
      %v482 = vmax.f32 %v450, 0.0
      %v483 = vmax.f32 %v451, 0.0
      %v484 = vmax.f32 %v452, 0.0
      %v485 = vmax.f32 %v453, 0.0
      %v486 = vmax.f32 %v454, 0.0
      %v487 = vmax.f32 %v455, 0.0
      %v488 = vmax.f32 %v456, 0.0
      %v489 = vmax.f32 %v457, 0.0
      %v490 = vmax.f32 %v458, 0.0
      %v491 = vmax.f32 %v459, 0.0
      %v492 = vmax.f32 %v460, 0.0
      %v493 = vmax.f32 %v461, 0.0
      %v494 = vmax.f32 %v462, 0.0
      %v495 = vmax.f32 %v463, 0.0
      %v496 = vmax.f32 %v464, 0.0
      %v497 = vmax.f32 %v465, 0.0
      %v498 = vmax.f32 %v466, 0.0
      %v499 = vmax.f32 %v467, 0.0
      %v500 = vmax.f32 %v468, 0.0
      %v501 = vmax.f32 %v469, 0.0
      %v502 = vmax.f32 %v470, 0.0
      %v503 = vmin.f32 %v471, 6.0
      %v504 = vmin.f32 %v472, 6.0
      %v505 = vmin.f32 %v473, 6.0
      %v506 = vmin.f32 %v474, 6.0
      %v507 = vmin.f32 %v475, 6.0
      %v508 = vmin.f32 %v476, 6.0
      %v509 = vmin.f32 %v477, 6.0
      %v510 = vmin.f32 %v478, 6.0
      %v511 = vmin.f32 %v479, 6.0
      %v512 = vmin.f32 %v480, 6.0
      %v513 = vmin.f32 %v481, 6.0
      %v514 = vmin.f32 %v482, 6.0
      %v515 = vmin.f32 %v483, 6.0
      %v516 = vmin.f32 %v484, 6.0
      %v517 = vmin.f32 %v485, 6.0
      %v518 = vmin.f32 %v486, 6.0
      %v519 = vmin.f32 %v487, 6.0
      %v520 = vmin.f32 %v488, 6.0
      %v521 = vmin.f32 %v489, 6.0
      %v522 = vmin.f32 %v490, 6.0
      %v523 = vmin.f32 %v491, 6.0
      %v524 = vmin.f32 %v492, 6.0
      %v525 = vmin.f32 %v493, 6.0
      %v526 = vmin.f32 %v494, 6.0
      %v527 = vmin.f32 %v495, 6.0
      %v528 = vmin.f32 %v496, 6.0
      %v529 = vmin.f32 %v497, 6.0
      %v530 = vmin.f32 %v498, 6.0
      %v531 = vmin.f32 %v499, 6.0
      %v532 = vmin.f32 %v500, 6.0
      %v533 = vmin.f32 %v501, 6.0
      %v534 = vmin.f32 %v502, 6.0
      %s535 = scalar_lea.vmem [#allocation2], 24
      %vm536 = vcmask 195584
      %537 = vst.msk [vmem:[%s535 + $0x1] sm:$0xff] %vm536, %v503
      %538 = vst.msk [vmem:[%s535 + $0x9] sm:$0xff] %vm536, %v504
      %539 = vst.msk [vmem:[%s535 + $0x19] sm:$0xff] %vm536, %v505
      %540 = vst.msk [vmem:[%s535 + $0x21] sm:$0xff] %vm536, %v506
      %541 = vst.msk [vmem:[%s535 + $0x31] sm:$0xff] %vm536, %v507
      %542 = vst.msk [vmem:[%s535 + $0x39] sm:$0xff] %vm536, %v508
      %543 = vst.msk [vmem:[%s535 + $0x49] sm:$0xff] %vm536, %v509
      %544 = vst.msk [vmem:[%s535 + $0x51] sm:$0xff] %vm536, %v510
      %545 = vst.msk [vmem:[%s535 + $0x61] sm:$0xff] %vm536, %v511
      %546 = vst.msk [vmem:[%s535 + $0x69] sm:$0xff] %vm536, %v512
      %547 = vst.msk [vmem:[%s535 + $0x79] sm:$0xff] %vm536, %v513
      %548 = vst.msk [vmem:[%s535 + $0x81] sm:$0xff] %vm536, %v514
      %549 = vst.msk [vmem:[%s535 + $0x91] sm:$0xff] %vm536, %v515
      %550 = vst.msk [vmem:[%s535 + $0x99] sm:$0xff] %vm536, %v516
      %551 = vst.msk [vmem:[%s535 + $0xa9] sm:$0xff] %vm536, %v517
      %552 = vst.msk [vmem:[%s535 + $0xb1] sm:$0xff] %vm536, %v518
      %553 = vst.msk [vmem:[%s535 + $0xc1] sm:$0xff] %vm536, %v519
      %554 = vst.msk [vmem:[%s535 + $0xc9] sm:$0xff] %vm536, %v520
      %555 = vst.msk [vmem:[%s535 + $0xd9] sm:$0xff] %vm536, %v521
      %556 = vst.msk [vmem:[%s535 + $0xe1] sm:$0xff] %vm536, %v522
      %557 = vst.msk [vmem:[%s535 + $0xf1] sm:$0xff] %vm536, %v523
      %558 = vst.msk [vmem:[%s535 + $0xf9] sm:$0xff] %vm536, %v524
      %559 = vst.msk [vmem:[%s535 + $0x109] sm:$0xff] %vm536, %v525
      %560 = vst.msk [vmem:[%s535 + $0x111] sm:$0xff] %vm536, %v526
      %561 = vst.msk [vmem:[%s535 + $0x121] sm:$0xff] %vm536, %v527
      %562 = vst.msk [vmem:[%s535 + $0x129] sm:$0xff] %vm536, %v528
      %563 = vst.msk [vmem:[%s535 + $0x139] sm:$0xff] %vm536, %v529
      %564 = vst.msk [vmem:[%s535 + $0x141] sm:$0xff] %vm536, %v530
      %565 = vst.msk [vmem:[%s535 + $0x151] sm:$0xff] %vm536, %v531
      %566 = vst.msk [vmem:[%s535 + $0x159] sm:$0xff] %vm536, %v532
      %567 = vst.msk [vmem:[%s535 + $0x169] sm:$0xff] %vm536, %v533
      %568 = vst.msk [vmem:[%s535 + $0x171] sm:$0xff] %vm536, %v534
      %v569 = vld [vmem:[%s3] sm:$0xff]
      %v570 = vld [vmem:[%s3 + $0x8] sm:$0x1]
      %v571 = vld [vmem:[#allocation2] sm:$0xff]
      %v572 = vld [vmem:[#allocation2 + $0x8] sm:$0xff]
      %v573 = vld [vmem:[#allocation2 + $0x18] sm:$0xff]
      %v574 = vld [vmem:[#allocation2 + $0x20] sm:$0xff]
      %v575 = vld [vmem:[#allocation2 + $0x30] sm:$0xff]
      %v576 = vld [vmem:[#allocation2 + $0x38] sm:$0xff]
      %v577 = vld [vmem:[#allocation2 + $0x48] sm:$0xff]
      %v578 = vld [vmem:[#allocation2 + $0x50] sm:$0xff]
      %v579 = vld [vmem:[#allocation2 + $0x60] sm:$0xff]
      %v580 = vld [vmem:[#allocation2 + $0x68] sm:$0xff]
      %v581 = vld [vmem:[#allocation2 + $0x78] sm:$0xff]
      %v582 = vld [vmem:[#allocation2 + $0x80] sm:$0xff]
      %v583 = vld [vmem:[#allocation2 + $0x90] sm:$0xff]
      %v584 = vld [vmem:[#allocation2 + $0x98] sm:$0xff]
      %v585 = vld [vmem:[#allocation2 + $0xa8] sm:$0xff]
      %v586 = vld [vmem:[#allocation2 + $0xb0] sm:$0xff]
      %v587 = vld [vmem:[#allocation2 + $0xc0] sm:$0xff]
      %v588 = vld [vmem:[#allocation2 + $0xc8] sm:$0xff]
      %v589 = vld [vmem:[#allocation2 + $0xd8] sm:$0xff]
      %v590 = vld [vmem:[#allocation2 + $0xe0] sm:$0xff]
      %v591 = vld [vmem:[#allocation2 + $0xf0] sm:$0xff]
      %v592 = vld [vmem:[#allocation2 + $0xf8] sm:$0xff]
      %v593 = vld [vmem:[#allocation2 + $0x108] sm:$0xff]
      %v594 = vld [vmem:[#allocation2 + $0x110] sm:$0xff]
      %v595 = vld [vmem:[#allocation2 + $0x120] sm:$0xff]
      %v596 = vld [vmem:[#allocation2 + $0x128] sm:$0xff]
      %v597 = vld [vmem:[#allocation2 + $0x138] sm:$0xff]
      %v598 = vld [vmem:[#allocation2 + $0x140] sm:$0xff]
      %v599 = vld [vmem:[#allocation2 + $0x150] sm:$0xff]
      %v600 = vld [vmem:[#allocation2 + $0x158] sm:$0xff]
      %v601 = vld [vmem:[#allocation2 + $0x168] sm:$0xff]
      %v602 = vld [vmem:[#allocation2 + $0x170] sm:$0xff]
      %v603 = vlaneseq
      %v604 = vshrl.u32 %v603, 7
      %v605 = vsub.s32 0, %v604
      %v606 = vrot.slane %v569, %v605
      %v607 = vmul.f32 %v571, %v606
      %v608 = vmul.f32 %v572, %v606
      %v609 = vmul.f32 %v573, %v606
      %v610 = vmul.f32 %v574, %v606
      %v611 = vmul.f32 %v575, %v606
      %v612 = vmul.f32 %v576, %v606
      %v613 = vmul.f32 %v577, %v606
      %v614 = vmul.f32 %v578, %v606
      %v615 = vmul.f32 %v579, %v606
      %v616 = vmul.f32 %v580, %v606
      %v617 = vmul.f32 %v581, %v606
      %v618 = vmul.f32 %v582, %v606
      %v619 = vmul.f32 %v583, %v606
      %v620 = vmul.f32 %v584, %v606
      %v621 = vmul.f32 %v585, %v606
      %v622 = vmul.f32 %v586, %v606
      %v623 = vmul.f32 %v587, %v606
      %v624 = vmul.f32 %v588, %v606
      %v625 = vmul.f32 %v589, %v606
      %v626 = vmul.f32 %v590, %v606
      %v627 = vmul.f32 %v591, %v606
      %v628 = vmul.f32 %v592, %v606
      %v629 = vmul.f32 %v593, %v606
      %v630 = vmul.f32 %v594, %v606
      %v631 = vmul.f32 %v595, %v606
      %v632 = vmul.f32 %v596, %v606
      %v633 = vmul.f32 %v597, %v606
      %v634 = vmul.f32 %v598, %v606
      %v635 = vmul.f32 %v599, %v606
      %v636 = vmul.f32 %v600, %v606
      %v637 = vmul.f32 %v601, %v606
      %v638 = vmul.f32 %v602, %v606
      %v639 = vld [vmem:[#allocation2 + $0x1] sm:$0xff]
      %v640 = vld [vmem:[#allocation2 + $0x9] sm:$0xff]
      %v641 = vld [vmem:[#allocation2 + $0x19] sm:$0xff]
      %v642 = vld [vmem:[#allocation2 + $0x21] sm:$0xff]
      %v643 = vld [vmem:[#allocation2 + $0x31] sm:$0xff]
      %v644 = vld [vmem:[#allocation2 + $0x39] sm:$0xff]
      %v645 = vld [vmem:[#allocation2 + $0x49] sm:$0xff]
      %v646 = vld [vmem:[#allocation2 + $0x51] sm:$0xff]
      %v647 = vld [vmem:[#allocation2 + $0x61] sm:$0xff]
      %v648 = vld [vmem:[#allocation2 + $0x69] sm:$0xff]
      %v649 = vld [vmem:[#allocation2 + $0x79] sm:$0xff]
      %v650 = vld [vmem:[#allocation2 + $0x81] sm:$0xff]
      %v651 = vld [vmem:[#allocation2 + $0x91] sm:$0xff]
      %v652 = vld [vmem:[#allocation2 + $0x99] sm:$0xff]
      %v653 = vld [vmem:[#allocation2 + $0xa9] sm:$0xff]
      %v654 = vld [vmem:[#allocation2 + $0xb1] sm:$0xff]
      %v655 = vld [vmem:[#allocation2 + $0xc1] sm:$0xff]
      %v656 = vld [vmem:[#allocation2 + $0xc9] sm:$0xff]
      %v657 = vld [vmem:[#allocation2 + $0xd9] sm:$0xff]
      %v658 = vld [vmem:[#allocation2 + $0xe1] sm:$0xff]
      %v659 = vld [vmem:[#allocation2 + $0xf1] sm:$0xff]
      %v660 = vld [vmem:[#allocation2 + $0xf9] sm:$0xff]
      %v661 = vld [vmem:[#allocation2 + $0x109] sm:$0xff]
      %v662 = vld [vmem:[#allocation2 + $0x111] sm:$0xff]
      %v663 = vld [vmem:[#allocation2 + $0x121] sm:$0xff]
      %v664 = vld [vmem:[#allocation2 + $0x129] sm:$0xff]
      %v665 = vld [vmem:[#allocation2 + $0x139] sm:$0xff]
      %v666 = vld [vmem:[#allocation2 + $0x141] sm:$0xff]
      %v667 = vld [vmem:[#allocation2 + $0x151] sm:$0xff]
      %v668 = vld [vmem:[#allocation2 + $0x159] sm:$0xff]
      %v669 = vld [vmem:[#allocation2 + $0x169] sm:$0xff]
      %v670 = vld [vmem:[#allocation2 + $0x171] sm:$0xff]
      %v671 = vlaneseq
      %v672 = vshrl.u32 %v671, 7
      %v673 = vsub.s32 1, %v672
      %v674 = vrot.slane %v569, %v673
      %v675 = vmul.f32 %v639, %v674
      %v676 = vmul.f32 %v640, %v674
      %v677 = vmul.f32 %v641, %v674
      %v678 = vmul.f32 %v642, %v674
      %v679 = vmul.f32 %v643, %v674
      %v680 = vmul.f32 %v644, %v674
      %v681 = vmul.f32 %v645, %v674
      %v682 = vmul.f32 %v646, %v674
      %v683 = vmul.f32 %v647, %v674
      %v684 = vmul.f32 %v648, %v674
      %v685 = vmul.f32 %v649, %v674
      %v686 = vmul.f32 %v650, %v674
      %v687 = vmul.f32 %v651, %v674
      %v688 = vmul.f32 %v652, %v674
      %v689 = vmul.f32 %v653, %v674
      %v690 = vmul.f32 %v654, %v674
      %v691 = vmul.f32 %v655, %v674
      %v692 = vmul.f32 %v656, %v674
      %v693 = vmul.f32 %v657, %v674
      %v694 = vmul.f32 %v658, %v674
      %v695 = vmul.f32 %v659, %v674
      %v696 = vmul.f32 %v660, %v674
      %v697 = vmul.f32 %v661, %v674
      %v698 = vmul.f32 %v662, %v674
      %v699 = vmul.f32 %v663, %v674
      %v700 = vmul.f32 %v664, %v674
      %v701 = vmul.f32 %v665, %v674
      %v702 = vmul.f32 %v666, %v674
      %v703 = vmul.f32 %v667, %v674
      %v704 = vmul.f32 %v668, %v674
      %v705 = vmul.f32 %v669, %v674
      %v706 = vmul.f32 %v670, %v674
      %v707 = vadd.f32 %v607, %v675
      %v708 = vadd.f32 %v608, %v676
      %v709 = vadd.f32 %v609, %v677
      %v710 = vadd.f32 %v610, %v678
      %v711 = vadd.f32 %v611, %v679
      %v712 = vadd.f32 %v612, %v680
      %v713 = vadd.f32 %v613, %v681
      %v714 = vadd.f32 %v614, %v682
      %v715 = vadd.f32 %v615, %v683
      %v716 = vadd.f32 %v616, %v684
      %v717 = vadd.f32 %v617, %v685
      %v718 = vadd.f32 %v618, %v686
      %v719 = vadd.f32 %v619, %v687
      %v720 = vadd.f32 %v620, %v688
      %v721 = vadd.f32 %v621, %v689
      %v722 = vadd.f32 %v622, %v690
      %v723 = vadd.f32 %v623, %v691
      %v724 = vadd.f32 %v624, %v692
      %v725 = vadd.f32 %v625, %v693
      %v726 = vadd.f32 %v626, %v694
      %v727 = vadd.f32 %v627, %v695
      %v728 = vadd.f32 %v628, %v696
      %v729 = vadd.f32 %v629, %v697
      %v730 = vadd.f32 %v630, %v698
      %v731 = vadd.f32 %v631, %v699
      %v732 = vadd.f32 %v632, %v700
      %v733 = vadd.f32 %v633, %v701
      %v734 = vadd.f32 %v634, %v702
      %v735 = vadd.f32 %v635, %v703
      %v736 = vadd.f32 %v636, %v704
      %v737 = vadd.f32 %v637, %v705
      %v738 = vadd.f32 %v638, %v706
      %v739 = vld [vmem:[#allocation2 + $0x2] sm:$0xff]
      %v740 = vld [vmem:[#allocation2 + $0xa] sm:$0xff]
      %v741 = vld [vmem:[#allocation2 + $0x1a] sm:$0xff]
      %v742 = vld [vmem:[#allocation2 + $0x22] sm:$0xff]
      %v743 = vld [vmem:[#allocation2 + $0x32] sm:$0xff]
      %v744 = vld [vmem:[#allocation2 + $0x3a] sm:$0xff]
      %v745 = vld [vmem:[#allocation2 + $0x4a] sm:$0xff]
      %v746 = vld [vmem:[#allocation2 + $0x52] sm:$0xff]
      %v747 = vld [vmem:[#allocation2 + $0x62] sm:$0xff]
      %v748 = vld [vmem:[#allocation2 + $0x6a] sm:$0xff]
      %v749 = vld [vmem:[#allocation2 + $0x7a] sm:$0xff]
      %v750 = vld [vmem:[#allocation2 + $0x82] sm:$0xff]
      %v751 = vld [vmem:[#allocation2 + $0x92] sm:$0xff]
      %v752 = vld [vmem:[#allocation2 + $0x9a] sm:$0xff]
      %v753 = vld [vmem:[#allocation2 + $0xaa] sm:$0xff]
      %v754 = vld [vmem:[#allocation2 + $0xb2] sm:$0xff]
      %v755 = vld [vmem:[#allocation2 + $0xc2] sm:$0xff]
      %v756 = vld [vmem:[#allocation2 + $0xca] sm:$0xff]
      %v757 = vld [vmem:[#allocation2 + $0xda] sm:$0xff]
      %v758 = vld [vmem:[#allocation2 + $0xe2] sm:$0xff]
      %v759 = vld [vmem:[#allocation2 + $0xf2] sm:$0xff]
      %v760 = vld [vmem:[#allocation2 + $0xfa] sm:$0xff]
      %v761 = vld [vmem:[#allocation2 + $0x10a] sm:$0xff]
      %v762 = vld [vmem:[#allocation2 + $0x112] sm:$0xff]
      %v763 = vld [vmem:[#allocation2 + $0x122] sm:$0xff]
      %v764 = vld [vmem:[#allocation2 + $0x12a] sm:$0xff]
      %v765 = vld [vmem:[#allocation2 + $0x13a] sm:$0xff]
      %v766 = vld [vmem:[#allocation2 + $0x142] sm:$0xff]
      %v767 = vld [vmem:[#allocation2 + $0x152] sm:$0xff]
      %v768 = vld [vmem:[#allocation2 + $0x15a] sm:$0xff]
      %v769 = vld [vmem:[#allocation2 + $0x16a] sm:$0xff]
      %v770 = vld [vmem:[#allocation2 + $0x172] sm:$0xff]
      %v771 = vlaneseq
      %v772 = vshrl.u32 %v771, 7
      %v773 = vsub.s32 2, %v772
      %v774 = vrot.slane %v569, %v773
      %v775 = vmul.f32 %v739, %v774
      %v776 = vmul.f32 %v740, %v774
      %v777 = vmul.f32 %v741, %v774
      %v778 = vmul.f32 %v742, %v774
      %v779 = vmul.f32 %v743, %v774
      %v780 = vmul.f32 %v744, %v774
      %v781 = vmul.f32 %v745, %v774
      %v782 = vmul.f32 %v746, %v774
      %v783 = vmul.f32 %v747, %v774
      %v784 = vmul.f32 %v748, %v774
      %v785 = vmul.f32 %v749, %v774
      %v786 = vmul.f32 %v750, %v774
      %v787 = vmul.f32 %v751, %v774
      %v788 = vmul.f32 %v752, %v774
      %v789 = vmul.f32 %v753, %v774
      %v790 = vmul.f32 %v754, %v774
      %v791 = vmul.f32 %v755, %v774
      %v792 = vmul.f32 %v756, %v774
      %v793 = vmul.f32 %v757, %v774
      %v794 = vmul.f32 %v758, %v774
      %v795 = vmul.f32 %v759, %v774
      %v796 = vmul.f32 %v760, %v774
      %v797 = vmul.f32 %v761, %v774
      %v798 = vmul.f32 %v762, %v774
      %v799 = vmul.f32 %v763, %v774
      %v800 = vmul.f32 %v764, %v774
      %v801 = vmul.f32 %v765, %v774
      %v802 = vmul.f32 %v766, %v774
      %v803 = vmul.f32 %v767, %v774
      %v804 = vmul.f32 %v768, %v774
      %v805 = vmul.f32 %v769, %v774
      %v806 = vmul.f32 %v770, %v774
      %v807 = vadd.f32 %v707, %v775
      %v808 = vadd.f32 %v708, %v776
      %v809 = vadd.f32 %v709, %v777
      %v810 = vadd.f32 %v710, %v778
      %v811 = vadd.f32 %v711, %v779
      %v812 = vadd.f32 %v712, %v780
      %v813 = vadd.f32 %v713, %v781
      %v814 = vadd.f32 %v714, %v782
      %v815 = vadd.f32 %v715, %v783
      %v816 = vadd.f32 %v716, %v784
      %v817 = vadd.f32 %v717, %v785
      %v818 = vadd.f32 %v718, %v786
      %v819 = vadd.f32 %v719, %v787
      %v820 = vadd.f32 %v720, %v788
      %v821 = vadd.f32 %v721, %v789
      %v822 = vadd.f32 %v722, %v790
      %v823 = vadd.f32 %v723, %v791
      %v824 = vadd.f32 %v724, %v792
      %v825 = vadd.f32 %v725, %v793
      %v826 = vadd.f32 %v726, %v794
      %v827 = vadd.f32 %v727, %v795
      %v828 = vadd.f32 %v728, %v796
      %v829 = vadd.f32 %v729, %v797
      %v830 = vadd.f32 %v730, %v798
      %v831 = vadd.f32 %v731, %v799
      %v832 = vadd.f32 %v732, %v800
      %v833 = vadd.f32 %v733, %v801
      %v834 = vadd.f32 %v734, %v802
      %v835 = vadd.f32 %v735, %v803
      %v836 = vadd.f32 %v736, %v804
      %v837 = vadd.f32 %v737, %v805
      %v838 = vadd.f32 %v738, %v806
      %v839 = vld [vmem:[%s535] sm:$0xff]
      %v840 = vld [vmem:[%s535 + $0x8] sm:$0xff]
      %v841 = vld [vmem:[%s535 + $0x18] sm:$0xff]
      %v842 = vld [vmem:[%s535 + $0x20] sm:$0xff]
      %v843 = vld [vmem:[%s535 + $0x30] sm:$0xff]
      %v844 = vld [vmem:[%s535 + $0x38] sm:$0xff]
      %v845 = vld [vmem:[%s535 + $0x48] sm:$0xff]
      %v846 = vld [vmem:[%s535 + $0x50] sm:$0xff]
      %v847 = vld [vmem:[%s535 + $0x60] sm:$0xff]
      %v848 = vld [vmem:[%s535 + $0x68] sm:$0xff]
      %v849 = vld [vmem:[%s535 + $0x78] sm:$0xff]
      %v850 = vld [vmem:[%s535 + $0x80] sm:$0xff]
      %v851 = vld [vmem:[%s535 + $0x90] sm:$0xff]
      %v852 = vld [vmem:[%s535 + $0x98] sm:$0xff]
      %v853 = vld [vmem:[%s535 + $0xa8] sm:$0xff]
      %v854 = vld [vmem:[%s535 + $0xb0] sm:$0xff]
      %v855 = vld [vmem:[%s535 + $0xc0] sm:$0xff]
      %v856 = vld [vmem:[%s535 + $0xc8] sm:$0xff]
      %v857 = vld [vmem:[%s535 + $0xd8] sm:$0xff]
      %v858 = vld [vmem:[%s535 + $0xe0] sm:$0xff]
      %v859 = vld [vmem:[%s535 + $0xf0] sm:$0xff]
      %v860 = vld [vmem:[%s535 + $0xf8] sm:$0xff]
      %v861 = vld [vmem:[%s535 + $0x108] sm:$0xff]
      %v862 = vld [vmem:[%s535 + $0x110] sm:$0xff]
      %v863 = vld [vmem:[%s535 + $0x120] sm:$0xff]
      %v864 = vld [vmem:[%s535 + $0x128] sm:$0xff]
      %v865 = vld [vmem:[%s535 + $0x138] sm:$0xff]
      %v866 = vld [vmem:[%s535 + $0x140] sm:$0xff]
      %v867 = vld [vmem:[%s535 + $0x150] sm:$0xff]
      %v868 = vld [vmem:[%s535 + $0x158] sm:$0xff]
      %v869 = vld [vmem:[%s535 + $0x168] sm:$0xff]
      %v870 = vld [vmem:[%s535 + $0x170] sm:$0xff]
      %v871 = vlaneseq
      %v872 = vshrl.u32 %v871, 7
      %v873 = vsub.s32 3, %v872
      %v874 = vrot.slane %v569, %v873
      %v875 = vmul.f32 %v839, %v874
      %v876 = vmul.f32 %v840, %v874
      %v877 = vmul.f32 %v841, %v874
      %v878 = vmul.f32 %v842, %v874
      %v879 = vmul.f32 %v843, %v874
      %v880 = vmul.f32 %v844, %v874
      %v881 = vmul.f32 %v845, %v874
      %v882 = vmul.f32 %v846, %v874
      %v883 = vmul.f32 %v847, %v874
      %v884 = vmul.f32 %v848, %v874
      %v885 = vmul.f32 %v849, %v874
      %v886 = vmul.f32 %v850, %v874
      %v887 = vmul.f32 %v851, %v874
      %v888 = vmul.f32 %v852, %v874
      %v889 = vmul.f32 %v853, %v874
      %v890 = vmul.f32 %v854, %v874
      %v891 = vmul.f32 %v855, %v874
      %v892 = vmul.f32 %v856, %v874
      %v893 = vmul.f32 %v857, %v874
      %v894 = vmul.f32 %v858, %v874
      %v895 = vmul.f32 %v859, %v874
      %v896 = vmul.f32 %v860, %v874
      %v897 = vmul.f32 %v861, %v874
      %v898 = vmul.f32 %v862, %v874
      %v899 = vmul.f32 %v863, %v874
      %v900 = vmul.f32 %v864, %v874
      %v901 = vmul.f32 %v865, %v874
      %v902 = vmul.f32 %v866, %v874
      %v903 = vmul.f32 %v867, %v874
      %v904 = vmul.f32 %v868, %v874
      %v905 = vmul.f32 %v869, %v874
      %v906 = vmul.f32 %v870, %v874
      %v907 = vadd.f32 %v807, %v875
      %v908 = vadd.f32 %v808, %v876
      %v909 = vadd.f32 %v809, %v877
      %v910 = vadd.f32 %v810, %v878
      %v911 = vadd.f32 %v811, %v879
      %v912 = vadd.f32 %v812, %v880
      %v913 = vadd.f32 %v813, %v881
      %v914 = vadd.f32 %v814, %v882
      %v915 = vadd.f32 %v815, %v883
      %v916 = vadd.f32 %v816, %v884
      %v917 = vadd.f32 %v817, %v885
      %v918 = vadd.f32 %v818, %v886
      %v919 = vadd.f32 %v819, %v887
      %v920 = vadd.f32 %v820, %v888
      %v921 = vadd.f32 %v821, %v889
      %v922 = vadd.f32 %v822, %v890
      %v923 = vadd.f32 %v823, %v891
      %v924 = vadd.f32 %v824, %v892
      %v925 = vadd.f32 %v825, %v893
      %v926 = vadd.f32 %v826, %v894
      %v927 = vadd.f32 %v827, %v895
      %v928 = vadd.f32 %v828, %v896
      %v929 = vadd.f32 %v829, %v897
      %v930 = vadd.f32 %v830, %v898
      %v931 = vadd.f32 %v831, %v899
      %v932 = vadd.f32 %v832, %v900
      %v933 = vadd.f32 %v833, %v901
      %v934 = vadd.f32 %v834, %v902
      %v935 = vadd.f32 %v835, %v903
      %v936 = vadd.f32 %v836, %v904
      %v937 = vadd.f32 %v837, %v905
      %v938 = vadd.f32 %v838, %v906
      %v939 = vld [vmem:[%s535 + $0x1] sm:$0xff]
      %v940 = vld [vmem:[%s535 + $0x9] sm:$0xff]
      %v941 = vld [vmem:[%s535 + $0x19] sm:$0xff]
      %v942 = vld [vmem:[%s535 + $0x21] sm:$0xff]
      %v943 = vld [vmem:[%s535 + $0x31] sm:$0xff]
      %v944 = vld [vmem:[%s535 + $0x39] sm:$0xff]
      %v945 = vld [vmem:[%s535 + $0x49] sm:$0xff]
      %v946 = vld [vmem:[%s535 + $0x51] sm:$0xff]
      %v947 = vld [vmem:[%s535 + $0x61] sm:$0xff]
      %v948 = vld [vmem:[%s535 + $0x69] sm:$0xff]
      %v949 = vld [vmem:[%s535 + $0x79] sm:$0xff]
      %v950 = vld [vmem:[%s535 + $0x81] sm:$0xff]
      %v951 = vld [vmem:[%s535 + $0x91] sm:$0xff]
      %v952 = vld [vmem:[%s535 + $0x99] sm:$0xff]
      %v953 = vld [vmem:[%s535 + $0xa9] sm:$0xff]
      %v954 = vld [vmem:[%s535 + $0xb1] sm:$0xff]
      %v955 = vld [vmem:[%s535 + $0xc1] sm:$0xff]
      %v956 = vld [vmem:[%s535 + $0xc9] sm:$0xff]
      %v957 = vld [vmem:[%s535 + $0xd9] sm:$0xff]
      %v958 = vld [vmem:[%s535 + $0xe1] sm:$0xff]
      %v959 = vld [vmem:[%s535 + $0xf1] sm:$0xff]
      %v960 = vld [vmem:[%s535 + $0xf9] sm:$0xff]
      %v961 = vld [vmem:[%s535 + $0x109] sm:$0xff]
      %v962 = vld [vmem:[%s535 + $0x111] sm:$0xff]
      %v963 = vld [vmem:[%s535 + $0x121] sm:$0xff]
      %v964 = vld [vmem:[%s535 + $0x129] sm:$0xff]
      %v965 = vld [vmem:[%s535 + $0x139] sm:$0xff]
      %v966 = vld [vmem:[%s535 + $0x141] sm:$0xff]
      %v967 = vld [vmem:[%s535 + $0x151] sm:$0xff]
      %v968 = vld [vmem:[%s535 + $0x159] sm:$0xff]
      %v969 = vld [vmem:[%s535 + $0x169] sm:$0xff]
      %v970 = vld [vmem:[%s535 + $0x171] sm:$0xff]
      %v971 = vlaneseq
      %v972 = vshrl.u32 %v971, 7
      %v973 = vsub.s32 4, %v972
      %v974 = vrot.slane %v569, %v973
      %v975 = vmul.f32 %v939, %v974
      %v976 = vmul.f32 %v940, %v974
      %v977 = vmul.f32 %v941, %v974
      %v978 = vmul.f32 %v942, %v974
      %v979 = vmul.f32 %v943, %v974
      %v980 = vmul.f32 %v944, %v974
      %v981 = vmul.f32 %v945, %v974
      %v982 = vmul.f32 %v946, %v974
      %v983 = vmul.f32 %v947, %v974
      %v984 = vmul.f32 %v948, %v974
      %v985 = vmul.f32 %v949, %v974
      %v986 = vmul.f32 %v950, %v974
      %v987 = vmul.f32 %v951, %v974
      %v988 = vmul.f32 %v952, %v974
      %v989 = vmul.f32 %v953, %v974
      %v990 = vmul.f32 %v954, %v974
      %v991 = vmul.f32 %v955, %v974
      %v992 = vmul.f32 %v956, %v974
      %v993 = vmul.f32 %v957, %v974
      %v994 = vmul.f32 %v958, %v974
      %v995 = vmul.f32 %v959, %v974
      %v996 = vmul.f32 %v960, %v974
      %v997 = vmul.f32 %v961, %v974
      %v998 = vmul.f32 %v962, %v974
      %v999 = vmul.f32 %v963, %v974
      %v1000 = vmul.f32 %v964, %v974
      %v1001 = vmul.f32 %v965, %v974
      %v1002 = vmul.f32 %v966, %v974
      %v1003 = vmul.f32 %v967, %v974
      %v1004 = vmul.f32 %v968, %v974
      %v1005 = vmul.f32 %v969, %v974
      %v1006 = vmul.f32 %v970, %v974
      %v1007 = vadd.f32 %v907, %v975
      %v1008 = vadd.f32 %v908, %v976
      %v1009 = vadd.f32 %v909, %v977
      %v1010 = vadd.f32 %v910, %v978
      %v1011 = vadd.f32 %v911, %v979
      %v1012 = vadd.f32 %v912, %v980
      %v1013 = vadd.f32 %v913, %v981
      %v1014 = vadd.f32 %v914, %v982
      %v1015 = vadd.f32 %v915, %v983
      %v1016 = vadd.f32 %v916, %v984
      %v1017 = vadd.f32 %v917, %v985
      %v1018 = vadd.f32 %v918, %v986
      %v1019 = vadd.f32 %v919, %v987
      %v1020 = vadd.f32 %v920, %v988
      %v1021 = vadd.f32 %v921, %v989
      %v1022 = vadd.f32 %v922, %v990
      %v1023 = vadd.f32 %v923, %v991
      %v1024 = vadd.f32 %v924, %v992
      %v1025 = vadd.f32 %v925, %v993
      %v1026 = vadd.f32 %v926, %v994
      %v1027 = vadd.f32 %v927, %v995
      %v1028 = vadd.f32 %v928, %v996
      %v1029 = vadd.f32 %v929, %v997
      %v1030 = vadd.f32 %v930, %v998
      %v1031 = vadd.f32 %v931, %v999
      %v1032 = vadd.f32 %v932, %v1000
      %v1033 = vadd.f32 %v933, %v1001
      %v1034 = vadd.f32 %v934, %v1002
      %v1035 = vadd.f32 %v935, %v1003
      %v1036 = vadd.f32 %v936, %v1004
      %v1037 = vadd.f32 %v937, %v1005
      %v1038 = vadd.f32 %v938, %v1006
      %v1039 = vld [vmem:[%s535 + $0x2] sm:$0xff]
      %v1040 = vld [vmem:[%s535 + $0xa] sm:$0xff]
      %v1041 = vld [vmem:[%s535 + $0x1a] sm:$0xff]
      %v1042 = vld [vmem:[%s535 + $0x22] sm:$0xff]
      %v1043 = vld [vmem:[%s535 + $0x32] sm:$0xff]
      %v1044 = vld [vmem:[%s535 + $0x3a] sm:$0xff]
      %v1045 = vld [vmem:[%s535 + $0x4a] sm:$0xff]
      %v1046 = vld [vmem:[%s535 + $0x52] sm:$0xff]
      %v1047 = vld [vmem:[%s535 + $0x62] sm:$0xff]
      %v1048 = vld [vmem:[%s535 + $0x6a] sm:$0xff]
      %v1049 = vld [vmem:[%s535 + $0x7a] sm:$0xff]
      %v1050 = vld [vmem:[%s535 + $0x82] sm:$0xff]
      %v1051 = vld [vmem:[%s535 + $0x92] sm:$0xff]
      %v1052 = vld [vmem:[%s535 + $0x9a] sm:$0xff]
      %v1053 = vld [vmem:[%s535 + $0xaa] sm:$0xff]
      %v1054 = vld [vmem:[%s535 + $0xb2] sm:$0xff]
      %v1055 = vld [vmem:[%s535 + $0xc2] sm:$0xff]
      %v1056 = vld [vmem:[%s535 + $0xca] sm:$0xff]
      %v1057 = vld [vmem:[%s535 + $0xda] sm:$0xff]
      %v1058 = vld [vmem:[%s535 + $0xe2] sm:$0xff]
      %v1059 = vld [vmem:[%s535 + $0xf2] sm:$0xff]
      %v1060 = vld [vmem:[%s535 + $0xfa] sm:$0xff]
      %v1061 = vld [vmem:[%s535 + $0x10a] sm:$0xff]
      %v1062 = vld [vmem:[%s535 + $0x112] sm:$0xff]
      %v1063 = vld [vmem:[%s535 + $0x122] sm:$0xff]
      %v1064 = vld [vmem:[%s535 + $0x12a] sm:$0xff]
      %v1065 = vld [vmem:[%s535 + $0x13a] sm:$0xff]
      %v1066 = vld [vmem:[%s535 + $0x142] sm:$0xff]
      %v1067 = vld [vmem:[%s535 + $0x152] sm:$0xff]
      %v1068 = vld [vmem:[%s535 + $0x15a] sm:$0xff]
      %v1069 = vld [vmem:[%s535 + $0x16a] sm:$0xff]
      %v1070 = vld [vmem:[%s535 + $0x172] sm:$0xff]
      %v1071 = vlaneseq
      %v1072 = vshrl.u32 %v1071, 7
      %v1073 = vsub.s32 5, %v1072
      %v1074 = vrot.slane %v569, %v1073
      %v1075 = vmul.f32 %v1039, %v1074
      %v1076 = vmul.f32 %v1040, %v1074
      %v1077 = vmul.f32 %v1041, %v1074
      %v1078 = vmul.f32 %v1042, %v1074
      %v1079 = vmul.f32 %v1043, %v1074
      %v1080 = vmul.f32 %v1044, %v1074
      %v1081 = vmul.f32 %v1045, %v1074
      %v1082 = vmul.f32 %v1046, %v1074
      %v1083 = vmul.f32 %v1047, %v1074
      %v1084 = vmul.f32 %v1048, %v1074
      %v1085 = vmul.f32 %v1049, %v1074
      %v1086 = vmul.f32 %v1050, %v1074
      %v1087 = vmul.f32 %v1051, %v1074
      %v1088 = vmul.f32 %v1052, %v1074
      %v1089 = vmul.f32 %v1053, %v1074
      %v1090 = vmul.f32 %v1054, %v1074
      %v1091 = vmul.f32 %v1055, %v1074
      %v1092 = vmul.f32 %v1056, %v1074
      %v1093 = vmul.f32 %v1057, %v1074
      %v1094 = vmul.f32 %v1058, %v1074
      %v1095 = vmul.f32 %v1059, %v1074
      %v1096 = vmul.f32 %v1060, %v1074
      %v1097 = vmul.f32 %v1061, %v1074
      %v1098 = vmul.f32 %v1062, %v1074
      %v1099 = vmul.f32 %v1063, %v1074
      %v1100 = vmul.f32 %v1064, %v1074
      %v1101 = vmul.f32 %v1065, %v1074
      %v1102 = vmul.f32 %v1066, %v1074
      %v1103 = vmul.f32 %v1067, %v1074
      %v1104 = vmul.f32 %v1068, %v1074
      %v1105 = vmul.f32 %v1069, %v1074
      %v1106 = vmul.f32 %v1070, %v1074
      %v1107 = vadd.f32 %v1007, %v1075
      %v1108 = vadd.f32 %v1008, %v1076
      %v1109 = vadd.f32 %v1009, %v1077
      %v1110 = vadd.f32 %v1010, %v1078
      %v1111 = vadd.f32 %v1011, %v1079
      %v1112 = vadd.f32 %v1012, %v1080
      %v1113 = vadd.f32 %v1013, %v1081
      %v1114 = vadd.f32 %v1014, %v1082
      %v1115 = vadd.f32 %v1015, %v1083
      %v1116 = vadd.f32 %v1016, %v1084
      %v1117 = vadd.f32 %v1017, %v1085
      %v1118 = vadd.f32 %v1018, %v1086
      %v1119 = vadd.f32 %v1019, %v1087
      %v1120 = vadd.f32 %v1020, %v1088
      %v1121 = vadd.f32 %v1021, %v1089
      %v1122 = vadd.f32 %v1022, %v1090
      %v1123 = vadd.f32 %v1023, %v1091
      %v1124 = vadd.f32 %v1024, %v1092
      %v1125 = vadd.f32 %v1025, %v1093
      %v1126 = vadd.f32 %v1026, %v1094
      %v1127 = vadd.f32 %v1027, %v1095
      %v1128 = vadd.f32 %v1028, %v1096
      %v1129 = vadd.f32 %v1029, %v1097
      %v1130 = vadd.f32 %v1030, %v1098
      %v1131 = vadd.f32 %v1031, %v1099
      %v1132 = vadd.f32 %v1032, %v1100
      %v1133 = vadd.f32 %v1033, %v1101
      %v1134 = vadd.f32 %v1034, %v1102
      %v1135 = vadd.f32 %v1035, %v1103
      %v1136 = vadd.f32 %v1036, %v1104
      %v1137 = vadd.f32 %v1037, %v1105
      %v1138 = vadd.f32 %v1038, %v1106
      %s1139 = scalar_lea.vmem [#allocation2], 48
      %v1140 = vld [vmem:[%s1139] sm:$0xff]
      %v1141 = vld [vmem:[%s1139 + $0x8] sm:$0xff]
      %v1142 = vld [vmem:[%s1139 + $0x18] sm:$0xff]
      %v1143 = vld [vmem:[%s1139 + $0x20] sm:$0xff]
      %v1144 = vld [vmem:[%s1139 + $0x30] sm:$0xff]
      %v1145 = vld [vmem:[%s1139 + $0x38] sm:$0xff]
      %v1146 = vld [vmem:[%s1139 + $0x48] sm:$0xff]
      %v1147 = vld [vmem:[%s1139 + $0x50] sm:$0xff]
      %v1148 = vld [vmem:[%s1139 + $0x60] sm:$0xff]
      %v1149 = vld [vmem:[%s1139 + $0x68] sm:$0xff]
      %v1150 = vld [vmem:[%s1139 + $0x78] sm:$0xff]
      %v1151 = vld [vmem:[%s1139 + $0x80] sm:$0xff]
      %v1152 = vld [vmem:[%s1139 + $0x90] sm:$0xff]
      %v1153 = vld [vmem:[%s1139 + $0x98] sm:$0xff]
      %v1154 = vld [vmem:[%s1139 + $0xa8] sm:$0xff]
      %v1155 = vld [vmem:[%s1139 + $0xb0] sm:$0xff]
      %v1156 = vld [vmem:[%s1139 + $0xc0] sm:$0xff]
      %v1157 = vld [vmem:[%s1139 + $0xc8] sm:$0xff]
      %v1158 = vld [vmem:[%s1139 + $0xd8] sm:$0xff]
      %v1159 = vld [vmem:[%s1139 + $0xe0] sm:$0xff]
      %v1160 = vld [vmem:[%s1139 + $0xf0] sm:$0xff]
      %v1161 = vld [vmem:[%s1139 + $0xf8] sm:$0xff]
      %v1162 = vld [vmem:[%s1139 + $0x108] sm:$0xff]
      %v1163 = vld [vmem:[%s1139 + $0x110] sm:$0xff]
      %v1164 = vld [vmem:[%s1139 + $0x120] sm:$0xff]
      %v1165 = vld [vmem:[%s1139 + $0x128] sm:$0xff]
      %v1166 = vld [vmem:[%s1139 + $0x138] sm:$0xff]
      %v1167 = vld [vmem:[%s1139 + $0x140] sm:$0xff]
      %v1168 = vld [vmem:[%s1139 + $0x150] sm:$0xff]
      %v1169 = vld [vmem:[%s1139 + $0x158] sm:$0xff]
      %v1170 = vld [vmem:[%s1139 + $0x168] sm:$0xff]
      %v1171 = vld [vmem:[%s1139 + $0x170] sm:$0xff]
      %v1172 = vlaneseq
      %v1173 = vshrl.u32 %v1172, 7
      %v1174 = vsub.s32 6, %v1173
      %v1175 = vrot.slane %v569, %v1174
      %v1176 = vmul.f32 %v1140, %v1175
      %v1177 = vmul.f32 %v1141, %v1175
      %v1178 = vmul.f32 %v1142, %v1175
      %v1179 = vmul.f32 %v1143, %v1175
      %v1180 = vmul.f32 %v1144, %v1175
      %v1181 = vmul.f32 %v1145, %v1175
      %v1182 = vmul.f32 %v1146, %v1175
      %v1183 = vmul.f32 %v1147, %v1175
      %v1184 = vmul.f32 %v1148, %v1175
      %v1185 = vmul.f32 %v1149, %v1175
      %v1186 = vmul.f32 %v1150, %v1175
      %v1187 = vmul.f32 %v1151, %v1175
      %v1188 = vmul.f32 %v1152, %v1175
      %v1189 = vmul.f32 %v1153, %v1175
      %v1190 = vmul.f32 %v1154, %v1175
      %v1191 = vmul.f32 %v1155, %v1175
      %v1192 = vmul.f32 %v1156, %v1175
      %v1193 = vmul.f32 %v1157, %v1175
      %v1194 = vmul.f32 %v1158, %v1175
      %v1195 = vmul.f32 %v1159, %v1175
      %v1196 = vmul.f32 %v1160, %v1175
      %v1197 = vmul.f32 %v1161, %v1175
      %v1198 = vmul.f32 %v1162, %v1175
      %v1199 = vmul.f32 %v1163, %v1175
      %v1200 = vmul.f32 %v1164, %v1175
      %v1201 = vmul.f32 %v1165, %v1175
      %v1202 = vmul.f32 %v1166, %v1175
      %v1203 = vmul.f32 %v1167, %v1175
      %v1204 = vmul.f32 %v1168, %v1175
      %v1205 = vmul.f32 %v1169, %v1175
      %v1206 = vmul.f32 %v1170, %v1175
      %v1207 = vmul.f32 %v1171, %v1175
      %v1208 = vadd.f32 %v1107, %v1176
      %v1209 = vadd.f32 %v1108, %v1177
      %v1210 = vadd.f32 %v1109, %v1178
      %v1211 = vadd.f32 %v1110, %v1179
      %v1212 = vadd.f32 %v1111, %v1180
      %v1213 = vadd.f32 %v1112, %v1181
      %v1214 = vadd.f32 %v1113, %v1182
      %v1215 = vadd.f32 %v1114, %v1183
      %v1216 = vadd.f32 %v1115, %v1184
      %v1217 = vadd.f32 %v1116, %v1185
      %v1218 = vadd.f32 %v1117, %v1186
      %v1219 = vadd.f32 %v1118, %v1187
      %v1220 = vadd.f32 %v1119, %v1188
      %v1221 = vadd.f32 %v1120, %v1189
      %v1222 = vadd.f32 %v1121, %v1190
      %v1223 = vadd.f32 %v1122, %v1191
      %v1224 = vadd.f32 %v1123, %v1192
      %v1225 = vadd.f32 %v1124, %v1193
      %v1226 = vadd.f32 %v1125, %v1194
      %v1227 = vadd.f32 %v1126, %v1195
      %v1228 = vadd.f32 %v1127, %v1196
      %v1229 = vadd.f32 %v1128, %v1197
      %v1230 = vadd.f32 %v1129, %v1198
      %v1231 = vadd.f32 %v1130, %v1199
      %v1232 = vadd.f32 %v1131, %v1200
      %v1233 = vadd.f32 %v1132, %v1201
      %v1234 = vadd.f32 %v1133, %v1202
      %v1235 = vadd.f32 %v1134, %v1203
      %v1236 = vadd.f32 %v1135, %v1204
      %v1237 = vadd.f32 %v1136, %v1205
      %v1238 = vadd.f32 %v1137, %v1206
      %v1239 = vadd.f32 %v1138, %v1207
      %v1240 = vld [vmem:[%s1139 + $0x1] sm:$0xff]
      %v1241 = vld [vmem:[%s1139 + $0x9] sm:$0xff]
      %v1242 = vld [vmem:[%s1139 + $0x19] sm:$0xff]
      %v1243 = vld [vmem:[%s1139 + $0x21] sm:$0xff]
      %v1244 = vld [vmem:[%s1139 + $0x31] sm:$0xff]
      %v1245 = vld [vmem:[%s1139 + $0x39] sm:$0xff]
      %v1246 = vld [vmem:[%s1139 + $0x49] sm:$0xff]
      %v1247 = vld [vmem:[%s1139 + $0x51] sm:$0xff]
      %v1248 = vld [vmem:[%s1139 + $0x61] sm:$0xff]
      %v1249 = vld [vmem:[%s1139 + $0x69] sm:$0xff]
      %v1250 = vld [vmem:[%s1139 + $0x79] sm:$0xff]
      %v1251 = vld [vmem:[%s1139 + $0x81] sm:$0xff]
      %v1252 = vld [vmem:[%s1139 + $0x91] sm:$0xff]
      %v1253 = vld [vmem:[%s1139 + $0x99] sm:$0xff]
      %v1254 = vld [vmem:[%s1139 + $0xa9] sm:$0xff]
      %v1255 = vld [vmem:[%s1139 + $0xb1] sm:$0xff]
      %v1256 = vld [vmem:[%s1139 + $0xc1] sm:$0xff]
      %v1257 = vld [vmem:[%s1139 + $0xc9] sm:$0xff]
      %v1258 = vld [vmem:[%s1139 + $0xd9] sm:$0xff]
      %v1259 = vld [vmem:[%s1139 + $0xe1] sm:$0xff]
      %v1260 = vld [vmem:[%s1139 + $0xf1] sm:$0xff]
      %v1261 = vld [vmem:[%s1139 + $0xf9] sm:$0xff]
      %v1262 = vld [vmem:[%s1139 + $0x109] sm:$0xff]
      %v1263 = vld [vmem:[%s1139 + $0x111] sm:$0xff]
      %v1264 = vld [vmem:[%s1139 + $0x121] sm:$0xff]
      %v1265 = vld [vmem:[%s1139 + $0x129] sm:$0xff]
      %v1266 = vld [vmem:[%s1139 + $0x139] sm:$0xff]
      %v1267 = vld [vmem:[%s1139 + $0x141] sm:$0xff]
      %v1268 = vld [vmem:[%s1139 + $0x151] sm:$0xff]
      %v1269 = vld [vmem:[%s1139 + $0x159] sm:$0xff]
      %v1270 = vld [vmem:[%s1139 + $0x169] sm:$0xff]
      %v1271 = vld [vmem:[%s1139 + $0x171] sm:$0xff]
      %v1272 = vlaneseq
      %v1273 = vshrl.u32 %v1272, 7
      %v1274 = vsub.s32 7, %v1273
      %v1275 = vrot.slane %v569, %v1274
      %v1276 = vmul.f32 %v1240, %v1275
      %v1277 = vmul.f32 %v1241, %v1275
      %v1278 = vmul.f32 %v1242, %v1275
      %v1279 = vmul.f32 %v1243, %v1275
      %v1280 = vmul.f32 %v1244, %v1275
      %v1281 = vmul.f32 %v1245, %v1275
      %v1282 = vmul.f32 %v1246, %v1275
      %v1283 = vmul.f32 %v1247, %v1275
      %v1284 = vmul.f32 %v1248, %v1275
      %v1285 = vmul.f32 %v1249, %v1275
      %v1286 = vmul.f32 %v1250, %v1275
      %v1287 = vmul.f32 %v1251, %v1275
      %v1288 = vmul.f32 %v1252, %v1275
      %v1289 = vmul.f32 %v1253, %v1275
      %v1290 = vmul.f32 %v1254, %v1275
      %v1291 = vmul.f32 %v1255, %v1275
      %v1292 = vmul.f32 %v1256, %v1275
      %v1293 = vmul.f32 %v1257, %v1275
      %v1294 = vmul.f32 %v1258, %v1275
      %v1295 = vmul.f32 %v1259, %v1275
      %v1296 = vmul.f32 %v1260, %v1275
      %v1297 = vmul.f32 %v1261, %v1275
      %v1298 = vmul.f32 %v1262, %v1275
      %v1299 = vmul.f32 %v1263, %v1275
      %v1300 = vmul.f32 %v1264, %v1275
      %v1301 = vmul.f32 %v1265, %v1275
      %v1302 = vmul.f32 %v1266, %v1275
      %v1303 = vmul.f32 %v1267, %v1275
      %v1304 = vmul.f32 %v1268, %v1275
      %v1305 = vmul.f32 %v1269, %v1275
      %v1306 = vmul.f32 %v1270, %v1275
      %v1307 = vmul.f32 %v1271, %v1275
      %v1308 = vadd.f32 %v1208, %v1276
      %v1309 = vadd.f32 %v1209, %v1277
      %v1310 = vadd.f32 %v1210, %v1278
      %v1311 = vadd.f32 %v1211, %v1279
      %v1312 = vadd.f32 %v1212, %v1280
      %v1313 = vadd.f32 %v1213, %v1281
      %v1314 = vadd.f32 %v1214, %v1282
      %v1315 = vadd.f32 %v1215, %v1283
      %v1316 = vadd.f32 %v1216, %v1284
      %v1317 = vadd.f32 %v1217, %v1285
      %v1318 = vadd.f32 %v1218, %v1286
      %v1319 = vadd.f32 %v1219, %v1287
      %v1320 = vadd.f32 %v1220, %v1288
      %v1321 = vadd.f32 %v1221, %v1289
      %v1322 = vadd.f32 %v1222, %v1290
      %v1323 = vadd.f32 %v1223, %v1291
      %v1324 = vadd.f32 %v1224, %v1292
      %v1325 = vadd.f32 %v1225, %v1293
      %v1326 = vadd.f32 %v1226, %v1294
      %v1327 = vadd.f32 %v1227, %v1295
      %v1328 = vadd.f32 %v1228, %v1296
      %v1329 = vadd.f32 %v1229, %v1297
      %v1330 = vadd.f32 %v1230, %v1298
      %v1331 = vadd.f32 %v1231, %v1299
      %v1332 = vadd.f32 %v1232, %v1300
      %v1333 = vadd.f32 %v1233, %v1301
      %v1334 = vadd.f32 %v1234, %v1302
      %v1335 = vadd.f32 %v1235, %v1303
      %v1336 = vadd.f32 %v1236, %v1304
      %v1337 = vadd.f32 %v1237, %v1305
      %v1338 = vadd.f32 %v1238, %v1306
      %v1339 = vadd.f32 %v1239, %v1307
      %v1340 = vld [vmem:[%s1139 + $0x2] sm:$0xff]
      %v1341 = vld [vmem:[%s1139 + $0xa] sm:$0xff]
      %v1342 = vld [vmem:[%s1139 + $0x1a] sm:$0xff]
      %v1343 = vld [vmem:[%s1139 + $0x22] sm:$0xff]
      %v1344 = vld [vmem:[%s1139 + $0x32] sm:$0xff]
      %v1345 = vld [vmem:[%s1139 + $0x3a] sm:$0xff]
      %v1346 = vld [vmem:[%s1139 + $0x4a] sm:$0xff]
      %v1347 = vld [vmem:[%s1139 + $0x52] sm:$0xff]
      %v1348 = vld [vmem:[%s1139 + $0x62] sm:$0xff]
      %v1349 = vld [vmem:[%s1139 + $0x6a] sm:$0xff]
      %v1350 = vld [vmem:[%s1139 + $0x7a] sm:$0xff]
      %v1351 = vld [vmem:[%s1139 + $0x82] sm:$0xff]
      %v1352 = vld [vmem:[%s1139 + $0x92] sm:$0xff]
      %v1353 = vld [vmem:[%s1139 + $0x9a] sm:$0xff]
      %v1354 = vld [vmem:[%s1139 + $0xaa] sm:$0xff]
      %v1355 = vld [vmem:[%s1139 + $0xb2] sm:$0xff]
      %v1356 = vld [vmem:[%s1139 + $0xc2] sm:$0xff]
      %v1357 = vld [vmem:[%s1139 + $0xca] sm:$0xff]
      %v1358 = vld [vmem:[%s1139 + $0xda] sm:$0xff]
      %v1359 = vld [vmem:[%s1139 + $0xe2] sm:$0xff]
      %v1360 = vld [vmem:[%s1139 + $0xf2] sm:$0xff]
      %v1361 = vld [vmem:[%s1139 + $0xfa] sm:$0xff]
      %v1362 = vld [vmem:[%s1139 + $0x10a] sm:$0xff]
      %v1363 = vld [vmem:[%s1139 + $0x112] sm:$0xff]
      %v1364 = vld [vmem:[%s1139 + $0x122] sm:$0xff]
      %v1365 = vld [vmem:[%s1139 + $0x12a] sm:$0xff]
      %v1366 = vld [vmem:[%s1139 + $0x13a] sm:$0xff]
      %v1367 = vld [vmem:[%s1139 + $0x142] sm:$0xff]
      %v1368 = vld [vmem:[%s1139 + $0x152] sm:$0xff]
      %v1369 = vld [vmem:[%s1139 + $0x15a] sm:$0xff]
      %v1370 = vld [vmem:[%s1139 + $0x16a] sm:$0xff]
      %v1371 = vld [vmem:[%s1139 + $0x172] sm:$0xff]
      %v1372 = vlaneseq
      %v1373 = vshrl.u32 %v1372, 7
      %v1374 = vsub.s32 0, %v1373
      %v1375 = vrot.slane %v570, %v1374
      %v1376 = vmul.f32 %v1340, %v1375
      %v1377 = vmul.f32 %v1341, %v1375
      %v1378 = vmul.f32 %v1342, %v1375
      %v1379 = vmul.f32 %v1343, %v1375
      %v1380 = vmul.f32 %v1344, %v1375
      %v1381 = vmul.f32 %v1345, %v1375
      %v1382 = vmul.f32 %v1346, %v1375
      %v1383 = vmul.f32 %v1347, %v1375
      %v1384 = vmul.f32 %v1348, %v1375
      %v1385 = vmul.f32 %v1349, %v1375
      %v1386 = vmul.f32 %v1350, %v1375
      %v1387 = vmul.f32 %v1351, %v1375
      %v1388 = vmul.f32 %v1352, %v1375
      %v1389 = vmul.f32 %v1353, %v1375
      %v1390 = vmul.f32 %v1354, %v1375
      %v1391 = vmul.f32 %v1355, %v1375
      %v1392 = vmul.f32 %v1356, %v1375
      %v1393 = vmul.f32 %v1357, %v1375
      %v1394 = vmul.f32 %v1358, %v1375
      %v1395 = vmul.f32 %v1359, %v1375
      %v1396 = vmul.f32 %v1360, %v1375
      %v1397 = vmul.f32 %v1361, %v1375
      %v1398 = vmul.f32 %v1362, %v1375
      %v1399 = vmul.f32 %v1363, %v1375
      %v1400 = vmul.f32 %v1364, %v1375
      %v1401 = vmul.f32 %v1365, %v1375
      %v1402 = vmul.f32 %v1366, %v1375
      %v1403 = vmul.f32 %v1367, %v1375
      %v1404 = vmul.f32 %v1368, %v1375
      %v1405 = vmul.f32 %v1369, %v1375
      %v1406 = vmul.f32 %v1370, %v1375
      %v1407 = vmul.f32 %v1371, %v1375
      %v1408 = vadd.f32 %v1308, %v1376
      %v1409 = vadd.f32 %v1309, %v1377
      %v1410 = vadd.f32 %v1310, %v1378
      %v1411 = vadd.f32 %v1311, %v1379
      %v1412 = vadd.f32 %v1312, %v1380
      %v1413 = vadd.f32 %v1313, %v1381
      %v1414 = vadd.f32 %v1314, %v1382
      %v1415 = vadd.f32 %v1315, %v1383
      %v1416 = vadd.f32 %v1316, %v1384
      %v1417 = vadd.f32 %v1317, %v1385
      %v1418 = vadd.f32 %v1318, %v1386
      %v1419 = vadd.f32 %v1319, %v1387
      %v1420 = vadd.f32 %v1320, %v1388
      %v1421 = vadd.f32 %v1321, %v1389
      %v1422 = vadd.f32 %v1322, %v1390
      %v1423 = vadd.f32 %v1323, %v1391
      %v1424 = vadd.f32 %v1324, %v1392
      %v1425 = vadd.f32 %v1325, %v1393
      %v1426 = vadd.f32 %v1326, %v1394
      %v1427 = vadd.f32 %v1327, %v1395
      %v1428 = vadd.f32 %v1328, %v1396
      %v1429 = vadd.f32 %v1329, %v1397
      %v1430 = vadd.f32 %v1330, %v1398
      %v1431 = vadd.f32 %v1331, %v1399
      %v1432 = vadd.f32 %v1332, %v1400
      %v1433 = vadd.f32 %v1333, %v1401
      %v1434 = vadd.f32 %v1334, %v1402
      %v1435 = vadd.f32 %v1335, %v1403
      %v1436 = vadd.f32 %v1336, %v1404
      %v1437 = vadd.f32 %v1337, %v1405
      %v1438 = vadd.f32 %v1338, %v1406
      %v1439 = vadd.f32 %v1339, %v1407
      %v1440 = vpack.c.bf16 %v1409, %v1408
      %v1441 = vpack.c.bf16 %v1411, %v1410
      %v1442 = vpack.c.bf16 %v1413, %v1412
      %v1443 = vpack.c.bf16 %v1415, %v1414
      %v1444 = vpack.c.bf16 %v1417, %v1416
      %v1445 = vpack.c.bf16 %v1419, %v1418
      %v1446 = vpack.c.bf16 %v1421, %v1420
      %v1447 = vpack.c.bf16 %v1423, %v1422
      %v1448 = vpack.c.bf16 %v1425, %v1424
      %v1449 = vpack.c.bf16 %v1427, %v1426
      %v1450 = vpack.c.bf16 %v1429, %v1428
      %v1451 = vpack.c.bf16 %v1431, %v1430
      %v1452 = vpack.c.bf16 %v1433, %v1432
      %v1453 = vpack.c.bf16 %v1435, %v1434
      %v1454 = vpack.c.bf16 %v1437, %v1436
      %v1455 = vpack.c.bf16 %v1439, %v1438
      %v1472 = vunpack.c.l.b16 %v1440
      %v1473 = vunpack.c.h.b16 %v1440
      %v1474 = vunpack.c.l.b16 %v1441
      %v1475 = vunpack.c.h.b16 %v1441
      %v1476 = vunpack.c.l.b16 %v1442
      %v1477 = vunpack.c.h.b16 %v1442
      %v1478 = vunpack.c.l.b16 %v1443
      %v1479 = vunpack.c.h.b16 %v1443
      %v1480 = vunpack.c.l.b16 %v1444
      %v1481 = vunpack.c.h.b16 %v1444
      %v1482 = vunpack.c.l.b16 %v1445
      %v1483 = vunpack.c.h.b16 %v1445
      %v1484 = vunpack.c.l.b16 %v1446
      %v1485 = vunpack.c.h.b16 %v1446
      %v1486 = vunpack.c.l.b16 %v1447
      %v1487 = vunpack.c.h.b16 %v1447
      %v1488 = vunpack.c.l.b16 %v1448
      %v1489 = vunpack.c.h.b16 %v1448
      %v1490 = vunpack.c.l.b16 %v1449
      %v1491 = vunpack.c.h.b16 %v1449
      %v1492 = vunpack.c.l.b16 %v1450
      %v1493 = vunpack.c.h.b16 %v1450
      %v1494 = vunpack.c.l.b16 %v1451
      %v1495 = vunpack.c.h.b16 %v1451
      %v1496 = vunpack.c.l.b16 %v1452
      %v1497 = vunpack.c.h.b16 %v1452
      %v1498 = vunpack.c.l.b16 %v1453
      %v1499 = vunpack.c.h.b16 %v1453
      %v1500 = vunpack.c.l.b16 %v1454
      %v1501 = vunpack.c.h.b16 %v1454
      %v1502 = vunpack.c.l.b16 %v1455
      %v1503 = vunpack.c.h.b16 %v1455
      %v1504 = vpack.c.b16 %v1472, %v1472
      %v1505 = vpack.c.b16 %v1473, %v1473
      %v1506 = vpack.c.b16 %v1474, %v1474
      %v1507 = vpack.c.b16 %v1475, %v1475
      %v1508 = vpack.c.b16 %v1476, %v1476
      %v1509 = vpack.c.b16 %v1477, %v1477
      %v1510 = vpack.c.b16 %v1478, %v1478
      %v1511 = vpack.c.b16 %v1479, %v1479
      %v1512 = vpack.c.b16 %v1480, %v1480
      %v1513 = vpack.c.b16 %v1481, %v1481
      %v1514 = vpack.c.b16 %v1482, %v1482
      %v1515 = vpack.c.b16 %v1483, %v1483
      %v1516 = vpack.c.b16 %v1484, %v1484
      %v1517 = vpack.c.b16 %v1485, %v1485
      %v1518 = vpack.c.b16 %v1486, %v1486
      %v1519 = vpack.c.b16 %v1487, %v1487
      %v1520 = vpack.c.b16 %v1488, %v1488
      %v1521 = vpack.c.b16 %v1489, %v1489
      %v1522 = vpack.c.b16 %v1490, %v1490
      %v1523 = vpack.c.b16 %v1491, %v1491
      %v1524 = vpack.c.b16 %v1492, %v1492
      %v1525 = vpack.c.b16 %v1493, %v1493
      %v1526 = vpack.c.b16 %v1494, %v1494
      %v1527 = vpack.c.b16 %v1495, %v1495
      %v1528 = vpack.c.b16 %v1496, %v1496
      %v1529 = vpack.c.b16 %v1497, %v1497
      %v1530 = vpack.c.b16 %v1498, %v1498
      %v1531 = vpack.c.b16 %v1499, %v1499
      %v1532 = vpack.c.b16 %v1500, %v1500
      %v1533 = vpack.c.b16 %v1501, %v1501
      %v1534 = vpack.c.b16 %v1502, %v1502
      %v1535 = vpack.c.b16 %v1503, %v1503
      %vm1568 = vcmask 191488
      %1569 = vst.msk [vmem:[%s262] sm:$0xf] %vm1568, %v1504
      %1570 = vst.msk [vmem:[%s262 + $0x4] sm:$0xf] %vm1568, %v1505
      %1571 = vst.msk [vmem:[%s262 + $0x8] sm:$0xf] %vm1568, %v1506
      %1572 = vst.msk [vmem:[%s262 + $0xc] sm:$0xf] %vm1568, %v1507
      %1573 = vst.msk [vmem:[%s262 + $0x10] sm:$0xf] %vm1568, %v1508
      %1574 = vst.msk [vmem:[%s262 + $0x14] sm:$0xf] %vm1568, %v1509
      %1575 = vst.msk [vmem:[%s262 + $0x18] sm:$0xf] %vm1568, %v1510
      %1576 = vst.msk [vmem:[%s262 + $0x1c] sm:$0xf] %vm1568, %v1511
      %1577 = vst.msk [vmem:[%s262 + $0x20] sm:$0xf] %vm1568, %v1512
      %1578 = vst.msk [vmem:[%s262 + $0x24] sm:$0xf] %vm1568, %v1513
      %1579 = vst.msk [vmem:[%s262 + $0x28] sm:$0xf] %vm1568, %v1514
      %1580 = vst.msk [vmem:[%s262 + $0x2c] sm:$0xf] %vm1568, %v1515
      %1581 = vst.msk [vmem:[%s262 + $0x30] sm:$0xf] %vm1568, %v1516
      %1582 = vst.msk [vmem:[%s262 + $0x34] sm:$0xf] %vm1568, %v1517
      %1583 = vst.msk [vmem:[%s262 + $0x38] sm:$0xf] %vm1568, %v1518
      %1584 = vst.msk [vmem:[%s262 + $0x3c] sm:$0xf] %vm1568, %v1519
      %1585 = vst.msk [vmem:[%s262 + $0x40] sm:$0xf] %vm1568, %v1520
      %1586 = vst.msk [vmem:[%s262 + $0x44] sm:$0xf] %vm1568, %v1521
      %1587 = vst.msk [vmem:[%s262 + $0x48] sm:$0xf] %vm1568, %v1522
      %1588 = vst.msk [vmem:[%s262 + $0x4c] sm:$0xf] %vm1568, %v1523
      %1589 = vst.msk [vmem:[%s262 + $0x50] sm:$0xf] %vm1568, %v1524
      %1590 = vst.msk [vmem:[%s262 + $0x54] sm:$0xf] %vm1568, %v1525
      %1591 = vst.msk [vmem:[%s262 + $0x58] sm:$0xf] %vm1568, %v1526
      %1592 = vst.msk [vmem:[%s262 + $0x5c] sm:$0xf] %vm1568, %v1527
      %1593 = vst.msk [vmem:[%s262 + $0x60] sm:$0xf] %vm1568, %v1528
      %1594 = vst.msk [vmem:[%s262 + $0x64] sm:$0xf] %vm1568, %v1529
      %1595 = vst.msk [vmem:[%s262 + $0x68] sm:$0xf] %vm1568, %v1530
      %1596 = vst.msk [vmem:[%s262 + $0x6c] sm:$0xf] %vm1568, %v1531
      %1597 = vst.msk [vmem:[%s262 + $0x70] sm:$0xf] %vm1568, %v1532
      %1598 = vst.msk [vmem:[%s262 + $0x74] sm:$0xf] %vm1568, %v1533
      %1599 = vst.msk [vmem:[%s262 + $0x78] sm:$0xf] %vm1568, %v1534
      %1600 = vst.msk [vmem:[%s262 + $0x7c] sm:$0xf] %vm1568, %v1535
      %v1601 = vsel %vm536, %v1408, 0.0
      %v1602 = vsel %vm536, %v1409, 0.0
      %v1603 = vadd.f32 %v1601, %v1602
      %v1604 = vsel %vm536, %v1410, 0.0
      %v1605 = vadd.f32 %v1603, %v1604
      %v1606 = vsel %vm536, %v1411, 0.0
      %v1607 = vadd.f32 %v1605, %v1606
      %v1608 = vsel %vm536, %v1412, 0.0
      %v1609 = vadd.f32 %v1607, %v1608
      %v1610 = vsel %vm536, %v1413, 0.0
      %v1611 = vadd.f32 %v1609, %v1610
      %v1612 = vsel %vm536, %v1414, 0.0
      %v1613 = vadd.f32 %v1611, %v1612
      %v1614 = vsel %vm536, %v1415, 0.0
      %v1615 = vadd.f32 %v1613, %v1614
      %v1616 = vsel %vm536, %v1416, 0.0
      %v1617 = vadd.f32 %v1615, %v1616
      %v1618 = vsel %vm536, %v1417, 0.0
      %v1619 = vadd.f32 %v1617, %v1618
      %v1620 = vsel %vm536, %v1418, 0.0
      %v1621 = vadd.f32 %v1619, %v1620
      %v1622 = vsel %vm536, %v1419, 0.0
      %v1623 = vadd.f32 %v1621, %v1622
      %v1624 = vsel %vm536, %v1420, 0.0
      %v1625 = vadd.f32 %v1623, %v1624
      %v1626 = vsel %vm536, %v1421, 0.0
      %v1627 = vadd.f32 %v1625, %v1626
      %v1628 = vsel %vm536, %v1422, 0.0
      %v1629 = vadd.f32 %v1627, %v1628
      %v1630 = vsel %vm536, %v1423, 0.0
      %v1631 = vadd.f32 %v1629, %v1630
      %v1632 = vsel %vm536, %v1424, 0.0
      %v1633 = vadd.f32 %v1631, %v1632
      %v1634 = vsel %vm536, %v1425, 0.0
      %v1635 = vadd.f32 %v1633, %v1634
      %v1636 = vsel %vm536, %v1426, 0.0
      %v1637 = vadd.f32 %v1635, %v1636
      %v1638 = vsel %vm536, %v1427, 0.0
      %v1639 = vadd.f32 %v1637, %v1638
      %v1640 = vsel %vm536, %v1428, 0.0
      %v1641 = vadd.f32 %v1639, %v1640
      %v1642 = vsel %vm536, %v1429, 0.0
      %v1643 = vadd.f32 %v1641, %v1642
      %v1644 = vsel %vm536, %v1430, 0.0
      %v1645 = vadd.f32 %v1643, %v1644
      %v1646 = vsel %vm536, %v1431, 0.0
      %v1647 = vadd.f32 %v1645, %v1646
      %v1648 = vsel %vm536, %v1432, 0.0
      %v1649 = vadd.f32 %v1647, %v1648
      %v1650 = vsel %vm536, %v1433, 0.0
      %v1651 = vadd.f32 %v1649, %v1650
      %v1652 = vsel %vm536, %v1434, 0.0
      %v1653 = vadd.f32 %v1651, %v1652
      %v1654 = vsel %vm536, %v1435, 0.0
      %v1655 = vadd.f32 %v1653, %v1654
      %v1656 = vsel %vm536, %v1436, 0.0
      %v1657 = vadd.f32 %v1655, %v1656
      %v1658 = vsel %vm536, %v1437, 0.0
      %v1659 = vadd.f32 %v1657, %v1658
      %v1660 = vsel %vm536, %v1438, 0.0
      %v1661 = vadd.f32 %v1659, %v1660
      %v1662 = vsel %vm536, %v1439, 0.0
      %v1663 = vadd.f32 %v1661, %v1662
      %v1664 = vrot.slane %v1663, 4
      %v1665 = vadd.f32 %v1663, %v1664
      %v1666 = vrot.slane %v1665, 2
      %v1667 = vadd.f32 %v1665, %v1666
      %v1668 = vrot.slane %v1667, 1
      %v1669 = vadd.f32 %v1667, %v1668
      %vm1670 = vcmask 188416
      %1671 = vst.msk [vmem:[%s265] sm:$0x1] %vm1670, %v1669
      %v1672 = vmul.f32 %v1408, %v1408
      %v1673 = vmul.f32 %v1409, %v1409
      %v1674 = vmul.f32 %v1410, %v1410
      %v1675 = vmul.f32 %v1411, %v1411
      %v1676 = vmul.f32 %v1412, %v1412
      %v1677 = vmul.f32 %v1413, %v1413
      %v1678 = vmul.f32 %v1414, %v1414
      %v1679 = vmul.f32 %v1415, %v1415
      %v1680 = vmul.f32 %v1416, %v1416
      %v1681 = vmul.f32 %v1417, %v1417
      %v1682 = vmul.f32 %v1418, %v1418
      %v1683 = vmul.f32 %v1419, %v1419
      %v1684 = vmul.f32 %v1420, %v1420
      %v1685 = vmul.f32 %v1421, %v1421
      %v1686 = vmul.f32 %v1422, %v1422
      %v1687 = vmul.f32 %v1423, %v1423
      %v1688 = vmul.f32 %v1424, %v1424
      %v1689 = vmul.f32 %v1425, %v1425
      %v1690 = vmul.f32 %v1426, %v1426
      %v1691 = vmul.f32 %v1427, %v1427
      %v1692 = vmul.f32 %v1428, %v1428
      %v1693 = vmul.f32 %v1429, %v1429
      %v1694 = vmul.f32 %v1430, %v1430
      %v1695 = vmul.f32 %v1431, %v1431
      %v1696 = vmul.f32 %v1432, %v1432
      %v1697 = vmul.f32 %v1433, %v1433
      %v1698 = vmul.f32 %v1434, %v1434
      %v1699 = vmul.f32 %v1435, %v1435
      %v1700 = vmul.f32 %v1436, %v1436
      %v1701 = vmul.f32 %v1437, %v1437
      %v1702 = vmul.f32 %v1438, %v1438
      %v1703 = vmul.f32 %v1439, %v1439
      %v1704 = vsel %vm536, %v1672, 0.0
      %v1705 = vsel %vm536, %v1673, 0.0
      %v1706 = vadd.f32 %v1704, %v1705
      %v1707 = vsel %vm536, %v1674, 0.0
      %v1708 = vadd.f32 %v1706, %v1707
      %v1709 = vsel %vm536, %v1675, 0.0
      %v1710 = vadd.f32 %v1708, %v1709
      %v1711 = vsel %vm536, %v1676, 0.0
      %v1712 = vadd.f32 %v1710, %v1711
      %v1713 = vsel %vm536, %v1677, 0.0
      %v1714 = vadd.f32 %v1712, %v1713
      %v1715 = vsel %vm536, %v1678, 0.0
      %v1716 = vadd.f32 %v1714, %v1715
      %v1717 = vsel %vm536, %v1679, 0.0
      %v1718 = vadd.f32 %v1716, %v1717
      %v1719 = vsel %vm536, %v1680, 0.0
      %v1720 = vadd.f32 %v1718, %v1719
      %v1721 = vsel %vm536, %v1681, 0.0
      %v1722 = vadd.f32 %v1720, %v1721
      %v1723 = vsel %vm536, %v1682, 0.0
      %v1724 = vadd.f32 %v1722, %v1723
      %v1725 = vsel %vm536, %v1683, 0.0
      %v1726 = vadd.f32 %v1724, %v1725
      %v1727 = vsel %vm536, %v1684, 0.0
      %v1728 = vadd.f32 %v1726, %v1727
      %v1729 = vsel %vm536, %v1685, 0.0
      %v1730 = vadd.f32 %v1728, %v1729
      %v1731 = vsel %vm536, %v1686, 0.0
      %v1732 = vadd.f32 %v1730, %v1731
      %v1733 = vsel %vm536, %v1687, 0.0
      %v1734 = vadd.f32 %v1732, %v1733
      %v1735 = vsel %vm536, %v1688, 0.0
      %v1736 = vadd.f32 %v1734, %v1735
      %v1737 = vsel %vm536, %v1689, 0.0
      %v1738 = vadd.f32 %v1736, %v1737
      %v1739 = vsel %vm536, %v1690, 0.0
      %v1740 = vadd.f32 %v1738, %v1739
      %v1741 = vsel %vm536, %v1691, 0.0
      %v1742 = vadd.f32 %v1740, %v1741
      %v1743 = vsel %vm536, %v1692, 0.0
      %v1744 = vadd.f32 %v1742, %v1743
      %v1745 = vsel %vm536, %v1693, 0.0
      %v1746 = vadd.f32 %v1744, %v1745
      %v1747 = vsel %vm536, %v1694, 0.0
      %v1748 = vadd.f32 %v1746, %v1747
      %v1749 = vsel %vm536, %v1695, 0.0
      %v1750 = vadd.f32 %v1748, %v1749
      %v1751 = vsel %vm536, %v1696, 0.0
      %v1752 = vadd.f32 %v1750, %v1751
      %v1753 = vsel %vm536, %v1697, 0.0
      %v1754 = vadd.f32 %v1752, %v1753
      %v1755 = vsel %vm536, %v1698, 0.0
      %v1756 = vadd.f32 %v1754, %v1755
      %v1757 = vsel %vm536, %v1699, 0.0
      %v1758 = vadd.f32 %v1756, %v1757
      %v1759 = vsel %vm536, %v1700, 0.0
      %v1760 = vadd.f32 %v1758, %v1759
      %v1761 = vsel %vm536, %v1701, 0.0
      %v1762 = vadd.f32 %v1760, %v1761
      %v1763 = vsel %vm536, %v1702, 0.0
      %v1764 = vadd.f32 %v1762, %v1763
      %v1765 = vsel %vm536, %v1703, 0.0
      %v1766 = vadd.f32 %v1764, %v1765
      %v1767 = vrot.slane %v1766, 4
      %v1768 = vadd.f32 %v1766, %v1767
      %v1769 = vrot.slane %v1768, 2
      %v1770 = vadd.f32 %v1768, %v1769
      %v1771 = vrot.slane %v1770, 1
      %v1772 = vadd.f32 %v1770, %v1771
      %1773 = vst.msk [vmem:[%s268] sm:$0x1] %vm1670, %v1772
      %p1774 = scmp.lt.s32.totalorder %s18, 1
      %s1775 = scalar_select %p1774, %s18, 1
      %s1776 = smul.addr %s1775, 32
      %s1777 = smul.addr %s1776, 4
      %s1778 = scalar_lea.vmem %s4, %s1777
      %p1779 = scmp.lt.s32.totalorder %s18, 1
      %s1780 = scalar_select %p1779, %s18, 1
      %s1781 = scalar_lea.vmem %s5, %s1780
      %p1782 = scmp.lt.s32.totalorder %s18, 1
      %s1783 = scalar_select %p1782, %s18, 1
      %s1784 = scalar_lea.vmem %s6, %s1783
      // Predicated region
      $region41: #{mobilenet_v2_conv2d.5} parent=35 // pred_check
        %p1785 = pneg %p125
      $region42: #{mobilenet_v2_conv2d.5} parent=35 // pred_check_branch
        %1787 = sbr.rel (%p1785) target = $region44
      $region43: #{mobilenet_v2_conv2d.5} parent=35 // pred_region
        _
      $region44: #{mobilenet_v2_conv2d.5} parent=35 // pred_fallthru
        _
      // Predicated region
      $region45: #{mobilenet_v2_conv2d.5} parent=35 // pred_check
        %p1788 = pneg %p151
      $region46: #{mobilenet_v2_conv2d.5} parent=35 // pred_check_branch
        %1790 = sbr.rel (%p1788) target = $region48
      $region47: #{mobilenet_v2_conv2d.5} parent=35 // pred_region
        _
      $region48: #{mobilenet_v2_conv2d.5} parent=35 // pred_fallthru
        _
      // Predicated region
      $region49: #{mobilenet_v2_conv2d.5} parent=35 // pred_check
        %p1791 = pneg %p177
      $region50: #{mobilenet_v2_conv2d.5} parent=35 // pred_check_branch
        %1793 = sbr.rel (%p1791) target = $region52
      $region51: #{mobilenet_v2_conv2d.5} parent=35 // pred_region
        _
      $region52: #{mobilenet_v2_conv2d.5} parent=35 // pred_fallthru
        _
    $region36: #{mobilenet_v2_conv2d.5} parent=5 // pred_fallthru
      _
    %p1794 = scmp.le.s32.totalorder 2, %s13
    // Predicated region
    $region53: #{mobilenet_v2_conv2d.5} parent=5 // pred_check
      %p1795 = pneg %p1794
    $region54: #{mobilenet_v2_conv2d.5} parent=5 // pred_check_branch
      %1797 = sbr.rel (%p1795) target = $region56
    $region55: #{mobilenet_v2_conv2d.5} parent=5 // pred_region
      %s1798 = ssub.s32 %s13, 2
      // Predicated region
      $region57: #{mobilenet_v2_conv2d.5} parent=55 // pred_check
        %p1799 = pneg %p131
      $region58: #{mobilenet_v2_conv2d.5} parent=55 // pred_check_branch
        %1801 = sbr.rel (%p1799) target = $region60
      $region59: #{mobilenet_v2_conv2d.5} parent=55 // pred_region
        %p1802 = scmp.lt.s32.totalorder %s19, 1
        %s1803 = scalar_select %p1802, %s19, 1
        %s1804 = smul.addr %s1803, 32
        %s1805 = smul.addr %s1804, 4
        %s1806 = scalar_lea.vmem %s4, %s1805
      $region60: #{mobilenet_v2_conv2d.5} parent=55 // pred_fallthru
        _
      // Predicated region
      $region61: #{mobilenet_v2_conv2d.5} parent=55 // pred_check
        %p1807 = pneg %p157
      $region62: #{mobilenet_v2_conv2d.5} parent=55 // pred_check_branch
        %1809 = sbr.rel (%p1807) target = $region64
      $region63: #{mobilenet_v2_conv2d.5} parent=55 // pred_region
        %p1810 = scmp.lt.s32.totalorder %s19, 1
        %s1811 = scalar_select %p1810, %s19, 1
        %s1812 = scalar_lea.vmem %s5, %s1811
      $region64: #{mobilenet_v2_conv2d.5} parent=55 // pred_fallthru
        _
      // Predicated region
      $region65: #{mobilenet_v2_conv2d.5} parent=55 // pred_check
        %p1813 = pneg %p183
      $region66: #{mobilenet_v2_conv2d.5} parent=55 // pred_check_branch
        %1815 = sbr.rel (%p1813) target = $region68
      $region67: #{mobilenet_v2_conv2d.5} parent=55 // pred_region
        %p1816 = scmp.lt.s32.totalorder %s19, 1
        %s1817 = scalar_select %p1816, %s19, 1
        %s1818 = scalar_lea.vmem %s6, %s1817
      $region68: #{mobilenet_v2_conv2d.5} parent=55 // pred_fallthru
        _
    $region56: #{mobilenet_v2_conv2d.5} parent=5 // pred_fallthru
      _
  $region6: #{mobilenet_v2_conv2d.5} parent=0 // loop_footer
    %s17 = sadd.s32 1, %s13
  $region7: #{mobilenet_v2_conv2d.5} parent=0 // loop_footer_branch
    %12 = sbr.rel target = $region3
  $region8: #{mobilenet_v2_conv2d.5} parent=0 // loop_exit
    _

// kernel: mobilenet_v2_conv2d.6
$region0: #{mobilenet_v2_conv2d.6}
  #allocation0 [shape = 'u32[]', space=smem, size = 0x4, offset = 0x4, fixed_abs, tag = 'smem constant byte address 0x4 - core index']
  #allocation1 [shape = 'u32[144,128]{1,0:T(1,128)}', space=vmem, size = 0x12000, scoped, tag = 'internal scratch']
  %s0 = inlined_call_operand.vmem [shape: bf16[512,24], index: 0, kind: input, shape index: {}]
  %s1 = inlined_call_operand.vmem [shape: f32[1,24], index: 1, kind: input, shape index: {}]
  %s2 = inlined_call_operand.vmem [shape: f32[1,24], index: 2, kind: input, shape index: {}]
  %s3 = inlined_call_operand.vmem [shape: bf16[24,4], index: 3, kind: input, shape index: {}]
  %s4 = inlined_call_operand.vmem [shape: bf16[512,4], index: 4, kind: output, shape index: {0}]
  %s5 = inlined_call_operand.vmem [shape: f32[1,1,4], index: 5, kind: output, shape index: {1}]
  %s6 = inlined_call_operand.vmem [shape: f32[1,1,4], index: 6, kind: output, shape index: {2}]
  %7 = xla_tuple %s4, %s5, %s6
  %s8 = sld [smem:[#allocation0]]
  $region42: #{mobilenet_v2_conv2d.6} parent=0
    _
  %s10 = ssub.s32 1, %s8
  %s11 = scalar_select 0, %s10, %s8
  // Predicated region
  $region2: #{mobilenet_v2_conv2d.6} parent=0 // pred_check
    _
  $region3: #{mobilenet_v2_conv2d.6} parent=0 // pred_check_branch
    %13 = sbr.rel (0) target = $region5
  $region4: #{mobilenet_v2_conv2d.6} parent=0 // pred_region
    _
  $region5: #{mobilenet_v2_conv2d.6} parent=0 // pred_fallthru
    _
  // Predicated region
  $region6: #{mobilenet_v2_conv2d.6} parent=0 // pred_check
    _
  $region7: #{mobilenet_v2_conv2d.6} parent=0 // pred_check_branch
    %15 = sbr.rel (0) target = $region9
  $region8: #{mobilenet_v2_conv2d.6} parent=0 // pred_region
    _
  $region9: #{mobilenet_v2_conv2d.6} parent=0 // pred_fallthru
    _
  // Predicated region
  $region10: #{mobilenet_v2_conv2d.6} parent=0 // pred_check
    _
  $region11: #{mobilenet_v2_conv2d.6} parent=0 // pred_check_branch
    %17 = sbr.rel (0) target = $region13
  $region12: #{mobilenet_v2_conv2d.6} parent=0 // pred_region
    _
  $region13: #{mobilenet_v2_conv2d.6} parent=0 // pred_fallthru
    _
  // Predicated region
  $region14: #{mobilenet_v2_conv2d.6} parent=0 // pred_check
    _
  $region15: #{mobilenet_v2_conv2d.6} parent=0 // pred_check_branch
    %19 = sbr.rel (0) target = $region17
  $region16: #{mobilenet_v2_conv2d.6} parent=0 // pred_region
    _
  $region17: #{mobilenet_v2_conv2d.6} parent=0 // pred_fallthru
    _
  %v21 = vld [vmem:[%s0] sm:$0xf]
  %v22 = vld [vmem:[%s0 + $0x4] sm:$0xf]
  %v23 = vld [vmem:[%s0 + $0x8] sm:$0xf]
  %v24 = vld [vmem:[%s0 + $0xc] sm:$0xf]
  %v25 = vld [vmem:[%s0 + $0x10] sm:$0xf]
  %v26 = vld [vmem:[%s0 + $0x14] sm:$0xf]
  %v27 = vld [vmem:[%s0 + $0x18] sm:$0xf]
  %v28 = vld [vmem:[%s0 + $0x1c] sm:$0xf]
  %v29 = vld [vmem:[%s0 + $0x20] sm:$0xf]
  %v30 = vld [vmem:[%s0 + $0x24] sm:$0xf]
  %v31 = vld [vmem:[%s0 + $0x28] sm:$0xf]
  %v32 = vld [vmem:[%s0 + $0x2c] sm:$0xf]
  %v33 = vld [vmem:[%s0 + $0x30] sm:$0xf]
  %v34 = vld [vmem:[%s0 + $0x34] sm:$0xf]
  %v35 = vld [vmem:[%s0 + $0x38] sm:$0xf]
  %v36 = vld [vmem:[%s0 + $0x3c] sm:$0xf]
  %v37 = vld [vmem:[%s0 + $0x40] sm:$0xf]
  %v38 = vld [vmem:[%s0 + $0x44] sm:$0xf]
  %v39 = vld [vmem:[%s0 + $0x48] sm:$0xf]
  %v40 = vld [vmem:[%s0 + $0x4c] sm:$0xf]
  %v41 = vld [vmem:[%s0 + $0x50] sm:$0xf]
  %v42 = vld [vmem:[%s0 + $0x54] sm:$0xf]
  %v43 = vld [vmem:[%s0 + $0x58] sm:$0xf]
  %v44 = vld [vmem:[%s0 + $0x5c] sm:$0xf]
  %v45 = vld [vmem:[%s0 + $0x60] sm:$0xf]
  %v46 = vld [vmem:[%s0 + $0x64] sm:$0xf]
  %v47 = vld [vmem:[%s0 + $0x68] sm:$0xf]
  %v48 = vld [vmem:[%s0 + $0x6c] sm:$0xf]
  %v49 = vld [vmem:[%s0 + $0x70] sm:$0xf]
  %v50 = vld [vmem:[%s0 + $0x74] sm:$0xf]
  %v51 = vld [vmem:[%s0 + $0x78] sm:$0xf]
  %v52 = vld [vmem:[%s0 + $0x7c] sm:$0xf]
  %v53 = vld [vmem:[%s0 + $0x80] sm:$0xf]
  %v54 = vld [vmem:[%s0 + $0x84] sm:$0xf]
  %v55 = vld [vmem:[%s0 + $0x88] sm:$0xf]
  %v56 = vld [vmem:[%s0 + $0x8c] sm:$0xf]
  %v57 = vld [vmem:[%s0 + $0x90] sm:$0xf]
  %v58 = vld [vmem:[%s0 + $0x94] sm:$0xf]
  %v59 = vld [vmem:[%s0 + $0x98] sm:$0xf]
  %v60 = vld [vmem:[%s0 + $0x9c] sm:$0xf]
  %v61 = vld [vmem:[%s0 + $0xa0] sm:$0xf]
  %v62 = vld [vmem:[%s0 + $0xa4] sm:$0xf]
  %v63 = vld [vmem:[%s0 + $0xa8] sm:$0xf]
  %v64 = vld [vmem:[%s0 + $0xac] sm:$0xf]
  %v65 = vld [vmem:[%s0 + $0xb0] sm:$0xf]
  %v66 = vld [vmem:[%s0 + $0xb4] sm:$0xf]
  %v67 = vld [vmem:[%s0 + $0xb8] sm:$0xf]
  %v68 = vld [vmem:[%s0 + $0xbc] sm:$0xf]
  %v69 = vld [vmem:[%s0 + $0xc0] sm:$0xf]
  %v70 = vld [vmem:[%s0 + $0xc4] sm:$0xf]
  %v71 = vld [vmem:[%s0 + $0xc8] sm:$0xf]
  %v72 = vld [vmem:[%s0 + $0xcc] sm:$0xf]
  %v73 = vld [vmem:[%s0 + $0xd0] sm:$0xf]
  %v74 = vld [vmem:[%s0 + $0xd4] sm:$0xf]
  %v75 = vld [vmem:[%s0 + $0xd8] sm:$0xf]
  %v76 = vld [vmem:[%s0 + $0xdc] sm:$0xf]
  %v77 = vld [vmem:[%s0 + $0xe0] sm:$0xf]
  %v78 = vld [vmem:[%s0 + $0xe4] sm:$0xf]
  %v79 = vld [vmem:[%s0 + $0xe8] sm:$0xf]
  %v80 = vld [vmem:[%s0 + $0xec] sm:$0xf]
  %v81 = vld [vmem:[%s0 + $0xf0] sm:$0xf]
  %v82 = vld [vmem:[%s0 + $0xf4] sm:$0xf]
  %v83 = vld [vmem:[%s0 + $0xf8] sm:$0xf]
  %v84 = vld [vmem:[%s0 + $0xfc] sm:$0xf]
  %v85 = vunpack.c.l.bf16 %v21
  %v86 = vunpack.c.l.bf16 %v22
  %v87 = vunpack.c.l.bf16 %v23
  %v88 = vunpack.c.l.bf16 %v24
  %v89 = vunpack.c.l.bf16 %v25
  %v90 = vunpack.c.l.bf16 %v26
  %v91 = vunpack.c.l.bf16 %v27
  %v92 = vunpack.c.l.bf16 %v28
  %v93 = vunpack.c.l.bf16 %v29
  %v94 = vunpack.c.l.bf16 %v30
  %v95 = vunpack.c.l.bf16 %v31
  %v96 = vunpack.c.l.bf16 %v32
  %v97 = vunpack.c.l.bf16 %v33
  %v98 = vunpack.c.l.bf16 %v34
  %v99 = vunpack.c.l.bf16 %v35
  %v100 = vunpack.c.l.bf16 %v36
  %v101 = vunpack.c.l.bf16 %v37
  %v102 = vunpack.c.l.bf16 %v38
  %v103 = vunpack.c.l.bf16 %v39
  %v104 = vunpack.c.l.bf16 %v40
  %v105 = vunpack.c.l.bf16 %v41
  %v106 = vunpack.c.l.bf16 %v42
  %v107 = vunpack.c.l.bf16 %v43
  %v108 = vunpack.c.l.bf16 %v44
  %v109 = vunpack.c.l.bf16 %v45
  %v110 = vunpack.c.l.bf16 %v46
  %v111 = vunpack.c.l.bf16 %v47
  %v112 = vunpack.c.l.bf16 %v48
  %v113 = vunpack.c.l.bf16 %v49
  %v114 = vunpack.c.l.bf16 %v50
  %v115 = vunpack.c.l.bf16 %v51
  %v116 = vunpack.c.l.bf16 %v52
  %v117 = vunpack.c.l.bf16 %v53
  %v118 = vunpack.c.l.bf16 %v54
  %v119 = vunpack.c.l.bf16 %v55
  %v120 = vunpack.c.l.bf16 %v56
  %v121 = vunpack.c.l.bf16 %v57
  %v122 = vunpack.c.l.bf16 %v58
  %v123 = vunpack.c.l.bf16 %v59
  %v124 = vunpack.c.l.bf16 %v60
  %v125 = vunpack.c.l.bf16 %v61
  %v126 = vunpack.c.l.bf16 %v62
  %v127 = vunpack.c.l.bf16 %v63
  %v128 = vunpack.c.l.bf16 %v64
  %v129 = vunpack.c.l.bf16 %v65
  %v130 = vunpack.c.l.bf16 %v66
  %v131 = vunpack.c.l.bf16 %v67
  %v132 = vunpack.c.l.bf16 %v68
  %v133 = vunpack.c.l.bf16 %v69
  %v134 = vunpack.c.l.bf16 %v70
  %v135 = vunpack.c.l.bf16 %v71
  %v136 = vunpack.c.l.bf16 %v72
  %v137 = vunpack.c.l.bf16 %v73
  %v138 = vunpack.c.l.bf16 %v74
  %v139 = vunpack.c.l.bf16 %v75
  %v140 = vunpack.c.l.bf16 %v76
  %v141 = vunpack.c.l.bf16 %v77
  %v142 = vunpack.c.l.bf16 %v78
  %v143 = vunpack.c.l.bf16 %v79
  %v144 = vunpack.c.l.bf16 %v80
  %v145 = vunpack.c.l.bf16 %v81
  %v146 = vunpack.c.l.bf16 %v82
  %v147 = vunpack.c.l.bf16 %v83
  %v148 = vunpack.c.l.bf16 %v84
  %v149 = vld [vmem:[%s1] sm:$0x1]
  %v151 = vlaneseq
  %v152 = vshrl.u32 %v151, 7
  %v153 = vsub.s32 0, %v152
  %v154 = vrot.slane %v149, %v153
  %v156 = vmul.f32 %v85, %v154
  %v157 = vmul.f32 %v86, %v154
  %v158 = vmul.f32 %v87, %v154
  %v159 = vmul.f32 %v88, %v154
  %v160 = vmul.f32 %v89, %v154
  %v161 = vmul.f32 %v90, %v154
  %v162 = vmul.f32 %v91, %v154
  %v163 = vmul.f32 %v92, %v154
  %v164 = vmul.f32 %v93, %v154
  %v165 = vmul.f32 %v94, %v154
  %v166 = vmul.f32 %v95, %v154
  %v167 = vmul.f32 %v96, %v154
  %v168 = vmul.f32 %v97, %v154
  %v169 = vmul.f32 %v98, %v154
  %v170 = vmul.f32 %v99, %v154
  %v171 = vmul.f32 %v100, %v154
  %v172 = vmul.f32 %v101, %v154
  %v173 = vmul.f32 %v102, %v154
  %v174 = vmul.f32 %v103, %v154
  %v175 = vmul.f32 %v104, %v154
  %v176 = vmul.f32 %v105, %v154
  %v177 = vmul.f32 %v106, %v154
  %v178 = vmul.f32 %v107, %v154
  %v179 = vmul.f32 %v108, %v154
  %v180 = vmul.f32 %v109, %v154
  %v181 = vmul.f32 %v110, %v154
  %v182 = vmul.f32 %v111, %v154
  %v183 = vmul.f32 %v112, %v154
  %v184 = vmul.f32 %v113, %v154
  %v185 = vmul.f32 %v114, %v154
  %v186 = vmul.f32 %v115, %v154
  %v187 = vmul.f32 %v116, %v154
  %v188 = vmul.f32 %v117, %v154
  %v189 = vmul.f32 %v118, %v154
  %v190 = vmul.f32 %v119, %v154
  %v191 = vmul.f32 %v120, %v154
  %v192 = vmul.f32 %v121, %v154
  %v193 = vmul.f32 %v122, %v154
  %v194 = vmul.f32 %v123, %v154
  %v195 = vmul.f32 %v124, %v154
  %v196 = vmul.f32 %v125, %v154
  %v197 = vmul.f32 %v126, %v154
  %v198 = vmul.f32 %v127, %v154
  %v199 = vmul.f32 %v128, %v154
  %v200 = vmul.f32 %v129, %v154
  %v201 = vmul.f32 %v130, %v154
  %v202 = vmul.f32 %v131, %v154
  %v203 = vmul.f32 %v132, %v154
  %v204 = vmul.f32 %v133, %v154
  %v205 = vmul.f32 %v134, %v154
  %v206 = vmul.f32 %v135, %v154
  %v207 = vmul.f32 %v136, %v154
  %v208 = vmul.f32 %v137, %v154
  %v209 = vmul.f32 %v138, %v154
  %v210 = vmul.f32 %v139, %v154
  %v211 = vmul.f32 %v140, %v154
  %v212 = vmul.f32 %v141, %v154
  %v213 = vmul.f32 %v142, %v154
  %v214 = vmul.f32 %v143, %v154
  %v215 = vmul.f32 %v144, %v154
  %v216 = vmul.f32 %v145, %v154
  %v217 = vmul.f32 %v146, %v154
  %v218 = vmul.f32 %v147, %v154
  %v219 = vmul.f32 %v148, %v154
  %v220 = vld [vmem:[%s2] sm:$0x1]
  %v222 = vlaneseq
  %v223 = vshrl.u32 %v222, 7
  %v224 = vsub.s32 0, %v223
  %v225 = vrot.slane %v220, %v224
  %v227 = vadd.f32 %v156, %v225
  %v228 = vadd.f32 %v157, %v225
  %v229 = vadd.f32 %v158, %v225
  %v230 = vadd.f32 %v159, %v225
  %v231 = vadd.f32 %v160, %v225
  %v232 = vadd.f32 %v161, %v225
  %v233 = vadd.f32 %v162, %v225
  %v234 = vadd.f32 %v163, %v225
  %v235 = vadd.f32 %v164, %v225
  %v236 = vadd.f32 %v165, %v225
  %v237 = vadd.f32 %v166, %v225
  %v238 = vadd.f32 %v167, %v225
  %v239 = vadd.f32 %v168, %v225
  %v240 = vadd.f32 %v169, %v225
  %v241 = vadd.f32 %v170, %v225
  %v242 = vadd.f32 %v171, %v225
  %v243 = vadd.f32 %v172, %v225
  %v244 = vadd.f32 %v173, %v225
  %v245 = vadd.f32 %v174, %v225
  %v246 = vadd.f32 %v175, %v225
  %v247 = vadd.f32 %v176, %v225
  %v248 = vadd.f32 %v177, %v225
  %v249 = vadd.f32 %v178, %v225
  %v250 = vadd.f32 %v179, %v225
  %v251 = vadd.f32 %v180, %v225
  %v252 = vadd.f32 %v181, %v225
  %v253 = vadd.f32 %v182, %v225
  %v254 = vadd.f32 %v183, %v225
  %v255 = vadd.f32 %v184, %v225
  %v256 = vadd.f32 %v185, %v225
  %v257 = vadd.f32 %v186, %v225
  %v258 = vadd.f32 %v187, %v225
  %v259 = vadd.f32 %v188, %v225
  %v260 = vadd.f32 %v189, %v225
  %v261 = vadd.f32 %v190, %v225
  %v262 = vadd.f32 %v191, %v225
  %v263 = vadd.f32 %v192, %v225
  %v264 = vadd.f32 %v193, %v225
  %v265 = vadd.f32 %v194, %v225
  %v266 = vadd.f32 %v195, %v225
  %v267 = vadd.f32 %v196, %v225
  %v268 = vadd.f32 %v197, %v225
  %v269 = vadd.f32 %v198, %v225
  %v270 = vadd.f32 %v199, %v225
  %v271 = vadd.f32 %v200, %v225
  %v272 = vadd.f32 %v201, %v225
  %v273 = vadd.f32 %v202, %v225
  %v274 = vadd.f32 %v203, %v225
  %v275 = vadd.f32 %v204, %v225
  %v276 = vadd.f32 %v205, %v225
  %v277 = vadd.f32 %v206, %v225
  %v278 = vadd.f32 %v207, %v225
  %v279 = vadd.f32 %v208, %v225
  %v280 = vadd.f32 %v209, %v225
  %v281 = vadd.f32 %v210, %v225
  %v282 = vadd.f32 %v211, %v225
  %v283 = vadd.f32 %v212, %v225
  %v284 = vadd.f32 %v213, %v225
  %v285 = vadd.f32 %v214, %v225
  %v286 = vadd.f32 %v215, %v225
  %v287 = vadd.f32 %v216, %v225
  %v288 = vadd.f32 %v217, %v225
  %v289 = vadd.f32 %v218, %v225
  %v290 = vadd.f32 %v219, %v225
  %v291 = vmax.f32 %v227, 0.0
  %v292 = vmax.f32 %v228, 0.0
  %v293 = vmax.f32 %v229, 0.0
  %v294 = vmax.f32 %v230, 0.0
  %v295 = vmax.f32 %v231, 0.0
  %v296 = vmax.f32 %v232, 0.0
  %v297 = vmax.f32 %v233, 0.0
  %v298 = vmax.f32 %v234, 0.0
  %v299 = vmax.f32 %v235, 0.0
  %v300 = vmax.f32 %v236, 0.0
  %v301 = vmax.f32 %v237, 0.0
  %v302 = vmax.f32 %v238, 0.0
  %v303 = vmax.f32 %v239, 0.0
  %v304 = vmax.f32 %v240, 0.0
  %v305 = vmax.f32 %v241, 0.0
  %v306 = vmax.f32 %v242, 0.0
  %v307 = vmax.f32 %v243, 0.0
  %v308 = vmax.f32 %v244, 0.0
  %v309 = vmax.f32 %v245, 0.0
  %v310 = vmax.f32 %v246, 0.0
  %v311 = vmax.f32 %v247, 0.0
  %v312 = vmax.f32 %v248, 0.0
  %v313 = vmax.f32 %v249, 0.0
  %v314 = vmax.f32 %v250, 0.0
  %v315 = vmax.f32 %v251, 0.0
  %v316 = vmax.f32 %v252, 0.0
  %v317 = vmax.f32 %v253, 0.0
  %v318 = vmax.f32 %v254, 0.0
  %v319 = vmax.f32 %v255, 0.0
  %v320 = vmax.f32 %v256, 0.0
  %v321 = vmax.f32 %v257, 0.0
  %v322 = vmax.f32 %v258, 0.0
  %v323 = vmax.f32 %v259, 0.0
  %v324 = vmax.f32 %v260, 0.0
  %v325 = vmax.f32 %v261, 0.0
  %v326 = vmax.f32 %v262, 0.0
  %v327 = vmax.f32 %v263, 0.0
  %v328 = vmax.f32 %v264, 0.0
  %v329 = vmax.f32 %v265, 0.0
  %v330 = vmax.f32 %v266, 0.0
  %v331 = vmax.f32 %v267, 0.0
  %v332 = vmax.f32 %v268, 0.0
  %v333 = vmax.f32 %v269, 0.0
  %v334 = vmax.f32 %v270, 0.0
  %v335 = vmax.f32 %v271, 0.0
  %v336 = vmax.f32 %v272, 0.0
  %v337 = vmax.f32 %v273, 0.0
  %v338 = vmax.f32 %v274, 0.0
  %v339 = vmax.f32 %v275, 0.0
  %v340 = vmax.f32 %v276, 0.0
  %v341 = vmax.f32 %v277, 0.0
  %v342 = vmax.f32 %v278, 0.0
  %v343 = vmax.f32 %v279, 0.0
  %v344 = vmax.f32 %v280, 0.0
  %v345 = vmax.f32 %v281, 0.0
  %v346 = vmax.f32 %v282, 0.0
  %v347 = vmax.f32 %v283, 0.0
  %v348 = vmax.f32 %v284, 0.0
  %v349 = vmax.f32 %v285, 0.0
  %v350 = vmax.f32 %v286, 0.0
  %v351 = vmax.f32 %v287, 0.0
  %v352 = vmax.f32 %v288, 0.0
  %v353 = vmax.f32 %v289, 0.0
  %v354 = vmax.f32 %v290, 0.0
  %v355 = vmin.f32 %v291, 6.0
  %v356 = vmin.f32 %v292, 6.0
  %v357 = vmin.f32 %v293, 6.0
  %v358 = vmin.f32 %v294, 6.0
  %v359 = vmin.f32 %v295, 6.0
  %v360 = vmin.f32 %v296, 6.0
  %v361 = vmin.f32 %v297, 6.0
  %v362 = vmin.f32 %v298, 6.0
  %v363 = vmin.f32 %v299, 6.0
  %v364 = vmin.f32 %v300, 6.0
  %v365 = vmin.f32 %v301, 6.0
  %v366 = vmin.f32 %v302, 6.0
  %v367 = vmin.f32 %v303, 6.0
  %v368 = vmin.f32 %v304, 6.0
  %v369 = vmin.f32 %v305, 6.0
  %v370 = vmin.f32 %v306, 6.0
  %v371 = vmin.f32 %v307, 6.0
  %v372 = vmin.f32 %v308, 6.0
  %v373 = vmin.f32 %v309, 6.0
  %v374 = vmin.f32 %v310, 6.0
  %v375 = vmin.f32 %v311, 6.0
  %v376 = vmin.f32 %v312, 6.0
  %v377 = vmin.f32 %v313, 6.0
  %v378 = vmin.f32 %v314, 6.0
  %v379 = vmin.f32 %v315, 6.0
  %v380 = vmin.f32 %v316, 6.0
  %v381 = vmin.f32 %v317, 6.0
  %v382 = vmin.f32 %v318, 6.0
  %v383 = vmin.f32 %v319, 6.0
  %v384 = vmin.f32 %v320, 6.0
  %v385 = vmin.f32 %v321, 6.0
  %v386 = vmin.f32 %v322, 6.0
  %v387 = vmin.f32 %v323, 6.0
  %v388 = vmin.f32 %v324, 6.0
  %v389 = vmin.f32 %v325, 6.0
  %v390 = vmin.f32 %v326, 6.0
  %v391 = vmin.f32 %v327, 6.0
  %v392 = vmin.f32 %v328, 6.0
  %v393 = vmin.f32 %v329, 6.0
  %v394 = vmin.f32 %v330, 6.0
  %v395 = vmin.f32 %v331, 6.0
  %v396 = vmin.f32 %v332, 6.0
  %v397 = vmin.f32 %v333, 6.0
  %v398 = vmin.f32 %v334, 6.0
  %v399 = vmin.f32 %v335, 6.0
  %v400 = vmin.f32 %v336, 6.0
  %v401 = vmin.f32 %v337, 6.0
  %v402 = vmin.f32 %v338, 6.0
  %v403 = vmin.f32 %v339, 6.0
  %v404 = vmin.f32 %v340, 6.0
  %v405 = vmin.f32 %v341, 6.0
  %v406 = vmin.f32 %v342, 6.0
  %v407 = vmin.f32 %v343, 6.0
  %v408 = vmin.f32 %v344, 6.0
  %v409 = vmin.f32 %v345, 6.0
  %v410 = vmin.f32 %v346, 6.0
  %v411 = vmin.f32 %v347, 6.0
  %v412 = vmin.f32 %v348, 6.0
  %v413 = vmin.f32 %v349, 6.0
  %v414 = vmin.f32 %v350, 6.0
  %v415 = vmin.f32 %v351, 6.0
  %v416 = vmin.f32 %v352, 6.0
  %v417 = vmin.f32 %v353, 6.0
  %v418 = vmin.f32 %v354, 6.0
  %v419 = vpack.c.bf16 %v356, %v355
  %v420 = vpack.c.bf16 %v358, %v357
  %v421 = vpack.c.bf16 %v360, %v359
  %v422 = vpack.c.bf16 %v362, %v361
  %v423 = vpack.c.bf16 %v364, %v363
  %v424 = vpack.c.bf16 %v366, %v365
  %v425 = vpack.c.bf16 %v368, %v367
  %v426 = vpack.c.bf16 %v370, %v369
  %v427 = vpack.c.bf16 %v372, %v371
  %v428 = vpack.c.bf16 %v374, %v373
  %v429 = vpack.c.bf16 %v376, %v375
  %v430 = vpack.c.bf16 %v378, %v377
  %v431 = vpack.c.bf16 %v380, %v379
  %v432 = vpack.c.bf16 %v382, %v381
  %v433 = vpack.c.bf16 %v384, %v383
  %v434 = vpack.c.bf16 %v386, %v385
  %v435 = vpack.c.bf16 %v388, %v387
  %v436 = vpack.c.bf16 %v390, %v389
  %v437 = vpack.c.bf16 %v392, %v391
  %v438 = vpack.c.bf16 %v394, %v393
  %v439 = vpack.c.bf16 %v396, %v395
  %v440 = vpack.c.bf16 %v398, %v397
  %v441 = vpack.c.bf16 %v400, %v399
  %v442 = vpack.c.bf16 %v402, %v401
  %v443 = vpack.c.bf16 %v404, %v403
  %v444 = vpack.c.bf16 %v406, %v405
  %v445 = vpack.c.bf16 %v408, %v407
  %v446 = vpack.c.bf16 %v410, %v409
  %v447 = vpack.c.bf16 %v412, %v411
  %v448 = vpack.c.bf16 %v414, %v413
  %v449 = vpack.c.bf16 %v416, %v415
  %v450 = vpack.c.bf16 %v418, %v417
  %v451 = vld [vmem:[%s3] sm:$0xf]
  %v452 = vld [vmem:[%s3 + $0x4] sm:$0xf]
  %v453 = vld [vmem:[%s3 + $0x8] sm:$0xf]
  %v457 = vunpack.c.l.b16 %v451
  %v458 = vunpack.c.l.b16 %v452
  %v459 = vunpack.c.l.b16 %v453
  %v460 = vpack.c.b16 %v458, %v457
  %v461 = vpack.c.b16 %v459, %v459
  %vm463 = vcmask 195584
  %v465 = vsel %vm463, %v419, 0
  %v468 = vsel %vm463, %v420, 0
  %v471 = vsel %vm463, %v421, 0
  %v474 = vsel %vm463, %v422, 0
  %v477 = vsel %vm463, %v423, 0
  %v480 = vsel %vm463, %v424, 0
  %v483 = vsel %vm463, %v425, 0
  %v486 = vsel %vm463, %v426, 0
  %v489 = vsel %vm463, %v427, 0
  %v492 = vsel %vm463, %v428, 0
  %v495 = vsel %vm463, %v429, 0
  %v498 = vsel %vm463, %v430, 0
  %v501 = vsel %vm463, %v431, 0
  %v504 = vsel %vm463, %v432, 0
  %v507 = vsel %vm463, %v433, 0
  %v510 = vsel %vm463, %v434, 0
  %v513 = vsel %vm463, %v435, 0
  %v516 = vsel %vm463, %v436, 0
  %v519 = vsel %vm463, %v437, 0
  %v522 = vsel %vm463, %v438, 0
  %v525 = vsel %vm463, %v439, 0
  %v528 = vsel %vm463, %v440, 0
  %v531 = vsel %vm463, %v441, 0
  %v534 = vsel %vm463, %v442, 0
  %v537 = vsel %vm463, %v443, 0
  %v540 = vsel %vm463, %v444, 0
  %v543 = vsel %vm463, %v445, 0
  %v546 = vsel %vm463, %v446, 0
  %v549 = vsel %vm463, %v447, 0
  %v552 = vsel %vm463, %v448, 0
  %v555 = vsel %vm463, %v449, 0
  %v558 = vsel %vm463, %v450, 0
  %vm560 = vcmask 1043456
  %v562 = vsel %vm560, %v461, 0
  %564 = vmatprep.subr.bf16.mxu0 0
  %565 = vmatpush1.bf16.msra.mxu0 %v460
  %566 = vmatprep.subr.bf16.mxu0 0
  %567 = vmatpush1.bf16.msra.mxu0 %v562
  %568 = vmatprep.subr.bf16.mxu0 0
  %569 = vmatpush1.bf16.msra.mxu0 0
  %570 = vmatprep.subr.bf16.mxu0 0
  %571 = vmatpush1.bf16.msra.mxu0 0
  %572 = vmatprep.subr.bf16.mxu0 0
  %573 = vmatpush1.bf16.msra.mxu0 0
  %574 = vmatprep.subr.bf16.mxu0 0
  %575 = vmatpush1.bf16.msra.mxu0 0
  %576 = vmatprep.subr.bf16.mxu0 0
  %577 = vmatpush1.bf16.msra.mxu0 0
  %578 = vmatprep.subr.bf16.mxu0 0
  %579 = vmatpush1.bf16.msra.mxu0 0
  %580 = vmatprep.subr.bf16.mxu0 0
  %581 = vmatpush1.bf16.msra.mxu0 0
  %582 = vmatprep.subr.bf16.mxu0 0
  %583 = vmatpush1.bf16.msra.mxu0 0
  %584 = vmatprep.subr.bf16.mxu0 0
  %585 = vmatpush1.bf16.msra.mxu0 0
  %586 = vmatprep.subr.bf16.mxu0 0
  %587 = vmatpush1.bf16.msra.mxu0 0
  %588 = vmatprep.subr.bf16.mxu0 0
  %589 = vmatpush1.bf16.msra.mxu0 0
  %590 = vmatprep.subr.bf16.mxu0 0
  %591 = vmatpush1.bf16.msra.mxu0 0
  %592 = vmatprep.subr.bf16.mxu0 0
  %593 = vmatpush1.bf16.msra.mxu0 0
  %594 = vmatprep.subr.bf16.mxu0 0
  %595 = vmatpush1.bf16.msra.mxu0 0
  %596 = vmatprep.mubr.bf16.mxu0 0
  %597 = vmatmul.mubr.bf16.gmra.mrb[0].mxu0 %v465
  %v598 = vpop.f32.mrb[0].mxu0
  %v599 = vadd.f32 0.0, %v598
  %v600 = vpop.f32.mrb[0].mxu0
  %v601 = vpop.f32.mrb[0].mxu0
  %v602 = vadd.f32 0.0, %v601
  %v603 = vpop.f32.mrb[0].mxu0
  %604 = vmatprep.mubr.bf16.mxu0 0
  %605 = vmatmul.mubr.bf16.gmra.mrb[0].mxu0 %v468
  %v606 = vpop.f32.mrb[0].mxu0
  %v607 = vadd.f32 0.0, %v606
  %v608 = vpop.f32.mrb[0].mxu0
  %v609 = vpop.f32.mrb[0].mxu0
  %v610 = vadd.f32 0.0, %v609
  %v611 = vpop.f32.mrb[0].mxu0
  %612 = vmatprep.mubr.bf16.mxu0 0
  %613 = vmatmul.mubr.bf16.gmra.mrb[0].mxu0 %v471
  %v614 = vpop.f32.mrb[0].mxu0
  %v615 = vadd.f32 0.0, %v614
  %v616 = vpop.f32.mrb[0].mxu0
  %v617 = vpop.f32.mrb[0].mxu0
  %v618 = vadd.f32 0.0, %v617
  %v619 = vpop.f32.mrb[0].mxu0
  %620 = vmatprep.mubr.bf16.mxu0 0
  %621 = vmatmul.mubr.bf16.gmra.mrb[0].mxu0 %v474
  %v622 = vpop.f32.mrb[0].mxu0
  %v623 = vadd.f32 0.0, %v622
  %v624 = vpop.f32.mrb[0].mxu0
  %v625 = vpop.f32.mrb[0].mxu0
  %v626 = vadd.f32 0.0, %v625
  %v627 = vpop.f32.mrb[0].mxu0
  %628 = vmatprep.mubr.bf16.mxu0 0
  %629 = vmatmul.mubr.bf16.gmra.mrb[0].mxu0 %v477
  %v630 = vpop.f32.mrb[0].mxu0
  %v631 = vadd.f32 0.0, %v630
  %v632 = vpop.f32.mrb[0].mxu0
  %v633 = vpop.f32.mrb[0].mxu0
  %v634 = vadd.f32 0.0, %v633
  %v635 = vpop.f32.mrb[0].mxu0
  %636 = vmatprep.mubr.bf16.mxu0 0
  %637 = vmatmul.mubr.bf16.gmra.mrb[0].mxu0 %v480
  %v638 = vpop.f32.mrb[0].mxu0
  %v639 = vadd.f32 0.0, %v638
  %v640 = vpop.f32.mrb[0].mxu0
  %v641 = vpop.f32.mrb[0].mxu0
  %v642 = vadd.f32 0.0, %v641
  %v643 = vpop.f32.mrb[0].mxu0
  %644 = vmatprep.mubr.bf16.mxu0 0
  %645 = vmatmul.mubr.bf16.gmra.mrb[0].mxu0 %v483
  %v646 = vpop.f32.mrb[0].mxu0
  %v647 = vadd.f32 0.0, %v646
  %v648 = vpop.f32.mrb[0].mxu0
  %v649 = vpop.f32.mrb[0].mxu0
  %v650 = vadd.f32 0.0, %v649
  %v651 = vpop.f32.mrb[0].mxu0
  %652 = vmatprep.mubr.bf16.mxu0 0
  %653 = vmatmul.mubr.bf16.gmra.mrb[0].mxu0 %v486
  %v654 = vpop.f32.mrb[0].mxu0
  %v655 = vadd.f32 0.0, %v654
  %v656 = vpop.f32.mrb[0].mxu0
  %v657 = vpop.f32.mrb[0].mxu0
  %v658 = vadd.f32 0.0, %v657
  %v659 = vpop.f32.mrb[0].mxu0
  %660 = vmatprep.mubr.bf16.mxu0 0
  %661 = vmatmul.mubr.bf16.gmra.mrb[0].mxu0 %v489
  %v662 = vpop.f32.mrb[0].mxu0
  %v663 = vadd.f32 0.0, %v662
  %v664 = vpop.f32.mrb[0].mxu0
  %v665 = vpop.f32.mrb[0].mxu0
  %v666 = vadd.f32 0.0, %v665
  %v667 = vpop.f32.mrb[0].mxu0
  %668 = vmatprep.mubr.bf16.mxu0 0
  %669 = vmatmul.mubr.bf16.gmra.mrb[0].mxu0 %v492
  %v670 = vpop.f32.mrb[0].mxu0
  %v671 = vadd.f32 0.0, %v670
  %v672 = vpop.f32.mrb[0].mxu0
  %v673 = vpop.f32.mrb[0].mxu0
  %v674 = vadd.f32 0.0, %v673
  %v675 = vpop.f32.mrb[0].mxu0
  %676 = vmatprep.mubr.bf16.mxu0 0
  %677 = vmatmul.mubr.bf16.gmra.mrb[0].mxu0 %v495
  %v678 = vpop.f32.mrb[0].mxu0
  %v679 = vadd.f32 0.0, %v678
  %v680 = vpop.f32.mrb[0].mxu0
  %v681 = vpop.f32.mrb[0].mxu0
  %v682 = vadd.f32 0.0, %v681
  %v683 = vpop.f32.mrb[0].mxu0
  %684 = vmatprep.mubr.bf16.mxu0 0
  %685 = vmatmul.mubr.bf16.gmra.mrb[0].mxu0 %v498
  %v686 = vpop.f32.mrb[0].mxu0
  %v687 = vadd.f32 0.0, %v686
  %v688 = vpop.f32.mrb[0].mxu0
  %v689 = vpop.f32.mrb[0].mxu0
  %v690 = vadd.f32 0.0, %v689
  %v691 = vpop.f32.mrb[0].mxu0
  %692 = vmatprep.mubr.bf16.mxu0 0
  %693 = vmatmul.mubr.bf16.gmra.mrb[0].mxu0 %v501
  %v694 = vpop.f32.mrb[0].mxu0
  %v695 = vadd.f32 0.0, %v694
  %v696 = vpop.f32.mrb[0].mxu0
  %v697 = vpop.f32.mrb[0].mxu0
  %v698 = vadd.f32 0.0, %v697
  %v699 = vpop.f32.mrb[0].mxu0
  %700 = vmatprep.mubr.bf16.mxu0 0
  %701 = vmatmul.mubr.bf16.gmra.mrb[0].mxu0 %v504
  %v702 = vpop.f32.mrb[0].mxu0
  %v703 = vadd.f32 0.0, %v702
  %v704 = vpop.f32.mrb[0].mxu0
  %v705 = vpop.f32.mrb[0].mxu0
  %v706 = vadd.f32 0.0, %v705
  %v707 = vpop.f32.mrb[0].mxu0
  %708 = vmatprep.mubr.bf16.mxu0 0
  %709 = vmatmul.mubr.bf16.gmra.mrb[0].mxu0 %v507
  %v710 = vpop.f32.mrb[0].mxu0
  %v711 = vadd.f32 0.0, %v710
  %v712 = vpop.f32.mrb[0].mxu0
  %v713 = vpop.f32.mrb[0].mxu0
  %v714 = vadd.f32 0.0, %v713
  %v715 = vpop.f32.mrb[0].mxu0
  %716 = vmatprep.mubr.bf16.mxu0 0
  %717 = vmatmul.mubr.bf16.gmra.mrb[0].mxu0 %v510
  %v718 = vpop.f32.mrb[0].mxu0
  %v719 = vadd.f32 0.0, %v718
  %v720 = vpop.f32.mrb[0].mxu0
  %v721 = vpop.f32.mrb[0].mxu0
  %v722 = vadd.f32 0.0, %v721
  %v723 = vpop.f32.mrb[0].mxu0
  %724 = vmatprep.mubr.bf16.mxu0 0
  %725 = vmatmul.mubr.bf16.gmra.mrb[0].mxu0 %v513
  %v726 = vpop.f32.mrb[0].mxu0
  %v727 = vadd.f32 0.0, %v726
  %v728 = vpop.f32.mrb[0].mxu0
  %v729 = vpop.f32.mrb[0].mxu0
  %v730 = vadd.f32 0.0, %v729
  %v731 = vpop.f32.mrb[0].mxu0
  %732 = vmatprep.mubr.bf16.mxu0 0
  %733 = vmatmul.mubr.bf16.gmra.mrb[0].mxu0 %v516
  %v734 = vpop.f32.mrb[0].mxu0
  %v735 = vadd.f32 0.0, %v734
  %v736 = vpop.f32.mrb[0].mxu0
  %v737 = vpop.f32.mrb[0].mxu0
  %v738 = vadd.f32 0.0, %v737
  %v739 = vpop.f32.mrb[0].mxu0
  %740 = vmatprep.mubr.bf16.mxu0 0
  %741 = vmatmul.mubr.bf16.gmra.mrb[0].mxu0 %v519
  %v742 = vpop.f32.mrb[0].mxu0
  %v743 = vadd.f32 0.0, %v742
  %v744 = vpop.f32.mrb[0].mxu0
  %v745 = vpop.f32.mrb[0].mxu0
  %v746 = vadd.f32 0.0, %v745
  %v747 = vpop.f32.mrb[0].mxu0
  %748 = vmatprep.mubr.bf16.mxu0 0
  %749 = vmatmul.mubr.bf16.gmra.mrb[0].mxu0 %v522
  %v750 = vpop.f32.mrb[0].mxu0
  %v751 = vadd.f32 0.0, %v750
  %v752 = vpop.f32.mrb[0].mxu0
  %v753 = vpop.f32.mrb[0].mxu0
  %v754 = vadd.f32 0.0, %v753
  %v755 = vpop.f32.mrb[0].mxu0
  %756 = vmatprep.mubr.bf16.mxu0 0
  %757 = vmatmul.mubr.bf16.gmra.mrb[0].mxu0 %v525
  %v758 = vpop.f32.mrb[0].mxu0
  %v759 = vadd.f32 0.0, %v758
  %v760 = vpop.f32.mrb[0].mxu0
  %v761 = vpop.f32.mrb[0].mxu0
  %v762 = vadd.f32 0.0, %v761
  %v763 = vpop.f32.mrb[0].mxu0
  %764 = vmatprep.mubr.bf16.mxu0 0
  %765 = vmatmul.mubr.bf16.gmra.mrb[0].mxu0 %v528
  %v766 = vpop.f32.mrb[0].mxu0
  %v767 = vadd.f32 0.0, %v766
  %v768 = vpop.f32.mrb[0].mxu0
  %v769 = vpop.f32.mrb[0].mxu0
  %v770 = vadd.f32 0.0, %v769
  %v771 = vpop.f32.mrb[0].mxu0
  %772 = vmatprep.mubr.bf16.mxu0 0
  %773 = vmatmul.mubr.bf16.gmra.mrb[0].mxu0 %v531
  %v774 = vpop.f32.mrb[0].mxu0
  %v775 = vadd.f32 0.0, %v774
  %v776 = vpop.f32.mrb[0].mxu0
  %v777 = vpop.f32.mrb[0].mxu0
  %v778 = vadd.f32 0.0, %v777
  %v779 = vpop.f32.mrb[0].mxu0
  %780 = vmatprep.mubr.bf16.mxu0 0
  %781 = vmatmul.mubr.bf16.gmra.mrb[0].mxu0 %v534
  %v782 = vpop.f32.mrb[0].mxu0
  %v783 = vadd.f32 0.0, %v782
  %v784 = vpop.f32.mrb[0].mxu0
  %v785 = vpop.f32.mrb[0].mxu0
  %v786 = vadd.f32 0.0, %v785
  %v787 = vpop.f32.mrb[0].mxu0
  %788 = vmatprep.mubr.bf16.mxu0 0
  %789 = vmatmul.mubr.bf16.gmra.mrb[0].mxu0 %v537
  %v790 = vpop.f32.mrb[0].mxu0
  %v791 = vadd.f32 0.0, %v790
  %v792 = vpop.f32.mrb[0].mxu0
  %v793 = vpop.f32.mrb[0].mxu0
  %v794 = vadd.f32 0.0, %v793
  %v795 = vpop.f32.mrb[0].mxu0
  %796 = vmatprep.mubr.bf16.mxu0 0
  %797 = vmatmul.mubr.bf16.gmra.mrb[0].mxu0 %v540
  %v798 = vpop.f32.mrb[0].mxu0
  %v799 = vadd.f32 0.0, %v798
  %v800 = vpop.f32.mrb[0].mxu0
  %v801 = vpop.f32.mrb[0].mxu0
  %v802 = vadd.f32 0.0, %v801
  %v803 = vpop.f32.mrb[0].mxu0
  %804 = vmatprep.mubr.bf16.mxu0 0
  %805 = vmatmul.mubr.bf16.gmra.mrb[0].mxu0 %v543
  %v806 = vpop.f32.mrb[0].mxu0
  %v807 = vadd.f32 0.0, %v806
  %v808 = vpop.f32.mrb[0].mxu0
  %v809 = vpop.f32.mrb[0].mxu0
  %v810 = vadd.f32 0.0, %v809
  %v811 = vpop.f32.mrb[0].mxu0
  %812 = vmatprep.mubr.bf16.mxu0 0
  %813 = vmatmul.mubr.bf16.gmra.mrb[0].mxu0 %v546
  %v814 = vpop.f32.mrb[0].mxu0
  %v815 = vadd.f32 0.0, %v814
  %v816 = vpop.f32.mrb[0].mxu0
  %v817 = vpop.f32.mrb[0].mxu0
  %v818 = vadd.f32 0.0, %v817
  %v819 = vpop.f32.mrb[0].mxu0
  %820 = vmatprep.mubr.bf16.mxu0 0
  %821 = vmatmul.mubr.bf16.gmra.mrb[0].mxu0 %v549
  %v822 = vpop.f32.mrb[0].mxu0
  %v823 = vadd.f32 0.0, %v822
  %v824 = vpop.f32.mrb[0].mxu0
  %v825 = vpop.f32.mrb[0].mxu0
  %v826 = vadd.f32 0.0, %v825
  %v827 = vpop.f32.mrb[0].mxu0
  %828 = vmatprep.mubr.bf16.mxu0 0
  %829 = vmatmul.mubr.bf16.gmra.mrb[0].mxu0 %v552
  %v830 = vpop.f32.mrb[0].mxu0
  %v831 = vadd.f32 0.0, %v830
  %v832 = vpop.f32.mrb[0].mxu0
  %v833 = vpop.f32.mrb[0].mxu0
  %v834 = vadd.f32 0.0, %v833
  %v835 = vpop.f32.mrb[0].mxu0
  %836 = vmatprep.mubr.bf16.mxu0 0
  %837 = vmatmul.mubr.bf16.gmra.mrb[0].mxu0 %v555
  %v838 = vpop.f32.mrb[0].mxu0
  %v839 = vadd.f32 0.0, %v838
  %v840 = vpop.f32.mrb[0].mxu0
  %v841 = vpop.f32.mrb[0].mxu0
  %v842 = vadd.f32 0.0, %v841
  %v843 = vpop.f32.mrb[0].mxu0
  %844 = vmatprep.mubr.bf16.mxu0 0
  %845 = vmatmul.mubr.bf16.gmra.mrb[0].mxu0 %v558
  %v846 = vpop.f32.mrb[0].mxu0
  %v847 = vadd.f32 0.0, %v846
  %v848 = vpop.f32.mrb[0].mxu0
  %v849 = vpop.f32.mrb[0].mxu0
  %v850 = vadd.f32 0.0, %v849
  %v851 = vpop.f32.mrb[0].mxu0
  %852 = vdwg.mxu0
  %v853 = vpack.c.bf16 %v602, %v599
  %v854 = vpack.c.bf16 %v610, %v607
  %v855 = vpack.c.bf16 %v618, %v615
  %v856 = vpack.c.bf16 %v626, %v623
  %v857 = vpack.c.bf16 %v634, %v631
  %v858 = vpack.c.bf16 %v642, %v639
  %v859 = vpack.c.bf16 %v650, %v647
  %v860 = vpack.c.bf16 %v658, %v655
  %v861 = vpack.c.bf16 %v666, %v663
  %v862 = vpack.c.bf16 %v674, %v671
  %v863 = vpack.c.bf16 %v682, %v679
  %v864 = vpack.c.bf16 %v690, %v687
  %v865 = vpack.c.bf16 %v698, %v695
  %v866 = vpack.c.bf16 %v706, %v703
  %v867 = vpack.c.bf16 %v714, %v711
  %v868 = vpack.c.bf16 %v722, %v719
  %v869 = vpack.c.bf16 %v730, %v727
  %v870 = vpack.c.bf16 %v738, %v735
  %v871 = vpack.c.bf16 %v746, %v743
  %v872 = vpack.c.bf16 %v754, %v751
  %v873 = vpack.c.bf16 %v762, %v759
  %v874 = vpack.c.bf16 %v770, %v767
  %v875 = vpack.c.bf16 %v778, %v775
  %v876 = vpack.c.bf16 %v786, %v783
  %v877 = vpack.c.bf16 %v794, %v791
  %v878 = vpack.c.bf16 %v802, %v799
  %v879 = vpack.c.bf16 %v810, %v807
  %v880 = vpack.c.bf16 %v818, %v815
  %v881 = vpack.c.bf16 %v826, %v823
  %v882 = vpack.c.bf16 %v834, %v831
  %v883 = vpack.c.bf16 %v842, %v839
  %v884 = vpack.c.bf16 %v850, %v847
  %v917 = vunpack.c.l.b16 %v853
  %v918 = vunpack.c.h.b16 %v853
  %v919 = vunpack.c.l.b16 %v854
  %v920 = vunpack.c.h.b16 %v854
  %v921 = vunpack.c.l.b16 %v855
  %v922 = vunpack.c.h.b16 %v855
  %v923 = vunpack.c.l.b16 %v856
  %v924 = vunpack.c.h.b16 %v856
  %v925 = vunpack.c.l.b16 %v857
  %v926 = vunpack.c.h.b16 %v857
  %v927 = vunpack.c.l.b16 %v858
  %v928 = vunpack.c.h.b16 %v858
  %v929 = vunpack.c.l.b16 %v859
  %v930 = vunpack.c.h.b16 %v859
  %v931 = vunpack.c.l.b16 %v860
  %v932 = vunpack.c.h.b16 %v860
  %v933 = vunpack.c.l.b16 %v861
  %v934 = vunpack.c.h.b16 %v861
  %v935 = vunpack.c.l.b16 %v862
  %v936 = vunpack.c.h.b16 %v862
  %v937 = vunpack.c.l.b16 %v863
  %v938 = vunpack.c.h.b16 %v863
  %v939 = vunpack.c.l.b16 %v864
  %v940 = vunpack.c.h.b16 %v864
  %v941 = vunpack.c.l.b16 %v865
  %v942 = vunpack.c.h.b16 %v865
  %v943 = vunpack.c.l.b16 %v866
  %v944 = vunpack.c.h.b16 %v866
  %v945 = vunpack.c.l.b16 %v867
  %v946 = vunpack.c.h.b16 %v867
  %v947 = vunpack.c.l.b16 %v868
  %v948 = vunpack.c.h.b16 %v868
  %v949 = vunpack.c.l.b16 %v869
  %v950 = vunpack.c.h.b16 %v869
  %v951 = vunpack.c.l.b16 %v870
  %v952 = vunpack.c.h.b16 %v870
  %v953 = vunpack.c.l.b16 %v871
  %v954 = vunpack.c.h.b16 %v871
  %v955 = vunpack.c.l.b16 %v872
  %v956 = vunpack.c.h.b16 %v872
  %v957 = vunpack.c.l.b16 %v873
  %v958 = vunpack.c.h.b16 %v873
  %v959 = vunpack.c.l.b16 %v874
  %v960 = vunpack.c.h.b16 %v874
  %v961 = vunpack.c.l.b16 %v875
  %v962 = vunpack.c.h.b16 %v875
  %v963 = vunpack.c.l.b16 %v876
  %v964 = vunpack.c.h.b16 %v876
  %v965 = vunpack.c.l.b16 %v877
  %v966 = vunpack.c.h.b16 %v877
  %v967 = vunpack.c.l.b16 %v878
  %v968 = vunpack.c.h.b16 %v878
  %v969 = vunpack.c.l.b16 %v879
  %v970 = vunpack.c.h.b16 %v879
  %v971 = vunpack.c.l.b16 %v880
  %v972 = vunpack.c.h.b16 %v880
  %v973 = vunpack.c.l.b16 %v881
  %v974 = vunpack.c.h.b16 %v881
  %v975 = vunpack.c.l.b16 %v882
  %v976 = vunpack.c.h.b16 %v882
  %v977 = vunpack.c.l.b16 %v883
  %v978 = vunpack.c.h.b16 %v883
  %v979 = vunpack.c.l.b16 %v884
  %v980 = vunpack.c.h.b16 %v884
  %v981 = vpack.c.b16 %v917, %v917
  %v982 = vpack.c.b16 %v918, %v918
  %v983 = vpack.c.b16 %v919, %v919
  %v984 = vpack.c.b16 %v920, %v920
  %v985 = vpack.c.b16 %v921, %v921
  %v986 = vpack.c.b16 %v922, %v922
  %v987 = vpack.c.b16 %v923, %v923
  %v988 = vpack.c.b16 %v924, %v924
  %v989 = vpack.c.b16 %v925, %v925
  %v990 = vpack.c.b16 %v926, %v926
  %v991 = vpack.c.b16 %v927, %v927
  %v992 = vpack.c.b16 %v928, %v928
  %v993 = vpack.c.b16 %v929, %v929
  %v994 = vpack.c.b16 %v930, %v930
  %v995 = vpack.c.b16 %v931, %v931
  %v996 = vpack.c.b16 %v932, %v932
  %v997 = vpack.c.b16 %v933, %v933
  %v998 = vpack.c.b16 %v934, %v934
  %v999 = vpack.c.b16 %v935, %v935
  %v1000 = vpack.c.b16 %v936, %v936
  %v1001 = vpack.c.b16 %v937, %v937
  %v1002 = vpack.c.b16 %v938, %v938
  %v1003 = vpack.c.b16 %v939, %v939
  %v1004 = vpack.c.b16 %v940, %v940
  %v1005 = vpack.c.b16 %v941, %v941
  %v1006 = vpack.c.b16 %v942, %v942
  %v1007 = vpack.c.b16 %v943, %v943
  %v1008 = vpack.c.b16 %v944, %v944
  %v1009 = vpack.c.b16 %v945, %v945
  %v1010 = vpack.c.b16 %v946, %v946
  %v1011 = vpack.c.b16 %v947, %v947
  %v1012 = vpack.c.b16 %v948, %v948
  %v1013 = vpack.c.b16 %v949, %v949
  %v1014 = vpack.c.b16 %v950, %v950
  %v1015 = vpack.c.b16 %v951, %v951
  %v1016 = vpack.c.b16 %v952, %v952
  %v1017 = vpack.c.b16 %v953, %v953
  %v1018 = vpack.c.b16 %v954, %v954
  %v1019 = vpack.c.b16 %v955, %v955
  %v1020 = vpack.c.b16 %v956, %v956
  %v1021 = vpack.c.b16 %v957, %v957
  %v1022 = vpack.c.b16 %v958, %v958
  %v1023 = vpack.c.b16 %v959, %v959
  %v1024 = vpack.c.b16 %v960, %v960
  %v1025 = vpack.c.b16 %v961, %v961
  %v1026 = vpack.c.b16 %v962, %v962
  %v1027 = vpack.c.b16 %v963, %v963
  %v1028 = vpack.c.b16 %v964, %v964
  %v1029 = vpack.c.b16 %v965, %v965
  %v1030 = vpack.c.b16 %v966, %v966
  %v1031 = vpack.c.b16 %v967, %v967
  %v1032 = vpack.c.b16 %v968, %v968
  %v1033 = vpack.c.b16 %v969, %v969
  %v1034 = vpack.c.b16 %v970, %v970
  %v1035 = vpack.c.b16 %v971, %v971
  %v1036 = vpack.c.b16 %v972, %v972
  %v1037 = vpack.c.b16 %v973, %v973
  %v1038 = vpack.c.b16 %v974, %v974
  %v1039 = vpack.c.b16 %v975, %v975
  %v1040 = vpack.c.b16 %v976, %v976
  %v1041 = vpack.c.b16 %v977, %v977
  %v1042 = vpack.c.b16 %v978, %v978
  %v1043 = vpack.c.b16 %v979, %v979
  %v1044 = vpack.c.b16 %v980, %v980
  %vm1109 = vcmask 27648
  %1110 = vst.msk [vmem:[%s4] sm:$0xf] %vm1109, %v981
  %1111 = vst.msk [vmem:[%s4 + $0x4] sm:$0xf] %vm1109, %v982
  %1112 = vst.msk [vmem:[%s4 + $0x8] sm:$0xf] %vm1109, %v983
  %1113 = vst.msk [vmem:[%s4 + $0xc] sm:$0xf] %vm1109, %v984
  %1114 = vst.msk [vmem:[%s4 + $0x10] sm:$0xf] %vm1109, %v985
  %1115 = vst.msk [vmem:[%s4 + $0x14] sm:$0xf] %vm1109, %v986
  %1116 = vst.msk [vmem:[%s4 + $0x18] sm:$0xf] %vm1109, %v987
  %1117 = vst.msk [vmem:[%s4 + $0x1c] sm:$0xf] %vm1109, %v988
  %1118 = vst.msk [vmem:[%s4 + $0x20] sm:$0xf] %vm1109, %v989
  %1119 = vst.msk [vmem:[%s4 + $0x24] sm:$0xf] %vm1109, %v990
  %1120 = vst.msk [vmem:[%s4 + $0x28] sm:$0xf] %vm1109, %v991
  %1121 = vst.msk [vmem:[%s4 + $0x2c] sm:$0xf] %vm1109, %v992
  %1122 = vst.msk [vmem:[%s4 + $0x30] sm:$0xf] %vm1109, %v993
  %1123 = vst.msk [vmem:[%s4 + $0x34] sm:$0xf] %vm1109, %v994
  %1124 = vst.msk [vmem:[%s4 + $0x38] sm:$0xf] %vm1109, %v995
  %1125 = vst.msk [vmem:[%s4 + $0x3c] sm:$0xf] %vm1109, %v996
  %1126 = vst.msk [vmem:[%s4 + $0x40] sm:$0xf] %vm1109, %v997
  %1127 = vst.msk [vmem:[%s4 + $0x44] sm:$0xf] %vm1109, %v998
  %1128 = vst.msk [vmem:[%s4 + $0x48] sm:$0xf] %vm1109, %v999
  %1129 = vst.msk [vmem:[%s4 + $0x4c] sm:$0xf] %vm1109, %v1000
  %1130 = vst.msk [vmem:[%s4 + $0x50] sm:$0xf] %vm1109, %v1001
  %1131 = vst.msk [vmem:[%s4 + $0x54] sm:$0xf] %vm1109, %v1002
  %1132 = vst.msk [vmem:[%s4 + $0x58] sm:$0xf] %vm1109, %v1003
  %1133 = vst.msk [vmem:[%s4 + $0x5c] sm:$0xf] %vm1109, %v1004
  %1134 = vst.msk [vmem:[%s4 + $0x60] sm:$0xf] %vm1109, %v1005
  %1135 = vst.msk [vmem:[%s4 + $0x64] sm:$0xf] %vm1109, %v1006
  %1136 = vst.msk [vmem:[%s4 + $0x68] sm:$0xf] %vm1109, %v1007
  %1137 = vst.msk [vmem:[%s4 + $0x6c] sm:$0xf] %vm1109, %v1008
  %1138 = vst.msk [vmem:[%s4 + $0x70] sm:$0xf] %vm1109, %v1009
  %1139 = vst.msk [vmem:[%s4 + $0x74] sm:$0xf] %vm1109, %v1010
  %1140 = vst.msk [vmem:[%s4 + $0x78] sm:$0xf] %vm1109, %v1011
  %1141 = vst.msk [vmem:[%s4 + $0x7c] sm:$0xf] %vm1109, %v1012
  %1142 = vst.msk [vmem:[%s4 + $0x80] sm:$0xf] %vm1109, %v1013
  %1143 = vst.msk [vmem:[%s4 + $0x84] sm:$0xf] %vm1109, %v1014
  %1144 = vst.msk [vmem:[%s4 + $0x88] sm:$0xf] %vm1109, %v1015
  %1145 = vst.msk [vmem:[%s4 + $0x8c] sm:$0xf] %vm1109, %v1016
  %1146 = vst.msk [vmem:[%s4 + $0x90] sm:$0xf] %vm1109, %v1017
  %1147 = vst.msk [vmem:[%s4 + $0x94] sm:$0xf] %vm1109, %v1018
  %1148 = vst.msk [vmem:[%s4 + $0x98] sm:$0xf] %vm1109, %v1019
  %1149 = vst.msk [vmem:[%s4 + $0x9c] sm:$0xf] %vm1109, %v1020
  %1150 = vst.msk [vmem:[%s4 + $0xa0] sm:$0xf] %vm1109, %v1021
  %1151 = vst.msk [vmem:[%s4 + $0xa4] sm:$0xf] %vm1109, %v1022
  %1152 = vst.msk [vmem:[%s4 + $0xa8] sm:$0xf] %vm1109, %v1023
  %1153 = vst.msk [vmem:[%s4 + $0xac] sm:$0xf] %vm1109, %v1024
  %1154 = vst.msk [vmem:[%s4 + $0xb0] sm:$0xf] %vm1109, %v1025
  %1155 = vst.msk [vmem:[%s4 + $0xb4] sm:$0xf] %vm1109, %v1026
  %1156 = vst.msk [vmem:[%s4 + $0xb8] sm:$0xf] %vm1109, %v1027
  %1157 = vst.msk [vmem:[%s4 + $0xbc] sm:$0xf] %vm1109, %v1028
  %1158 = vst.msk [vmem:[%s4 + $0xc0] sm:$0xf] %vm1109, %v1029
  %1159 = vst.msk [vmem:[%s4 + $0xc4] sm:$0xf] %vm1109, %v1030
  %1160 = vst.msk [vmem:[%s4 + $0xc8] sm:$0xf] %vm1109, %v1031
  %1161 = vst.msk [vmem:[%s4 + $0xcc] sm:$0xf] %vm1109, %v1032
  %1162 = vst.msk [vmem:[%s4 + $0xd0] sm:$0xf] %vm1109, %v1033
  %1163 = vst.msk [vmem:[%s4 + $0xd4] sm:$0xf] %vm1109, %v1034
  %1164 = vst.msk [vmem:[%s4 + $0xd8] sm:$0xf] %vm1109, %v1035
  %1165 = vst.msk [vmem:[%s4 + $0xdc] sm:$0xf] %vm1109, %v1036
  %1166 = vst.msk [vmem:[%s4 + $0xe0] sm:$0xf] %vm1109, %v1037
  %1167 = vst.msk [vmem:[%s4 + $0xe4] sm:$0xf] %vm1109, %v1038
  %1168 = vst.msk [vmem:[%s4 + $0xe8] sm:$0xf] %vm1109, %v1039
  %1169 = vst.msk [vmem:[%s4 + $0xec] sm:$0xf] %vm1109, %v1040
  %1170 = vst.msk [vmem:[%s4 + $0xf0] sm:$0xf] %vm1109, %v1041
  %1171 = vst.msk [vmem:[%s4 + $0xf4] sm:$0xf] %vm1109, %v1042
  %1172 = vst.msk [vmem:[%s4 + $0xf8] sm:$0xf] %vm1109, %v1043
  %1173 = vst.msk [vmem:[%s4 + $0xfc] sm:$0xf] %vm1109, %v1044
  %vm1174 = vcmask 31744
  %v1175 = vsel %vm1174, %v599, 0.0
  %v1176 = vsel %vm1174, %v602, 0.0
  %v1177 = vadd.f32 %v1175, %v1176
  %v1178 = vsel %vm1174, %v607, 0.0
  %v1179 = vadd.f32 %v1177, %v1178
  %v1180 = vsel %vm1174, %v610, 0.0
  %v1181 = vadd.f32 %v1179, %v1180
  %v1182 = vsel %vm1174, %v615, 0.0
  %v1183 = vadd.f32 %v1181, %v1182
  %v1184 = vsel %vm1174, %v618, 0.0
  %v1185 = vadd.f32 %v1183, %v1184
  %v1186 = vsel %vm1174, %v623, 0.0
  %v1187 = vadd.f32 %v1185, %v1186
  %v1188 = vsel %vm1174, %v626, 0.0
  %v1189 = vadd.f32 %v1187, %v1188
  %v1190 = vsel %vm1174, %v631, 0.0
  %v1191 = vadd.f32 %v1189, %v1190
  %v1192 = vsel %vm1174, %v634, 0.0
  %v1193 = vadd.f32 %v1191, %v1192
  %v1194 = vsel %vm1174, %v639, 0.0
  %v1195 = vadd.f32 %v1193, %v1194
  %v1196 = vsel %vm1174, %v642, 0.0
  %v1197 = vadd.f32 %v1195, %v1196
  %v1198 = vsel %vm1174, %v647, 0.0
  %v1199 = vadd.f32 %v1197, %v1198
  %v1200 = vsel %vm1174, %v650, 0.0
  %v1201 = vadd.f32 %v1199, %v1200
  %v1202 = vsel %vm1174, %v655, 0.0
  %v1203 = vadd.f32 %v1201, %v1202
  %v1204 = vsel %vm1174, %v658, 0.0
  %v1205 = vadd.f32 %v1203, %v1204
  %v1206 = vsel %vm1174, %v663, 0.0
  %v1207 = vadd.f32 %v1205, %v1206
  %v1208 = vsel %vm1174, %v666, 0.0
  %v1209 = vadd.f32 %v1207, %v1208
  %v1210 = vsel %vm1174, %v671, 0.0
  %v1211 = vadd.f32 %v1209, %v1210
  %v1212 = vsel %vm1174, %v674, 0.0
  %v1213 = vadd.f32 %v1211, %v1212
  %v1214 = vsel %vm1174, %v679, 0.0
  %v1215 = vadd.f32 %v1213, %v1214
  %v1216 = vsel %vm1174, %v682, 0.0
  %v1217 = vadd.f32 %v1215, %v1216
  %v1218 = vsel %vm1174, %v687, 0.0
  %v1219 = vadd.f32 %v1217, %v1218
  %v1220 = vsel %vm1174, %v690, 0.0
  %v1221 = vadd.f32 %v1219, %v1220
  %v1222 = vsel %vm1174, %v695, 0.0
  %v1223 = vadd.f32 %v1221, %v1222
  %v1224 = vsel %vm1174, %v698, 0.0
  %v1225 = vadd.f32 %v1223, %v1224
  %v1226 = vsel %vm1174, %v703, 0.0
  %v1227 = vadd.f32 %v1225, %v1226
  %v1228 = vsel %vm1174, %v706, 0.0
  %v1229 = vadd.f32 %v1227, %v1228
  %v1230 = vsel %vm1174, %v711, 0.0
  %v1231 = vadd.f32 %v1229, %v1230
  %v1232 = vsel %vm1174, %v714, 0.0
  %v1233 = vadd.f32 %v1231, %v1232
  %v1234 = vsel %vm1174, %v719, 0.0
  %v1235 = vadd.f32 %v1233, %v1234
  %v1236 = vsel %vm1174, %v722, 0.0
  %v1237 = vadd.f32 %v1235, %v1236
  %v1238 = vsel %vm1174, %v727, 0.0
  %v1239 = vadd.f32 %v1237, %v1238
  %v1240 = vsel %vm1174, %v730, 0.0
  %v1241 = vadd.f32 %v1239, %v1240
  %v1242 = vsel %vm1174, %v735, 0.0
  %v1243 = vadd.f32 %v1241, %v1242
  %v1244 = vsel %vm1174, %v738, 0.0
  %v1245 = vadd.f32 %v1243, %v1244
  %v1246 = vsel %vm1174, %v743, 0.0
  %v1247 = vadd.f32 %v1245, %v1246
  %v1248 = vsel %vm1174, %v746, 0.0
  %v1249 = vadd.f32 %v1247, %v1248
  %v1250 = vsel %vm1174, %v751, 0.0
  %v1251 = vadd.f32 %v1249, %v1250
  %v1252 = vsel %vm1174, %v754, 0.0
  %v1253 = vadd.f32 %v1251, %v1252
  %v1254 = vsel %vm1174, %v759, 0.0
  %v1255 = vadd.f32 %v1253, %v1254
  %v1256 = vsel %vm1174, %v762, 0.0
  %v1257 = vadd.f32 %v1255, %v1256
  %v1258 = vsel %vm1174, %v767, 0.0
  %v1259 = vadd.f32 %v1257, %v1258
  %v1260 = vsel %vm1174, %v770, 0.0
  %v1261 = vadd.f32 %v1259, %v1260
  %v1262 = vsel %vm1174, %v775, 0.0
  %v1263 = vadd.f32 %v1261, %v1262
  %v1264 = vsel %vm1174, %v778, 0.0
  %v1265 = vadd.f32 %v1263, %v1264
  %v1266 = vsel %vm1174, %v783, 0.0
  %v1267 = vadd.f32 %v1265, %v1266
  %v1268 = vsel %vm1174, %v786, 0.0
  %v1269 = vadd.f32 %v1267, %v1268
  %v1270 = vsel %vm1174, %v791, 0.0
  %v1271 = vadd.f32 %v1269, %v1270
  %v1272 = vsel %vm1174, %v794, 0.0
  %v1273 = vadd.f32 %v1271, %v1272
  %v1274 = vsel %vm1174, %v799, 0.0
  %v1275 = vadd.f32 %v1273, %v1274
  %v1276 = vsel %vm1174, %v802, 0.0
  %v1277 = vadd.f32 %v1275, %v1276
  %v1278 = vsel %vm1174, %v807, 0.0
  %v1279 = vadd.f32 %v1277, %v1278
  %v1280 = vsel %vm1174, %v810, 0.0
  %v1281 = vadd.f32 %v1279, %v1280
  %v1282 = vsel %vm1174, %v815, 0.0
  %v1283 = vadd.f32 %v1281, %v1282
  %v1284 = vsel %vm1174, %v818, 0.0
  %v1285 = vadd.f32 %v1283, %v1284
  %v1286 = vsel %vm1174, %v823, 0.0
  %v1287 = vadd.f32 %v1285, %v1286
  %v1288 = vsel %vm1174, %v826, 0.0
  %v1289 = vadd.f32 %v1287, %v1288
  %v1290 = vsel %vm1174, %v831, 0.0
  %v1291 = vadd.f32 %v1289, %v1290
  %v1292 = vsel %vm1174, %v834, 0.0
  %v1293 = vadd.f32 %v1291, %v1292
  %v1294 = vsel %vm1174, %v839, 0.0
  %v1295 = vadd.f32 %v1293, %v1294
  %v1296 = vsel %vm1174, %v842, 0.0
  %v1297 = vadd.f32 %v1295, %v1296
  %v1298 = vsel %vm1174, %v847, 0.0
  %v1299 = vadd.f32 %v1297, %v1298
  %v1300 = vsel %vm1174, %v850, 0.0
  %v1301 = vadd.f32 %v1299, %v1300
  %v1302 = vrot.slane %v1301, 4
  %v1303 = vadd.f32 %v1301, %v1302
  %v1304 = vrot.slane %v1303, 2
  %v1305 = vadd.f32 %v1303, %v1304
  %v1306 = vrot.slane %v1305, 1
  %v1307 = vadd.f32 %v1305, %v1306
  %vm1308 = vcmask 24576
  %1309 = vst.msk [vmem:[%s5] sm:$0x1] %vm1308, %v1307
  %v1310 = vmul.f32 %v599, %v599
  %v1311 = vmul.f32 %v602, %v602
  %v1312 = vmul.f32 %v607, %v607
  %v1313 = vmul.f32 %v610, %v610
  %v1314 = vmul.f32 %v615, %v615
  %v1315 = vmul.f32 %v618, %v618
  %v1316 = vmul.f32 %v623, %v623
  %v1317 = vmul.f32 %v626, %v626
  %v1318 = vmul.f32 %v631, %v631
  %v1319 = vmul.f32 %v634, %v634
  %v1320 = vmul.f32 %v639, %v639
  %v1321 = vmul.f32 %v642, %v642
  %v1322 = vmul.f32 %v647, %v647
  %v1323 = vmul.f32 %v650, %v650
  %v1324 = vmul.f32 %v655, %v655
  %v1325 = vmul.f32 %v658, %v658
  %v1326 = vmul.f32 %v663, %v663
  %v1327 = vmul.f32 %v666, %v666
  %v1328 = vmul.f32 %v671, %v671
  %v1329 = vmul.f32 %v674, %v674
  %v1330 = vmul.f32 %v679, %v679
  %v1331 = vmul.f32 %v682, %v682
  %v1332 = vmul.f32 %v687, %v687
  %v1333 = vmul.f32 %v690, %v690
  %v1334 = vmul.f32 %v695, %v695
  %v1335 = vmul.f32 %v698, %v698
  %v1336 = vmul.f32 %v703, %v703
  %v1337 = vmul.f32 %v706, %v706
  %v1338 = vmul.f32 %v711, %v711
  %v1339 = vmul.f32 %v714, %v714
  %v1340 = vmul.f32 %v719, %v719
  %v1341 = vmul.f32 %v722, %v722
  %v1342 = vmul.f32 %v727, %v727
  %v1343 = vmul.f32 %v730, %v730
  %v1344 = vmul.f32 %v735, %v735
  %v1345 = vmul.f32 %v738, %v738
  %v1346 = vmul.f32 %v743, %v743
  %v1347 = vmul.f32 %v746, %v746
  %v1348 = vmul.f32 %v751, %v751
  %v1349 = vmul.f32 %v754, %v754
  %v1350 = vmul.f32 %v759, %v759
  %v1351 = vmul.f32 %v762, %v762
  %v1352 = vmul.f32 %v767, %v767
  %v1353 = vmul.f32 %v770, %v770
  %v1354 = vmul.f32 %v775, %v775
  %v1355 = vmul.f32 %v778, %v778
  %v1356 = vmul.f32 %v783, %v783
  %v1357 = vmul.f32 %v786, %v786
  %v1358 = vmul.f32 %v791, %v791
  %v1359 = vmul.f32 %v794, %v794
  %v1360 = vmul.f32 %v799, %v799
  %v1361 = vmul.f32 %v802, %v802
  %v1362 = vmul.f32 %v807, %v807
  %v1363 = vmul.f32 %v810, %v810
  %v1364 = vmul.f32 %v815, %v815
  %v1365 = vmul.f32 %v818, %v818
  %v1366 = vmul.f32 %v823, %v823
  %v1367 = vmul.f32 %v826, %v826
  %v1368 = vmul.f32 %v831, %v831
  %v1369 = vmul.f32 %v834, %v834
  %v1370 = vmul.f32 %v839, %v839
  %v1371 = vmul.f32 %v842, %v842
  %v1372 = vmul.f32 %v847, %v847
  %v1373 = vmul.f32 %v850, %v850
  %v1374 = vsel %vm1174, %v1310, 0.0
  %v1375 = vsel %vm1174, %v1311, 0.0
  %v1376 = vadd.f32 %v1374, %v1375
  %v1377 = vsel %vm1174, %v1312, 0.0
  %v1378 = vadd.f32 %v1376, %v1377
  %v1379 = vsel %vm1174, %v1313, 0.0
  %v1380 = vadd.f32 %v1378, %v1379
  %v1381 = vsel %vm1174, %v1314, 0.0
  %v1382 = vadd.f32 %v1380, %v1381
  %v1383 = vsel %vm1174, %v1315, 0.0
  %v1384 = vadd.f32 %v1382, %v1383
  %v1385 = vsel %vm1174, %v1316, 0.0
  %v1386 = vadd.f32 %v1384, %v1385
  %v1387 = vsel %vm1174, %v1317, 0.0
  %v1388 = vadd.f32 %v1386, %v1387
  %v1389 = vsel %vm1174, %v1318, 0.0
  %v1390 = vadd.f32 %v1388, %v1389
  %v1391 = vsel %vm1174, %v1319, 0.0
  %v1392 = vadd.f32 %v1390, %v1391
  %v1393 = vsel %vm1174, %v1320, 0.0
  %v1394 = vadd.f32 %v1392, %v1393
  %v1395 = vsel %vm1174, %v1321, 0.0
  %v1396 = vadd.f32 %v1394, %v1395
  %v1397 = vsel %vm1174, %v1322, 0.0
  %v1398 = vadd.f32 %v1396, %v1397
  %v1399 = vsel %vm1174, %v1323, 0.0
  %v1400 = vadd.f32 %v1398, %v1399
  %v1401 = vsel %vm1174, %v1324, 0.0
  %v1402 = vadd.f32 %v1400, %v1401
  %v1403 = vsel %vm1174, %v1325, 0.0
  %v1404 = vadd.f32 %v1402, %v1403
  %v1405 = vsel %vm1174, %v1326, 0.0
  %v1406 = vadd.f32 %v1404, %v1405
  %v1407 = vsel %vm1174, %v1327, 0.0
  %v1408 = vadd.f32 %v1406, %v1407
  %v1409 = vsel %vm1174, %v1328, 0.0
  %v1410 = vadd.f32 %v1408, %v1409
  %v1411 = vsel %vm1174, %v1329, 0.0
  %v1412 = vadd.f32 %v1410, %v1411
  %v1413 = vsel %vm1174, %v1330, 0.0
  %v1414 = vadd.f32 %v1412, %v1413
  %v1415 = vsel %vm1174, %v1331, 0.0
  %v1416 = vadd.f32 %v1414, %v1415
  %v1417 = vsel %vm1174, %v1332, 0.0
  %v1418 = vadd.f32 %v1416, %v1417
  %v1419 = vsel %vm1174, %v1333, 0.0
  %v1420 = vadd.f32 %v1418, %v1419
  %v1421 = vsel %vm1174, %v1334, 0.0
  %v1422 = vadd.f32 %v1420, %v1421
  %v1423 = vsel %vm1174, %v1335, 0.0
  %v1424 = vadd.f32 %v1422, %v1423
  %v1425 = vsel %vm1174, %v1336, 0.0
  %v1426 = vadd.f32 %v1424, %v1425
  %v1427 = vsel %vm1174, %v1337, 0.0
  %v1428 = vadd.f32 %v1426, %v1427
  %v1429 = vsel %vm1174, %v1338, 0.0
  %v1430 = vadd.f32 %v1428, %v1429
  %v1431 = vsel %vm1174, %v1339, 0.0
  %v1432 = vadd.f32 %v1430, %v1431
  %v1433 = vsel %vm1174, %v1340, 0.0
  %v1434 = vadd.f32 %v1432, %v1433
  %v1435 = vsel %vm1174, %v1341, 0.0
  %v1436 = vadd.f32 %v1434, %v1435
  %v1437 = vsel %vm1174, %v1342, 0.0
  %v1438 = vadd.f32 %v1436, %v1437
  %v1439 = vsel %vm1174, %v1343, 0.0
  %v1440 = vadd.f32 %v1438, %v1439
  %v1441 = vsel %vm1174, %v1344, 0.0
  %v1442 = vadd.f32 %v1440, %v1441
  %v1443 = vsel %vm1174, %v1345, 0.0
  %v1444 = vadd.f32 %v1442, %v1443
  %v1445 = vsel %vm1174, %v1346, 0.0
  %v1446 = vadd.f32 %v1444, %v1445
  %v1447 = vsel %vm1174, %v1347, 0.0
  %v1448 = vadd.f32 %v1446, %v1447
  %v1449 = vsel %vm1174, %v1348, 0.0
  %v1450 = vadd.f32 %v1448, %v1449
  %v1451 = vsel %vm1174, %v1349, 0.0
  %v1452 = vadd.f32 %v1450, %v1451
  %v1453 = vsel %vm1174, %v1350, 0.0
  %v1454 = vadd.f32 %v1452, %v1453
  %v1455 = vsel %vm1174, %v1351, 0.0
  %v1456 = vadd.f32 %v1454, %v1455
  %v1457 = vsel %vm1174, %v1352, 0.0
  %v1458 = vadd.f32 %v1456, %v1457
  %v1459 = vsel %vm1174, %v1353, 0.0
  %v1460 = vadd.f32 %v1458, %v1459
  %v1461 = vsel %vm1174, %v1354, 0.0
  %v1462 = vadd.f32 %v1460, %v1461
  %v1463 = vsel %vm1174, %v1355, 0.0
  %v1464 = vadd.f32 %v1462, %v1463
  %v1465 = vsel %vm1174, %v1356, 0.0
  %v1466 = vadd.f32 %v1464, %v1465
  %v1467 = vsel %vm1174, %v1357, 0.0
  %v1468 = vadd.f32 %v1466, %v1467
  %v1469 = vsel %vm1174, %v1358, 0.0
  %v1470 = vadd.f32 %v1468, %v1469
  %v1471 = vsel %vm1174, %v1359, 0.0
  %v1472 = vadd.f32 %v1470, %v1471
  %v1473 = vsel %vm1174, %v1360, 0.0
  %v1474 = vadd.f32 %v1472, %v1473
  %v1475 = vsel %vm1174, %v1361, 0.0
  %v1476 = vadd.f32 %v1474, %v1475
  %v1477 = vsel %vm1174, %v1362, 0.0
  %v1478 = vadd.f32 %v1476, %v1477
  %v1479 = vsel %vm1174, %v1363, 0.0
  %v1480 = vadd.f32 %v1478, %v1479
  %v1481 = vsel %vm1174, %v1364, 0.0
  %v1482 = vadd.f32 %v1480, %v1481
  %v1483 = vsel %vm1174, %v1365, 0.0
  %v1484 = vadd.f32 %v1482, %v1483
  %v1485 = vsel %vm1174, %v1366, 0.0
  %v1486 = vadd.f32 %v1484, %v1485
  %v1487 = vsel %vm1174, %v1367, 0.0
  %v1488 = vadd.f32 %v1486, %v1487
  %v1489 = vsel %vm1174, %v1368, 0.0
  %v1490 = vadd.f32 %v1488, %v1489
  %v1491 = vsel %vm1174, %v1369, 0.0
  %v1492 = vadd.f32 %v1490, %v1491
  %v1493 = vsel %vm1174, %v1370, 0.0
  %v1494 = vadd.f32 %v1492, %v1493
  %v1495 = vsel %vm1174, %v1371, 0.0
  %v1496 = vadd.f32 %v1494, %v1495
  %v1497 = vsel %vm1174, %v1372, 0.0
  %v1498 = vadd.f32 %v1496, %v1497
  %v1499 = vsel %vm1174, %v1373, 0.0
  %v1500 = vadd.f32 %v1498, %v1499
  %v1501 = vrot.slane %v1500, 4
  %v1502 = vadd.f32 %v1500, %v1501
  %v1503 = vrot.slane %v1502, 2
  %v1504 = vadd.f32 %v1502, %v1503
  %v1505 = vrot.slane %v1504, 1
  %v1506 = vadd.f32 %v1504, %v1505
  %1507 = vst.msk [vmem:[%s6] sm:$0x1] %vm1308, %v1506
  // Predicated region
  $region18: #{mobilenet_v2_conv2d.6} parent=0 // pred_check
    _
  $region19: #{mobilenet_v2_conv2d.6} parent=0 // pred_check_branch
    %1509 = sbr.rel (0) target = $region21
  $region20: #{mobilenet_v2_conv2d.6} parent=0 // pred_region
    _
  $region21: #{mobilenet_v2_conv2d.6} parent=0 // pred_fallthru
    _
  // Predicated region
  $region22: #{mobilenet_v2_conv2d.6} parent=0 // pred_check
    _
  $region23: #{mobilenet_v2_conv2d.6} parent=0 // pred_check_branch
    %1511 = sbr.rel (0) target = $region25
  $region24: #{mobilenet_v2_conv2d.6} parent=0 // pred_region
    _
  $region25: #{mobilenet_v2_conv2d.6} parent=0 // pred_fallthru
    _
  // Predicated region
  $region26: #{mobilenet_v2_conv2d.6} parent=0 // pred_check
    _
  $region27: #{mobilenet_v2_conv2d.6} parent=0 // pred_check_branch
    %1513 = sbr.rel (0) target = $region29
  $region28: #{mobilenet_v2_conv2d.6} parent=0 // pred_region
    _
  $region29: #{mobilenet_v2_conv2d.6} parent=0 // pred_fallthru
    _
  // Predicated region
  $region30: #{mobilenet_v2_conv2d.6} parent=0 // pred_check
    _
  $region31: #{mobilenet_v2_conv2d.6} parent=0 // pred_check_branch
    %1515 = sbr.rel (0) target = $region33
  $region32: #{mobilenet_v2_conv2d.6} parent=0 // pred_region
    _
  $region33: #{mobilenet_v2_conv2d.6} parent=0 // pred_fallthru
    _
  // Predicated region
  $region34: #{mobilenet_v2_conv2d.6} parent=0 // pred_check
    _
  $region35: #{mobilenet_v2_conv2d.6} parent=0 // pred_check_branch
    %1517 = sbr.rel (0) target = $region37
  $region36: #{mobilenet_v2_conv2d.6} parent=0 // pred_region
    _
  $region37: #{mobilenet_v2_conv2d.6} parent=0 // pred_fallthru
    _
  // Predicated region
  $region38: #{mobilenet_v2_conv2d.6} parent=0 // pred_check
    _
  $region39: #{mobilenet_v2_conv2d.6} parent=0 // pred_check_branch
    %1519 = sbr.rel (0) target = $region41
  $region40: #{mobilenet_v2_conv2d.6} parent=0 // pred_region
    _
  $region41: #{mobilenet_v2_conv2d.6} parent=0 // pred_fallthru
    _

</llo_original>
